<compile_context>
chip_gen: v7x
topology: tpu7x:2x2x1
jax: 0.10.0
libtpu: 0.0.40
codegen_flags: <defaults>
</compile_context>

<pallas_src>
import functools

import jax
import jax.numpy as jnp
from jax.experimental import pallas as pl
from jax.experimental.pallas import tpu as pltpu


def _round_up(n, m):
    return ((n + m - 1) // m) * m


# ---------------------------------------------------------------------------
# Fused kernel: n_enc Linear+Tanh encoder layers, then latent_size hierarchical
# decoders (n_dec - 1 Linear+Tanh layers + 1 final Linear each).
# ---------------------------------------------------------------------------
def _hier_ae_kernel(n_enc, n_dec, latent_size,
                    x_ref, enc_w_ref, enc_b_ref, dec_w_ref, dec_b_ref, out_ref):
    # x_ref:     (TB, P)
    # enc_w_ref: (n_enc, P, P)               enc_b_ref: (n_enc, 1, P)
    # dec_w_ref: (latent_size * n_dec, P, P) dec_b_ref: (latent_size * n_dec, 1, P)
    # out_ref:   (latent_size, TB, P)
    h = x_ref[...]
    for l in range(n_enc):
        h = jnp.tanh(
            jnp.dot(h, enc_w_ref[l], preferred_element_type=jnp.float32)
            + enc_b_ref[l])
    # h is the padded latent code; lanes >= latent_size are exactly zero.
    for i in range(latent_size):
        g = h
        base = i * n_dec
        for l in range(n_dec - 1):
            g = jnp.tanh(
                jnp.dot(g, dec_w_ref[base + l],
                        preferred_element_type=jnp.float32)
                + dec_b_ref[base + l])
        g = (jnp.dot(g, dec_w_ref[base + n_dec - 1],
                     preferred_element_type=jnp.float32)
             + dec_b_ref[base + n_dec - 1])
        out_ref[i] = g.astype(out_ref.dtype)


def hierarchical_ae_forward(x, enc_w, enc_b, dec_w, dec_b, *,
                            input_size, latent_size, n_enc, n_dec,
                            batch_tile=None):
    B = x.shape[0]
    P = enc_w.shape[-1]
    # Pad the input features to the lane-dense width once, outside the kernel.
    x_pad = jnp.zeros((B, P), jnp.float32).at[:, :input_size].set(
        x.astype(jnp.float32))
    # Batch tile: full batch by default (grid of 1).  For large batches pass a
    # multiple of 8 (e.g. 256) to shard across TensorCores on v7x.
    TB = B if batch_tile is None else batch_tile
    grid = (pl.cdiv(B, TB),)
    kernel = functools.partial(_hier_ae_kernel, n_enc, n_dec, latent_size)
    out_pad = pl.pallas_call(
        kernel,
        out_shape=jax.ShapeDtypeStruct((latent_size, B, P), jnp.float32),
        grid_spec=pltpu.PrefetchScalarGridSpec(
            num_scalar_prefetch=0,
            grid=grid,
            in_specs=[
                pl.BlockSpec((TB, P), lambda i: (i, 0)),
                pl.BlockSpec(enc_w.shape, lambda i: (0, 0, 0)),
                pl.BlockSpec(enc_b.shape, lambda i: (0, 0, 0)),
                pl.BlockSpec(dec_w.shape, lambda i: (0, 0, 0)),
                pl.BlockSpec(dec_b.shape, lambda i: (0, 0, 0)),
            ],
            out_specs=pl.BlockSpec((latent_size, TB, P), lambda i: (0, i, 0)),
        ),
        compiler_params=pltpu.CompilerParams(
            dimension_semantics=("parallel",)),
    )(x_pad, enc_w, enc_b, dec_w, dec_b)
    # Drop the zero-padded lanes (plain XLA slice outside the kernel).
    return out_pad[:, :, :input_size]


# ---------------------------------------------------------------------------
# Model: parameter setup in plain JAX; forward pass is the fused Pallas kernel.
# Mirrors HierarchicalAutoencoderModel.forward (decode with output_last=False).
# ---------------------------------------------------------------------------
class HierarchicalAutoencoderPallas:
    def __init__(self, input_size, encoder_size, latent_size, decoder_size=(),
                 key=jax.random.PRNGKey(0)):
        self.input_size = input_size
        self.latent_size = latent_size
        self.encoder_size = [input_size] + list(encoder_size) + [latent_size]
        decoder_size = list(decoder_size)
        if len(decoder_size) == 0:
            decoder_size = list(encoder_size)[::-1]
        self.decoder_sizes_ = [[i] + decoder_size + [input_size]
                               for i in range(1, latent_size + 1)]

        max_feat = max([input_size, latent_size] + list(encoder_size)
                       + list(decoder_size))
        self.P = _round_up(max_feat, 128)   # lane-dense padded feature width

        def init_linear(key, fan_in, fan_out):
            # nn.Linear default init: U(-1/sqrt(fan_in), 1/sqrt(fan_in)).
            key, kw, kb = jax.random.split(key, 3)
            bound = 1.0 / (fan_in ** 0.5)
            w = jax.random.uniform(kw, (fan_in, fan_out), jnp.float32,
                                   -bound, bound)
            b = jax.random.uniform(kb, (fan_out,), jnp.float32, -bound, bound)
            return key, w, b

        # Raw (unpadded) parameters — kept for the pure-JAX reference.
        self.encoder = []
        for li in range(len(self.encoder_size) - 1):
            key, w, b = init_linear(key, self.encoder_size[li],
                                    self.encoder_size[li + 1])
            self.encoder.append((w, b))
        self.decoders_ = []
        for i in range(self.latent_size):
            sizes = self.decoder_sizes_[i]
            layers = []
            for li in range(len(sizes) - 1):
                key, w, b = init_linear(key, sizes[li], sizes[li + 1])
                layers.append((w, b))
            self.decoders_.append(layers)
        self.n_dec = len(self.decoder_sizes_[0]) - 1  # layers per decoder

        # Zero-padded, stacked parameters for the fused kernel.
        P = self.P

        def pad_wb(w, b):
            wp = jnp.zeros((P, P), jnp.float32)
            wp = wp.at[:w.shape[0], :w.shape[1]].set(w)
            bp = jnp.zeros((1, P), jnp.float32).at[0, :b.shape[0]].set(b)
            return wp, bp

        enc_w, enc_b = zip(*(pad_wb(w, b) for (w, b) in self.encoder))
        self.enc_w = jnp.stack(enc_w)        # (n_enc, P, P)
        self.enc_b = jnp.stack(enc_b)        # (n_enc, 1, P)
        dec_w, dec_b = [], []
        for layers in self.decoders_:
            for (w, b) in layers:
                wp, bp = pad_wb(w, b)
                dec_w.append(wp)
                dec_b.append(bp)
        self.dec_w = jnp.stack(dec_w)        # (latent_size * n_dec, P, P)
        self.dec_b = jnp.stack(dec_b)        # (latent_size * n_dec, 1, P)

        self._forward = jax.jit(functools.partial(
            hierarchical_ae_forward,
            input_size=self.input_size,
            latent_size=self.latent_size,
            n_enc=len(self.encoder),
            n_dec=self.n_dec))

    def __call__(self, x):
        # Returns [latent_size, B, input_size], matching the PyTorch forward.
        return self._forward(x, self.enc_w, self.enc_b, self.dec_w, self.dec_b)


# ---------------------------------------------------------------------------
# Pure-JAX reference of the PyTorch forward (for a sanity check).
# ---------------------------------------------------------------------------
def reference_forward(model, x):
    out = x
    for (w, b) in model.encoder:
        out = jnp.tanh(out @ w + b)
    latent = out                                   # [B, latent_size]
    outs = []
    for i in range(model.latent_size):
        g = latent[:, :i + 1]                      # torch.index_select(x, -1, :i+1)
        layers = model.decoders_[i]
        for (w, b) in layers[:-1]:
            g = jnp.tanh(g @ w + b)
        w, b = layers[-1]
        g = g @ w + b                              # last layer: no activation
        outs.append(g)
    return jnp.stack(outs, axis=0)                 # [latent_size, B, input_size]


if __name__ == "__main__":
    key = jax.random.PRNGKey(0)
    k_params, k_in = jax.random.split(key)

    batch = 8
    input_size = 32
    encoder_size = [24, 16]
    latent_size = 8

    model = HierarchicalAutoencoderPallas(input_size, encoder_size, latent_size,
                                          key=k_params)

    x = jax.random.normal(k_in, (batch, input_size), dtype=jnp.float32)

    out = model(x)
    out = jax.block_until_ready(out)

    ref = reference_forward(model, x)
    assert out.shape == (latent_size, batch, input_size), out.shape
    assert jnp.allclose(out, ref, atol=1e-4, rtol=1e-4), float(
        jnp.max(jnp.abs(out - ref)))

    print("KERNEL_OK")
</pallas_src>

<mosaic_0001>
module attributes {stable_mosaic.version = 11 : i64} {
  func.func @_hier_ae_kernel(%arg0: i32, %arg1: memref<8x128xf32, #tpu.memory_space<vmem>>, %arg2: memref<3x128x128xf32, #tpu.memory_space<vmem>>, %arg3: memref<3x1x128xf32, #tpu.memory_space<vmem>>, %arg4: memref<24x128x128xf32, #tpu.memory_space<vmem>>, %arg5: memref<24x1x128xf32, #tpu.memory_space<vmem>>, %arg6: memref<8x8x128xf32, #tpu.memory_space<vmem>>) attributes {dimension_semantics = [#tpu.dimension_semantics<parallel>], iteration_bounds = array<i64: 1>, scalar_prefetch = 0 : i64, scratch_operands = 0 : i64, tpu.core_type = #tpu.core_type<tc>, window_params = [{transform_indices = @transform_0, window_bounds = array<i64: 8, 128>}, {pipeline_mode = #tpu.pipeline_mode<synchronous>, transform_indices = @transform_1, window_bounds = array<i64: 3, 128, 128>}, {pipeline_mode = #tpu.pipeline_mode<synchronous>, transform_indices = @transform_2, window_bounds = array<i64: 3, 1, 128>}, {pipeline_mode = #tpu.pipeline_mode<synchronous>, transform_indices = @transform_3, window_bounds = array<i64: 24, 128, 128>}, {pipeline_mode = #tpu.pipeline_mode<synchronous>, transform_indices = @transform_4, window_bounds = array<i64: 24, 1, 128>}, {transform_indices = @transform_5, window_bounds = array<i64: 8, 8, 128>}]} {
    %c0 = arith.constant 0 : index
    %c0_0 = arith.constant 0 : index
    %0 = vector.load %arg1[%c0, %c0_0] : memref<8x128xf32, #tpu.memory_space<vmem>>, vector<8x128xf32>
    %c0_1 = arith.constant 0 : index
    %c0_2 = arith.constant 0 : index
    %c0_3 = arith.constant 0 : index
    %1 = vector.load %arg2[%c0_1, %c0_2, %c0_3] : memref<3x128x128xf32, #tpu.memory_space<vmem>>, vector<1x128x128xf32>
    %2 = vector.shape_cast %1 : vector<1x128x128xf32> to vector<128x128xf32>
    %cst = arith.constant dense<0.000000e+00> : vector<8x128xf32>
    %3 = tpu.matmul %0, %2, %cst {dimension_numbers = #tpu.dot_dimension_numbers<[1], [0], [0], [1], [0, 0, 1, 1], [], []>} : vector<8x128xf32>, vector<128x128xf32>, vector<8x128xf32> -> vector<8x128xf32>
    %c0_4 = arith.constant 0 : index
    %c0_5 = arith.constant 0 : index
    %c0_6 = arith.constant 0 : index
    %4 = vector.load %arg3[%c0_4, %c0_5, %c0_6] : memref<3x1x128xf32, #tpu.memory_space<vmem>>, vector<1x1x128xf32>
    %5 = vector.shape_cast %4 : vector<1x1x128xf32> to vector<1x128xf32>
    %6 = vector.broadcast %5 : vector<1x128xf32> to vector<8x128xf32>
    %7 = arith.addf %3, %6 : vector<8x128xf32>
    %8 = math.tanh %7 : vector<8x128xf32>
    %c1 = arith.constant 1 : index
    %c0_7 = arith.constant 0 : index
    %c0_8 = arith.constant 0 : index
    %9 = vector.load %arg2[%c1, %c0_7, %c0_8] : memref<3x128x128xf32, #tpu.memory_space<vmem>>, vector<1x128x128xf32>
    %10 = vector.shape_cast %9 : vector<1x128x128xf32> to vector<128x128xf32>
    %cst_9 = arith.constant dense<0.000000e+00> : vector<8x128xf32>
    %11 = tpu.matmul %8, %10, %cst_9 {dimension_numbers = #tpu.dot_dimension_numbers<[1], [0], [0], [1], [0, 0, 1, 1], [], []>} : vector<8x128xf32>, vector<128x128xf32>, vector<8x128xf32> -> vector<8x128xf32>
    %c1_10 = arith.constant 1 : index
    %c0_11 = arith.constant 0 : index
    %c0_12 = arith.constant 0 : index
    %12 = vector.load %arg3[%c1_10, %c0_11, %c0_12] : memref<3x1x128xf32, #tpu.memory_space<vmem>>, vector<1x1x128xf32>
    %13 = vector.shape_cast %12 : vector<1x1x128xf32> to vector<1x128xf32>
    %14 = vector.broadcast %13 : vector<1x128xf32> to vector<8x128xf32>
    %15 = arith.addf %11, %14 : vector<8x128xf32>
    %16 = math.tanh %15 : vector<8x128xf32>
    %c2 = arith.constant 2 : index
    %c0_13 = arith.constant 0 : index
    %c0_14 = arith.constant 0 : index
    %17 = vector.load %arg2[%c2, %c0_13, %c0_14] : memref<3x128x128xf32, #tpu.memory_space<vmem>>, vector<1x128x128xf32>
    %18 = vector.shape_cast %17 : vector<1x128x128xf32> to vector<128x128xf32>
    %cst_15 = arith.constant dense<0.000000e+00> : vector<8x128xf32>
    %19 = tpu.matmul %16, %18, %cst_15 {dimension_numbers = #tpu.dot_dimension_numbers<[1], [0], [0], [1], [0, 0, 1, 1], [], []>} : vector<8x128xf32>, vector<128x128xf32>, vector<8x128xf32> -> vector<8x128xf32>
    %c2_16 = arith.constant 2 : index
    %c0_17 = arith.constant 0 : index
    %c0_18 = arith.constant 0 : index
    %20 = vector.load %arg3[%c2_16, %c0_17, %c0_18] : memref<3x1x128xf32, #tpu.memory_space<vmem>>, vector<1x1x128xf32>
    %21 = vector.shape_cast %20 : vector<1x1x128xf32> to vector<1x128xf32>
    %22 = vector.broadcast %21 : vector<1x128xf32> to vector<8x128xf32>
    %23 = arith.addf %19, %22 : vector<8x128xf32>
    %24 = math.tanh %23 : vector<8x128xf32>
    %c0_19 = arith.constant 0 : index
    %c0_20 = arith.constant 0 : index
    %c0_21 = arith.constant 0 : index
    %25 = vector.load %arg4[%c0_19, %c0_20, %c0_21] : memref<24x128x128xf32, #tpu.memory_space<vmem>>, vector<1x128x128xf32>
    %26 = vector.shape_cast %25 : vector<1x128x128xf32> to vector<128x128xf32>
    %cst_22 = arith.constant dense<0.000000e+00> : vector<8x128xf32>
    %27 = tpu.matmul %24, %26, %cst_22 {dimension_numbers = #tpu.dot_dimension_numbers<[1], [0], [0], [1], [0, 0, 1, 1], [], []>} : vector<8x128xf32>, vector<128x128xf32>, vector<8x128xf32> -> vector<8x128xf32>
    %c0_23 = arith.constant 0 : index
    %c0_24 = arith.constant 0 : index
    %c0_25 = arith.constant 0 : index
    %28 = vector.load %arg5[%c0_23, %c0_24, %c0_25] : memref<24x1x128xf32, #tpu.memory_space<vmem>>, vector<1x1x128xf32>
    %29 = vector.shape_cast %28 : vector<1x1x128xf32> to vector<1x128xf32>
    %30 = vector.broadcast %29 : vector<1x128xf32> to vector<8x128xf32>
    %31 = arith.addf %27, %30 : vector<8x128xf32>
    %32 = math.tanh %31 : vector<8x128xf32>
    %c1_26 = arith.constant 1 : index
    %c0_27 = arith.constant 0 : index
    %c0_28 = arith.constant 0 : index
    %33 = vector.load %arg4[%c1_26, %c0_27, %c0_28] : memref<24x128x128xf32, #tpu.memory_space<vmem>>, vector<1x128x128xf32>
    %34 = vector.shape_cast %33 : vector<1x128x128xf32> to vector<128x128xf32>
    %cst_29 = arith.constant dense<0.000000e+00> : vector<8x128xf32>
    %35 = tpu.matmul %32, %34, %cst_29 {dimension_numbers = #tpu.dot_dimension_numbers<[1], [0], [0], [1], [0, 0, 1, 1], [], []>} : vector<8x128xf32>, vector<128x128xf32>, vector<8x128xf32> -> vector<8x128xf32>
    %c1_30 = arith.constant 1 : index
    %c0_31 = arith.constant 0 : index
    %c0_32 = arith.constant 0 : index
    %36 = vector.load %arg5[%c1_30, %c0_31, %c0_32] : memref<24x1x128xf32, #tpu.memory_space<vmem>>, vector<1x1x128xf32>
    %37 = vector.shape_cast %36 : vector<1x1x128xf32> to vector<1x128xf32>
    %38 = vector.broadcast %37 : vector<1x128xf32> to vector<8x128xf32>
    %39 = arith.addf %35, %38 : vector<8x128xf32>
    %40 = math.tanh %39 : vector<8x128xf32>
    %c2_33 = arith.constant 2 : index
    %c0_34 = arith.constant 0 : index
    %c0_35 = arith.constant 0 : index
    %41 = vector.load %arg4[%c2_33, %c0_34, %c0_35] : memref<24x128x128xf32, #tpu.memory_space<vmem>>, vector<1x128x128xf32>
    %42 = vector.shape_cast %41 : vector<1x128x128xf32> to vector<128x128xf32>
    %cst_36 = arith.constant dense<0.000000e+00> : vector<8x128xf32>
    %43 = tpu.matmul %40, %42, %cst_36 {dimension_numbers = #tpu.dot_dimension_numbers<[1], [0], [0], [1], [0, 0, 1, 1], [], []>} : vector<8x128xf32>, vector<128x128xf32>, vector<8x128xf32> -> vector<8x128xf32>
    %c2_37 = arith.constant 2 : index
    %c0_38 = arith.constant 0 : index
    %c0_39 = arith.constant 0 : index
    %44 = vector.load %arg5[%c2_37, %c0_38, %c0_39] : memref<24x1x128xf32, #tpu.memory_space<vmem>>, vector<1x1x128xf32>
    %45 = vector.shape_cast %44 : vector<1x1x128xf32> to vector<1x128xf32>
    %46 = vector.broadcast %45 : vector<1x128xf32> to vector<8x128xf32>
    %47 = arith.addf %43, %46 : vector<8x128xf32>
    %c0_40 = arith.constant 0 : index
    %c0_41 = arith.constant 0 : index
    %c0_42 = arith.constant 0 : index
    %48 = vector.load %arg6[%c0_40, %c0_41, %c0_42] : memref<8x8x128xf32, #tpu.memory_space<vmem>>, vector<1x8x128xf32>
    %49 = vector.shape_cast %48 : vector<1x8x128xf32> to vector<8x128xf32>
    %50 = vector.shape_cast %47 : vector<8x128xf32> to vector<1x8x128xf32>
    tpu.vector_store %arg6[%c0_40, %c0_41, %c0_42], %50 {strides = array<i32>} : memref<8x8x128xf32, #tpu.memory_space<vmem>>, vector<1x8x128xf32>,
    %c3 = arith.constant 3 : index
    %c0_43 = arith.constant 0 : index
    %c0_44 = arith.constant 0 : index
    %51 = vector.load %arg4[%c3, %c0_43, %c0_44] : memref<24x128x128xf32, #tpu.memory_space<vmem>>, vector<1x128x128xf32>
    %52 = vector.shape_cast %51 : vector<1x128x128xf32> to vector<128x128xf32>
    %cst_45 = arith.constant dense<0.000000e+00> : vector<8x128xf32>
    %53 = tpu.matmul %24, %52, %cst_45 {dimension_numbers = #tpu.dot_dimension_numbers<[1], [0], [0], [1], [0, 0, 1, 1], [], []>} : vector<8x128xf32>, vector<128x128xf32>, vector<8x128xf32> -> vector<8x128xf32>
    %c3_46 = arith.constant 3 : index
    %c0_47 = arith.constant 0 : index
    %c0_48 = arith.constant 0 : index
    %54 = vector.load %arg5[%c3_46, %c0_47, %c0_48] : memref<24x1x128xf32, #tpu.memory_space<vmem>>, vector<1x1x128xf32>
    %55 = vector.shape_cast %54 : vector<1x1x128xf32> to vector<1x128xf32>
    %56 = vector.broadcast %55 : vector<1x128xf32> to vector<8x128xf32>
    %57 = arith.addf %53, %56 : vector<8x128xf32>
    %58 = math.tanh %57 : vector<8x128xf32>
    %c4 = arith.constant 4 : index
    %c0_49 = arith.constant 0 : index
    %c0_50 = arith.constant 0 : index
    %59 = vector.load %arg4[%c4, %c0_49, %c0_50] : memref<24x128x128xf32, #tpu.memory_space<vmem>>, vector<1x128x128xf32>
    %60 = vector.shape_cast %59 : vector<1x128x128xf32> to vector<128x128xf32>
    %cst_51 = arith.constant dense<0.000000e+00> : vector<8x128xf32>
    %61 = tpu.matmul %58, %60, %cst_51 {dimension_numbers = #tpu.dot_dimension_numbers<[1], [0], [0], [1], [0, 0, 1, 1], [], []>} : vector<8x128xf32>, vector<128x128xf32>, vector<8x128xf32> -> vector<8x128xf32>
    %c4_52 = arith.constant 4 : index
    %c0_53 = arith.constant 0 : index
    %c0_54 = arith.constant 0 : index
    %62 = vector.load %arg5[%c4_52, %c0_53, %c0_54] : memref<24x1x128xf32, #tpu.memory_space<vmem>>, vector<1x1x128xf32>
    %63 = vector.shape_cast %62 : vector<1x1x128xf32> to vector<1x128xf32>
    %64 = vector.broadcast %63 : vector<1x128xf32> to vector<8x128xf32>
    %65 = arith.addf %61, %64 : vector<8x128xf32>
    %66 = math.tanh %65 : vector<8x128xf32>
    %c5 = arith.constant 5 : index
    %c0_55 = arith.constant 0 : index
    %c0_56 = arith.constant 0 : index
    %67 = vector.load %arg4[%c5, %c0_55, %c0_56] : memref<24x128x128xf32, #tpu.memory_space<vmem>>, vector<1x128x128xf32>
    %68 = vector.shape_cast %67 : vector<1x128x128xf32> to vector<128x128xf32>
    %cst_57 = arith.constant dense<0.000000e+00> : vector<8x128xf32>
    %69 = tpu.matmul %66, %68, %cst_57 {dimension_numbers = #tpu.dot_dimension_numbers<[1], [0], [0], [1], [0, 0, 1, 1], [], []>} : vector<8x128xf32>, vector<128x128xf32>, vector<8x128xf32> -> vector<8x128xf32>
    %c5_58 = arith.constant 5 : index
    %c0_59 = arith.constant 0 : index
    %c0_60 = arith.constant 0 : index
    %70 = vector.load %arg5[%c5_58, %c0_59, %c0_60] : memref<24x1x128xf32, #tpu.memory_space<vmem>>, vector<1x1x128xf32>
    %71 = vector.shape_cast %70 : vector<1x1x128xf32> to vector<1x128xf32>
    %72 = vector.broadcast %71 : vector<1x128xf32> to vector<8x128xf32>
    %73 = arith.addf %69, %72 : vector<8x128xf32>
    %c1_61 = arith.constant 1 : index
    %c0_62 = arith.constant 0 : index
    %c0_63 = arith.constant 0 : index
    %74 = vector.load %arg6[%c1_61, %c0_62, %c0_63] : memref<8x8x128xf32, #tpu.memory_space<vmem>>, vector<1x8x128xf32>
    %75 = vector.shape_cast %74 : vector<1x8x128xf32> to vector<8x128xf32>
    %76 = vector.shape_cast %73 : vector<8x128xf32> to vector<1x8x128xf32>
    tpu.vector_store %arg6[%c1_61, %c0_62, %c0_63], %76 {strides = array<i32>} : memref<8x8x128xf32, #tpu.memory_space<vmem>>, vector<1x8x128xf32>,
    %c6 = arith.constant 6 : index
    %c0_64 = arith.constant 0 : index
    %c0_65 = arith.constant 0 : index
    %77 = vector.load %arg4[%c6, %c0_64, %c0_65] : memref<24x128x128xf32, #tpu.memory_space<vmem>>, vector<1x128x128xf32>
    %78 = vector.shape_cast %77 : vector<1x128x128xf32> to vector<128x128xf32>
    %cst_66 = arith.constant dense<0.000000e+00> : vector<8x128xf32>
    %79 = tpu.matmul %24, %78, %cst_66 {dimension_numbers = #tpu.dot_dimension_numbers<[1], [0], [0], [1], [0, 0, 1, 1], [], []>} : vector<8x128xf32>, vector<128x128xf32>, vector<8x128xf32> -> vector<8x128xf32>
    %c6_67 = arith.constant 6 : index
    %c0_68 = arith.constant 0 : index
    %c0_69 = arith.constant 0 : index
    %80 = vector.load %arg5[%c6_67, %c0_68, %c0_69] : memref<24x1x128xf32, #tpu.memory_space<vmem>>, vector<1x1x128xf32>
    %81 = vector.shape_cast %80 : vector<1x1x128xf32> to vector<1x128xf32>
    %82 = vector.broadcast %81 : vector<1x128xf32> to vector<8x128xf32>
    %83 = arith.addf %79, %82 : vector<8x128xf32>
    %84 = math.tanh %83 : vector<8x128xf32>
    %c7 = arith.constant 7 : index
    %c0_70 = arith.constant 0 : index
    %c0_71 = arith.constant 0 : index
    %85 = vector.load %arg4[%c7, %c0_70, %c0_71] : memref<24x128x128xf32, #tpu.memory_space<vmem>>, vector<1x128x128xf32>
    %86 = vector.shape_cast %85 : vector<1x128x128xf32> to vector<128x128xf32>
    %cst_72 = arith.constant dense<0.000000e+00> : vector<8x128xf32>
    %87 = tpu.matmul %84, %86, %cst_72 {dimension_numbers = #tpu.dot_dimension_numbers<[1], [0], [0], [1], [0, 0, 1, 1], [], []>} : vector<8x128xf32>, vector<128x128xf32>, vector<8x128xf32> -> vector<8x128xf32>
    %c7_73 = arith.constant 7 : index
    %c0_74 = arith.constant 0 : index
    %c0_75 = arith.constant 0 : index
    %88 = vector.load %arg5[%c7_73, %c0_74, %c0_75] : memref<24x1x128xf32, #tpu.memory_space<vmem>>, vector<1x1x128xf32>
    %89 = vector.shape_cast %88 : vector<1x1x128xf32> to vector<1x128xf32>
    %90 = vector.broadcast %89 : vector<1x128xf32> to vector<8x128xf32>
    %91 = arith.addf %87, %90 : vector<8x128xf32>
    %92 = math.tanh %91 : vector<8x128xf32>
    %c8 = arith.constant 8 : index
    %c0_76 = arith.constant 0 : index
    %c0_77 = arith.constant 0 : index
    %93 = vector.load %arg4[%c8, %c0_76, %c0_77] : memref<24x128x128xf32, #tpu.memory_space<vmem>>, vector<1x128x128xf32>
    %94 = vector.shape_cast %93 : vector<1x128x128xf32> to vector<128x128xf32>
    %cst_78 = arith.constant dense<0.000000e+00> : vector<8x128xf32>
    %95 = tpu.matmul %92, %94, %cst_78 {dimension_numbers = #tpu.dot_dimension_numbers<[1], [0], [0], [1], [0, 0, 1, 1], [], []>} : vector<8x128xf32>, vector<128x128xf32>, vector<8x128xf32> -> vector<8x128xf32>
    %c8_79 = arith.constant 8 : index
    %c0_80 = arith.constant 0 : index
    %c0_81 = arith.constant 0 : index
    %96 = vector.load %arg5[%c8_79, %c0_80, %c0_81] : memref<24x1x128xf32, #tpu.memory_space<vmem>>, vector<1x1x128xf32>
    %97 = vector.shape_cast %96 : vector<1x1x128xf32> to vector<1x128xf32>
    %98 = vector.broadcast %97 : vector<1x128xf32> to vector<8x128xf32>
    %99 = arith.addf %95, %98 : vector<8x128xf32>
    %c2_82 = arith.constant 2 : index
    %c0_83 = arith.constant 0 : index
    %c0_84 = arith.constant 0 : index
    %100 = vector.load %arg6[%c2_82, %c0_83, %c0_84] : memref<8x8x128xf32, #tpu.memory_space<vmem>>, vector<1x8x128xf32>
    %101 = vector.shape_cast %100 : vector<1x8x128xf32> to vector<8x128xf32>
    %102 = vector.shape_cast %99 : vector<8x128xf32> to vector<1x8x128xf32>
    tpu.vector_store %arg6[%c2_82, %c0_83, %c0_84], %102 {strides = array<i32>} : memref<8x8x128xf32, #tpu.memory_space<vmem>>, vector<1x8x128xf32>,
    %c9 = arith.constant 9 : index
    %c0_85 = arith.constant 0 : index
    %c0_86 = arith.constant 0 : index
    %103 = vector.load %arg4[%c9, %c0_85, %c0_86] : memref<24x128x128xf32, #tpu.memory_space<vmem>>, vector<1x128x128xf32>
    %104 = vector.shape_cast %103 : vector<1x128x128xf32> to vector<128x128xf32>
    %cst_87 = arith.constant dense<0.000000e+00> : vector<8x128xf32>
    %105 = tpu.matmul %24, %104, %cst_87 {dimension_numbers = #tpu.dot_dimension_numbers<[1], [0], [0], [1], [0, 0, 1, 1], [], []>} : vector<8x128xf32>, vector<128x128xf32>, vector<8x128xf32> -> vector<8x128xf32>
    %c9_88 = arith.constant 9 : index
    %c0_89 = arith.constant 0 : index
    %c0_90 = arith.constant 0 : index
    %106 = vector.load %arg5[%c9_88, %c0_89, %c0_90] : memref<24x1x128xf32, #tpu.memory_space<vmem>>, vector<1x1x128xf32>
    %107 = vector.shape_cast %106 : vector<1x1x128xf32> to vector<1x128xf32>
    %108 = vector.broadcast %107 : vector<1x128xf32> to vector<8x128xf32>
    %109 = arith.addf %105, %108 : vector<8x128xf32>
    %110 = math.tanh %109 : vector<8x128xf32>
    %c10 = arith.constant 10 : index
    %c0_91 = arith.constant 0 : index
    %c0_92 = arith.constant 0 : index
    %111 = vector.load %arg4[%c10, %c0_91, %c0_92] : memref<24x128x128xf32, #tpu.memory_space<vmem>>, vector<1x128x128xf32>
    %112 = vector.shape_cast %111 : vector<1x128x128xf32> to vector<128x128xf32>
    %cst_93 = arith.constant dense<0.000000e+00> : vector<8x128xf32>
    %113 = tpu.matmul %110, %112, %cst_93 {dimension_numbers = #tpu.dot_dimension_numbers<[1], [0], [0], [1], [0, 0, 1, 1], [], []>} : vector<8x128xf32>, vector<128x128xf32>, vector<8x128xf32> -> vector<8x128xf32>
    %c10_94 = arith.constant 10 : index
    %c0_95 = arith.constant 0 : index
    %c0_96 = arith.constant 0 : index
    %114 = vector.load %arg5[%c10_94, %c0_95, %c0_96] : memref<24x1x128xf32, #tpu.memory_space<vmem>>, vector<1x1x128xf32>
    %115 = vector.shape_cast %114 : vector<1x1x128xf32> to vector<1x128xf32>
    %116 = vector.broadcast %115 : vector<1x128xf32> to vector<8x128xf32>
    %117 = arith.addf %113, %116 : vector<8x128xf32>
    %118 = math.tanh %117 : vector<8x128xf32>
    %c11 = arith.constant 11 : index
    %c0_97 = arith.constant 0 : index
    %c0_98 = arith.constant 0 : index
    %119 = vector.load %arg4[%c11, %c0_97, %c0_98] : memref<24x128x128xf32, #tpu.memory_space<vmem>>, vector<1x128x128xf32>
    %120 = vector.shape_cast %119 : vector<1x128x128xf32> to vector<128x128xf32>
    %cst_99 = arith.constant dense<0.000000e+00> : vector<8x128xf32>
    %121 = tpu.matmul %118, %120, %cst_99 {dimension_numbers = #tpu.dot_dimension_numbers<[1], [0], [0], [1], [0, 0, 1, 1], [], []>} : vector<8x128xf32>, vector<128x128xf32>, vector<8x128xf32> -> vector<8x128xf32>
    %c11_100 = arith.constant 11 : index
    %c0_101 = arith.constant 0 : index
    %c0_102 = arith.constant 0 : index
    %122 = vector.load %arg5[%c11_100, %c0_101, %c0_102] : memref<24x1x128xf32, #tpu.memory_space<vmem>>, vector<1x1x128xf32>
    %123 = vector.shape_cast %122 : vector<1x1x128xf32> to vector<1x128xf32>
    %124 = vector.broadcast %123 : vector<1x128xf32> to vector<8x128xf32>
    %125 = arith.addf %121, %124 : vector<8x128xf32>
    %c3_103 = arith.constant 3 : index
    %c0_104 = arith.constant 0 : index
    %c0_105 = arith.constant 0 : index
    %126 = vector.load %arg6[%c3_103, %c0_104, %c0_105] : memref<8x8x128xf32, #tpu.memory_space<vmem>>, vector<1x8x128xf32>
    %127 = vector.shape_cast %126 : vector<1x8x128xf32> to vector<8x128xf32>
    %128 = vector.shape_cast %125 : vector<8x128xf32> to vector<1x8x128xf32>
    tpu.vector_store %arg6[%c3_103, %c0_104, %c0_105], %128 {strides = array<i32>} : memref<8x8x128xf32, #tpu.memory_space<vmem>>, vector<1x8x128xf32>,
    %c12 = arith.constant 12 : index
    %c0_106 = arith.constant 0 : index
    %c0_107 = arith.constant 0 : index
    %129 = vector.load %arg4[%c12, %c0_106, %c0_107] : memref<24x128x128xf32, #tpu.memory_space<vmem>>, vector<1x128x128xf32>
    %130 = vector.shape_cast %129 : vector<1x128x128xf32> to vector<128x128xf32>
    %cst_108 = arith.constant dense<0.000000e+00> : vector<8x128xf32>
    %131 = tpu.matmul %24, %130, %cst_108 {dimension_numbers = #tpu.dot_dimension_numbers<[1], [0], [0], [1], [0, 0, 1, 1], [], []>} : vector<8x128xf32>, vector<128x128xf32>, vector<8x128xf32> -> vector<8x128xf32>
    %c12_109 = arith.constant 12 : index
    %c0_110 = arith.constant 0 : index
    %c0_111 = arith.constant 0 : index
    %132 = vector.load %arg5[%c12_109, %c0_110, %c0_111] : memref<24x1x128xf32, #tpu.memory_space<vmem>>, vector<1x1x128xf32>
    %133 = vector.shape_cast %132 : vector<1x1x128xf32> to vector<1x128xf32>
    %134 = vector.broadcast %133 : vector<1x128xf32> to vector<8x128xf32>
    %135 = arith.addf %131, %134 : vector<8x128xf32>
    %136 = math.tanh %135 : vector<8x128xf32>
    %c13 = arith.constant 13 : index
    %c0_112 = arith.constant 0 : index
    %c0_113 = arith.constant 0 : index
    %137 = vector.load %arg4[%c13, %c0_112, %c0_113] : memref<24x128x128xf32, #tpu.memory_space<vmem>>, vector<1x128x128xf32>
    %138 = vector.shape_cast %137 : vector<1x128x128xf32> to vector<128x128xf32>
    %cst_114 = arith.constant dense<0.000000e+00> : vector<8x128xf32>
    %139 = tpu.matmul %136, %138, %cst_114 {dimension_numbers = #tpu.dot_dimension_numbers<[1], [0], [0], [1], [0, 0, 1, 1], [], []>} : vector<8x128xf32>, vector<128x128xf32>, vector<8x128xf32> -> vector<8x128xf32>
    %c13_115 = arith.constant 13 : index
    %c0_116 = arith.constant 0 : index
    %c0_117 = arith.constant 0 : index
    %140 = vector.load %arg5[%c13_115, %c0_116, %c0_117] : memref<24x1x128xf32, #tpu.memory_space<vmem>>, vector<1x1x128xf32>
    %141 = vector.shape_cast %140 : vector<1x1x128xf32> to vector<1x128xf32>
    %142 = vector.broadcast %141 : vector<1x128xf32> to vector<8x128xf32>
    %143 = arith.addf %139, %142 : vector<8x128xf32>
    %144 = math.tanh %143 : vector<8x128xf32>
    %c14 = arith.constant 14 : index
    %c0_118 = arith.constant 0 : index
    %c0_119 = arith.constant 0 : index
    %145 = vector.load %arg4[%c14, %c0_118, %c0_119] : memref<24x128x128xf32, #tpu.memory_space<vmem>>, vector<1x128x128xf32>
    %146 = vector.shape_cast %145 : vector<1x128x128xf32> to vector<128x128xf32>
    %cst_120 = arith.constant dense<0.000000e+00> : vector<8x128xf32>
    %147 = tpu.matmul %144, %146, %cst_120 {dimension_numbers = #tpu.dot_dimension_numbers<[1], [0], [0], [1], [0, 0, 1, 1], [], []>} : vector<8x128xf32>, vector<128x128xf32>, vector<8x128xf32> -> vector<8x128xf32>
    %c14_121 = arith.constant 14 : index
    %c0_122 = arith.constant 0 : index
    %c0_123 = arith.constant 0 : index
    %148 = vector.load %arg5[%c14_121, %c0_122, %c0_123] : memref<24x1x128xf32, #tpu.memory_space<vmem>>, vector<1x1x128xf32>
    %149 = vector.shape_cast %148 : vector<1x1x128xf32> to vector<1x128xf32>
    %150 = vector.broadcast %149 : vector<1x128xf32> to vector<8x128xf32>
    %151 = arith.addf %147, %150 : vector<8x128xf32>
    %c4_124 = arith.constant 4 : index
    %c0_125 = arith.constant 0 : index
    %c0_126 = arith.constant 0 : index
    %152 = vector.load %arg6[%c4_124, %c0_125, %c0_126] : memref<8x8x128xf32, #tpu.memory_space<vmem>>, vector<1x8x128xf32>
    %153 = vector.shape_cast %152 : vector<1x8x128xf32> to vector<8x128xf32>
    %154 = vector.shape_cast %151 : vector<8x128xf32> to vector<1x8x128xf32>
    tpu.vector_store %arg6[%c4_124, %c0_125, %c0_126], %154 {strides = array<i32>} : memref<8x8x128xf32, #tpu.memory_space<vmem>>, vector<1x8x128xf32>,
    %c15 = arith.constant 15 : index
    %c0_127 = arith.constant 0 : index
    %c0_128 = arith.constant 0 : index
    %155 = vector.load %arg4[%c15, %c0_127, %c0_128] : memref<24x128x128xf32, #tpu.memory_space<vmem>>, vector<1x128x128xf32>
    %156 = vector.shape_cast %155 : vector<1x128x128xf32> to vector<128x128xf32>
    %cst_129 = arith.constant dense<0.000000e+00> : vector<8x128xf32>
    %157 = tpu.matmul %24, %156, %cst_129 {dimension_numbers = #tpu.dot_dimension_numbers<[1], [0], [0], [1], [0, 0, 1, 1], [], []>} : vector<8x128xf32>, vector<128x128xf32>, vector<8x128xf32> -> vector<8x128xf32>
    %c15_130 = arith.constant 15 : index
    %c0_131 = arith.constant 0 : index
    %c0_132 = arith.constant 0 : index
    %158 = vector.load %arg5[%c15_130, %c0_131, %c0_132] : memref<24x1x128xf32, #tpu.memory_space<vmem>>, vector<1x1x128xf32>
    %159 = vector.shape_cast %158 : vector<1x1x128xf32> to vector<1x128xf32>
    %160 = vector.broadcast %159 : vector<1x128xf32> to vector<8x128xf32>
    %161 = arith.addf %157, %160 : vector<8x128xf32>
    %162 = math.tanh %161 : vector<8x128xf32>
    %c16 = arith.constant 16 : index
    %c0_133 = arith.constant 0 : index
    %c0_134 = arith.constant 0 : index
    %163 = vector.load %arg4[%c16, %c0_133, %c0_134] : memref<24x128x128xf32, #tpu.memory_space<vmem>>, vector<1x128x128xf32>
    %164 = vector.shape_cast %163 : vector<1x128x128xf32> to vector<128x128xf32>
    %cst_135 = arith.constant dense<0.000000e+00> : vector<8x128xf32>
    %165 = tpu.matmul %162, %164, %cst_135 {dimension_numbers = #tpu.dot_dimension_numbers<[1], [0], [0], [1], [0, 0, 1, 1], [], []>} : vector<8x128xf32>, vector<128x128xf32>, vector<8x128xf32> -> vector<8x128xf32>
    %c16_136 = arith.constant 16 : index
    %c0_137 = arith.constant 0 : index
    %c0_138 = arith.constant 0 : index
    %166 = vector.load %arg5[%c16_136, %c0_137, %c0_138] : memref<24x1x128xf32, #tpu.memory_space<vmem>>, vector<1x1x128xf32>
    %167 = vector.shape_cast %166 : vector<1x1x128xf32> to vector<1x128xf32>
    %168 = vector.broadcast %167 : vector<1x128xf32> to vector<8x128xf32>
    %169 = arith.addf %165, %168 : vector<8x128xf32>
    %170 = math.tanh %169 : vector<8x128xf32>
    %c17 = arith.constant 17 : index
    %c0_139 = arith.constant 0 : index
    %c0_140 = arith.constant 0 : index
    %171 = vector.load %arg4[%c17, %c0_139, %c0_140] : memref<24x128x128xf32, #tpu.memory_space<vmem>>, vector<1x128x128xf32>
    %172 = vector.shape_cast %171 : vector<1x128x128xf32> to vector<128x128xf32>
    %cst_141 = arith.constant dense<0.000000e+00> : vector<8x128xf32>
    %173 = tpu.matmul %170, %172, %cst_141 {dimension_numbers = #tpu.dot_dimension_numbers<[1], [0], [0], [1], [0, 0, 1, 1], [], []>} : vector<8x128xf32>, vector<128x128xf32>, vector<8x128xf32> -> vector<8x128xf32>
    %c17_142 = arith.constant 17 : index
    %c0_143 = arith.constant 0 : index
    %c0_144 = arith.constant 0 : index
    %174 = vector.load %arg5[%c17_142, %c0_143, %c0_144] : memref<24x1x128xf32, #tpu.memory_space<vmem>>, vector<1x1x128xf32>
    %175 = vector.shape_cast %174 : vector<1x1x128xf32> to vector<1x128xf32>
    %176 = vector.broadcast %175 : vector<1x128xf32> to vector<8x128xf32>
    %177 = arith.addf %173, %176 : vector<8x128xf32>
    %c5_145 = arith.constant 5 : index
    %c0_146 = arith.constant 0 : index
    %c0_147 = arith.constant 0 : index
    %178 = vector.load %arg6[%c5_145, %c0_146, %c0_147] : memref<8x8x128xf32, #tpu.memory_space<vmem>>, vector<1x8x128xf32>
    %179 = vector.shape_cast %178 : vector<1x8x128xf32> to vector<8x128xf32>
    %180 = vector.shape_cast %177 : vector<8x128xf32> to vector<1x8x128xf32>
    tpu.vector_store %arg6[%c5_145, %c0_146, %c0_147], %180 {strides = array<i32>} : memref<8x8x128xf32, #tpu.memory_space<vmem>>, vector<1x8x128xf32>,
    %c18 = arith.constant 18 : index
    %c0_148 = arith.constant 0 : index
    %c0_149 = arith.constant 0 : index
    %181 = vector.load %arg4[%c18, %c0_148, %c0_149] : memref<24x128x128xf32, #tpu.memory_space<vmem>>, vector<1x128x128xf32>
    %182 = vector.shape_cast %181 : vector<1x128x128xf32> to vector<128x128xf32>
    %cst_150 = arith.constant dense<0.000000e+00> : vector<8x128xf32>
    %183 = tpu.matmul %24, %182, %cst_150 {dimension_numbers = #tpu.dot_dimension_numbers<[1], [0], [0], [1], [0, 0, 1, 1], [], []>} : vector<8x128xf32>, vector<128x128xf32>, vector<8x128xf32> -> vector<8x128xf32>
    %c18_151 = arith.constant 18 : index
    %c0_152 = arith.constant 0 : index
    %c0_153 = arith.constant 0 : index
    %184 = vector.load %arg5[%c18_151, %c0_152, %c0_153] : memref<24x1x128xf32, #tpu.memory_space<vmem>>, vector<1x1x128xf32>
    %185 = vector.shape_cast %184 : vector<1x1x128xf32> to vector<1x128xf32>
    %186 = vector.broadcast %185 : vector<1x128xf32> to vector<8x128xf32>
    %187 = arith.addf %183, %186 : vector<8x128xf32>
    %188 = math.tanh %187 : vector<8x128xf32>
    %c19 = arith.constant 19 : index
    %c0_154 = arith.constant 0 : index
    %c0_155 = arith.constant 0 : index
    %189 = vector.load %arg4[%c19, %c0_154, %c0_155] : memref<24x128x128xf32, #tpu.memory_space<vmem>>, vector<1x128x128xf32>
    %190 = vector.shape_cast %189 : vector<1x128x128xf32> to vector<128x128xf32>
    %cst_156 = arith.constant dense<0.000000e+00> : vector<8x128xf32>
    %191 = tpu.matmul %188, %190, %cst_156 {dimension_numbers = #tpu.dot_dimension_numbers<[1], [0], [0], [1], [0, 0, 1, 1], [], []>} : vector<8x128xf32>, vector<128x128xf32>, vector<8x128xf32> -> vector<8x128xf32>
    %c19_157 = arith.constant 19 : index
    %c0_158 = arith.constant 0 : index
    %c0_159 = arith.constant 0 : index
    %192 = vector.load %arg5[%c19_157, %c0_158, %c0_159] : memref<24x1x128xf32, #tpu.memory_space<vmem>>, vector<1x1x128xf32>
    %193 = vector.shape_cast %192 : vector<1x1x128xf32> to vector<1x128xf32>
    %194 = vector.broadcast %193 : vector<1x128xf32> to vector<8x128xf32>
    %195 = arith.addf %191, %194 : vector<8x128xf32>
    %196 = math.tanh %195 : vector<8x128xf32>
    %c20 = arith.constant 20 : index
    %c0_160 = arith.constant 0 : index
    %c0_161 = arith.constant 0 : index
    %197 = vector.load %arg4[%c20, %c0_160, %c0_161] : memref<24x128x128xf32, #tpu.memory_space<vmem>>, vector<1x128x128xf32>
    %198 = vector.shape_cast %197 : vector<1x128x128xf32> to vector<128x128xf32>
    %cst_162 = arith.constant dense<0.000000e+00> : vector<8x128xf32>
    %199 = tpu.matmul %196, %198, %cst_162 {dimension_numbers = #tpu.dot_dimension_numbers<[1], [0], [0], [1], [0, 0, 1, 1], [], []>} : vector<8x128xf32>, vector<128x128xf32>, vector<8x128xf32> -> vector<8x128xf32>
    %c20_163 = arith.constant 20 : index
    %c0_164 = arith.constant 0 : index
    %c0_165 = arith.constant 0 : index
    %200 = vector.load %arg5[%c20_163, %c0_164, %c0_165] : memref<24x1x128xf32, #tpu.memory_space<vmem>>, vector<1x1x128xf32>
    %201 = vector.shape_cast %200 : vector<1x1x128xf32> to vector<1x128xf32>
    %202 = vector.broadcast %201 : vector<1x128xf32> to vector<8x128xf32>
    %203 = arith.addf %199, %202 : vector<8x128xf32>
    %c6_166 = arith.constant 6 : index
    %c0_167 = arith.constant 0 : index
    %c0_168 = arith.constant 0 : index
    %204 = vector.load %arg6[%c6_166, %c0_167, %c0_168] : memref<8x8x128xf32, #tpu.memory_space<vmem>>, vector<1x8x128xf32>
    %205 = vector.shape_cast %204 : vector<1x8x128xf32> to vector<8x128xf32>
    %206 = vector.shape_cast %203 : vector<8x128xf32> to vector<1x8x128xf32>
    tpu.vector_store %arg6[%c6_166, %c0_167, %c0_168], %206 {strides = array<i32>} : memref<8x8x128xf32, #tpu.memory_space<vmem>>, vector<1x8x128xf32>,
    %c21 = arith.constant 21 : index
    %c0_169 = arith.constant 0 : index
    %c0_170 = arith.constant 0 : index
    %207 = vector.load %arg4[%c21, %c0_169, %c0_170] : memref<24x128x128xf32, #tpu.memory_space<vmem>>, vector<1x128x128xf32>
    %208 = vector.shape_cast %207 : vector<1x128x128xf32> to vector<128x128xf32>
    %cst_171 = arith.constant dense<0.000000e+00> : vector<8x128xf32>
    %209 = tpu.matmul %24, %208, %cst_171 {dimension_numbers = #tpu.dot_dimension_numbers<[1], [0], [0], [1], [0, 0, 1, 1], [], []>} : vector<8x128xf32>, vector<128x128xf32>, vector<8x128xf32> -> vector<8x128xf32>
    %c21_172 = arith.constant 21 : index
    %c0_173 = arith.constant 0 : index
    %c0_174 = arith.constant 0 : index
    %210 = vector.load %arg5[%c21_172, %c0_173, %c0_174] : memref<24x1x128xf32, #tpu.memory_space<vmem>>, vector<1x1x128xf32>
    %211 = vector.shape_cast %210 : vector<1x1x128xf32> to vector<1x128xf32>
    %212 = vector.broadcast %211 : vector<1x128xf32> to vector<8x128xf32>
    %213 = arith.addf %209, %212 : vector<8x128xf32>
    %214 = math.tanh %213 : vector<8x128xf32>
    %c22 = arith.constant 22 : index
    %c0_175 = arith.constant 0 : index
    %c0_176 = arith.constant 0 : index
    %215 = vector.load %arg4[%c22, %c0_175, %c0_176] : memref<24x128x128xf32, #tpu.memory_space<vmem>>, vector<1x128x128xf32>
    %216 = vector.shape_cast %215 : vector<1x128x128xf32> to vector<128x128xf32>
    %cst_177 = arith.constant dense<0.000000e+00> : vector<8x128xf32>
    %217 = tpu.matmul %214, %216, %cst_177 {dimension_numbers = #tpu.dot_dimension_numbers<[1], [0], [0], [1], [0, 0, 1, 1], [], []>} : vector<8x128xf32>, vector<128x128xf32>, vector<8x128xf32> -> vector<8x128xf32>
    %c22_178 = arith.constant 22 : index
    %c0_179 = arith.constant 0 : index
    %c0_180 = arith.constant 0 : index
    %218 = vector.load %arg5[%c22_178, %c0_179, %c0_180] : memref<24x1x128xf32, #tpu.memory_space<vmem>>, vector<1x1x128xf32>
    %219 = vector.shape_cast %218 : vector<1x1x128xf32> to vector<1x128xf32>
    %220 = vector.broadcast %219 : vector<1x128xf32> to vector<8x128xf32>
    %221 = arith.addf %217, %220 : vector<8x128xf32>
    %222 = math.tanh %221 : vector<8x128xf32>
    %c23 = arith.constant 23 : index
    %c0_181 = arith.constant 0 : index
    %c0_182 = arith.constant 0 : index
    %223 = vector.load %arg4[%c23, %c0_181, %c0_182] : memref<24x128x128xf32, #tpu.memory_space<vmem>>, vector<1x128x128xf32>
    %224 = vector.shape_cast %223 : vector<1x128x128xf32> to vector<128x128xf32>
    %cst_183 = arith.constant dense<0.000000e+00> : vector<8x128xf32>
    %225 = tpu.matmul %222, %224, %cst_183 {dimension_numbers = #tpu.dot_dimension_numbers<[1], [0], [0], [1], [0, 0, 1, 1], [], []>} : vector<8x128xf32>, vector<128x128xf32>, vector<8x128xf32> -> vector<8x128xf32>
    %c23_184 = arith.constant 23 : index
    %c0_185 = arith.constant 0 : index
    %c0_186 = arith.constant 0 : index
    %226 = vector.load %arg5[%c23_184, %c0_185, %c0_186] : memref<24x1x128xf32, #tpu.memory_space<vmem>>, vector<1x1x128xf32>
    %227 = vector.shape_cast %226 : vector<1x1x128xf32> to vector<1x128xf32>
    %228 = vector.broadcast %227 : vector<1x128xf32> to vector<8x128xf32>
    %229 = arith.addf %225, %228 : vector<8x128xf32>
    %c7_187 = arith.constant 7 : index
    %c0_188 = arith.constant 0 : index
    %c0_189 = arith.constant 0 : index
    %230 = vector.load %arg6[%c7_187, %c0_188, %c0_189] : memref<8x8x128xf32, #tpu.memory_space<vmem>>, vector<1x8x128xf32>
    %231 = vector.shape_cast %230 : vector<1x8x128xf32> to vector<8x128xf32>
    %232 = vector.shape_cast %229 : vector<8x128xf32> to vector<1x8x128xf32>
    tpu.vector_store %arg6[%c7_187, %c0_188, %c0_189], %232 {strides = array<i32>} : memref<8x8x128xf32, #tpu.memory_space<vmem>>, vector<1x8x128xf32>,
    return
  }
  func.func @transform_0(%arg0: i32) -> (i32, i32) {
    %c0_i32 = arith.constant 0 : i32
    %c0_i32_0 = arith.constant 0 : i32
    return %arg0, %c0_i32 : i32, i32
  }
  func.func @transform_1(%arg0: i32) -> (i32, i32, i32) {
    %c0_i32 = arith.constant 0 : i32
    %c0_i32_0 = arith.constant 0 : i32
    %c0_i32_1 = arith.constant 0 : i32
    %c0_i32_2 = arith.constant 0 : i32
    return %c0_i32, %c0_i32_0, %c0_i32_1 : i32, i32, i32
  }
  func.func @transform_2(%arg0: i32) -> (i32, i32, i32) {
    %c0_i32 = arith.constant 0 : i32
    %c0_i32_0 = arith.constant 0 : i32
    %c0_i32_1 = arith.constant 0 : i32
    %c0_i32_2 = arith.constant 0 : i32
    return %c0_i32, %c0_i32_0, %c0_i32_1 : i32, i32, i32
  }
  func.func @transform_3(%arg0: i32) -> (i32, i32, i32) {
    %c0_i32 = arith.constant 0 : i32
    %c0_i32_0 = arith.constant 0 : i32
    %c0_i32_1 = arith.constant 0 : i32
    %c0_i32_2 = arith.constant 0 : i32
    return %c0_i32, %c0_i32_0, %c0_i32_1 : i32, i32, i32
  }
  func.func @transform_4(%arg0: i32) -> (i32, i32, i32) {
    %c0_i32 = arith.constant 0 : i32
    %c0_i32_0 = arith.constant 0 : i32
    %c0_i32_1 = arith.constant 0 : i32
    %c0_i32_2 = arith.constant 0 : i32
    return %c0_i32, %c0_i32_0, %c0_i32_1 : i32, i32, i32
  }
  func.func @transform_5(%arg0: i32) -> (i32, i32, i32) {
    %c0_i32 = arith.constant 0 : i32
    %c0_i32_0 = arith.constant 0 : i32
    %c0_i32_1 = arith.constant 0 : i32
    return %c0_i32, %arg0, %c0_i32_0 : i32, i32, i32
  }
}

</mosaic_0001>

<llo_original>
// kernel: hierarchical_ae_forward.1
$region0: #{hierarchical_ae_forward.1}
  #allocation0 [shape = 'u32[]', space=smem, size = 0x4, offset = 0x4, fixed_abs, tag = 'smem constant byte address 0x4 - core index']
  #allocation1 [shape = 'u32[144,128]{1,0:T(1,128)}', space=vmem, size = 0x12000, scoped, tag = 'internal scratch']
  %s0 = inlined_call_operand.vmem [shape: f32[8,128], index: 0, kind: input, shape index: {}]
  %s1 = inlined_call_operand.hbm [shape: f32[3,128,128], index: 1, kind: input, shape index: {}]
  %s2 = inlined_call_operand.hbm [shape: f32[3,1,128], index: 2, kind: input, shape index: {}]
  %s3 = inlined_call_operand.hbm [shape: f32[24,128,128], index: 3, kind: input, shape index: {}]
  %s4 = inlined_call_operand.hbm [shape: f32[24,1,128], index: 4, kind: input, shape index: {}]
  %s5 = inlined_call_operand.hbm [shape: f32[8,8,128], index: 5, kind: output, shape index: {}]
  %s6 = sld [smem:[#allocation0]]
  $region46: #{hierarchical_ae_forward.1} parent=0
    _
  %s8 = ssub.s32 1, %s6
  %s9 = scalar_select 0, %s8, %s6
  $region1: #{hierarchical_ae_forward.1} parent=0
    #allocation2 [shape = 'u8[196608]{0}', space=vmem, size = 0x30000, scoped, tag = 'input window, operand 1, single buffered']
    #allocation3 [shape = 's32[1]{0}', space=sflag, size = 0x4, scoped, tag = 'scoped memory for hierarchical_ae_forward.1']
    #allocation4 [shape = 's32[1]{0}', space=sflag, size = 0x4, scoped, tag = 'scoped memory for hierarchical_ae_forward.1']
    #allocation5 [shape = 'u8[1536]{0}', space=vmem, size = 0x800, scoped, tag = 'input window, operand 2, single buffered']
    #allocation6 [shape = 's32[1]{0}', space=sflag, size = 0x4, scoped, tag = 'scoped memory for hierarchical_ae_forward.1']
    #allocation7 [shape = 'u8[1572864]{0}', space=vmem, size = 0x180000, scoped, tag = 'input window, operand 3, single buffered']
    #allocation8 [shape = 'u8[12288]{0}', space=vmem, size = 0x3000, scoped, tag = 'input window, operand 4, single buffered']
    #allocation9 [shape = 's32[1]{0}', space=sflag, size = 0x4, scoped, tag = 'scoped memory for hierarchical_ae_forward.1']
    #allocation10 [shape = 'u8[32768]{0}', space=vmem, size = 0x8000, scoped, tag = 'output window, operand 0, single buffered']
    %10 = vsyncpa [#allocation3], 0
    %11 = vsyncpa [#allocation6], 0
    %12 = vsyncpa [#allocation9], 0
    %13 = vsyncpa [#allocation4], 0
    // Predicated region
    $region2: #{hierarchical_ae_forward.1} parent=1 // pred_check
      _
    $region3: #{hierarchical_ae_forward.1} parent=1 // pred_check_branch
      %15 = sbr.rel (0) target = $region5
    $region4: #{hierarchical_ae_forward.1} parent=1 // pred_region
      _
    $region5: #{hierarchical_ae_forward.1} parent=1 // pred_fallthru
      _
    // Predicated region
    $region6: #{hierarchical_ae_forward.1} parent=1 // pred_check
      _
    $region7: #{hierarchical_ae_forward.1} parent=1 // pred_check_branch
      %17 = sbr.rel (0) target = $region9
    $region8: #{hierarchical_ae_forward.1} parent=1 // pred_region
      %s19 = ssub.s32 6144, 6144
      %20 = vsyncadd [#allocation3], %s19
      %s21 = sshll.u32 [#allocation2], 4
      %s22 = int_to_ptr.vmem [resolvable:$true] %s21
      %27 = dma.hbm_to_vmem [thread:$0]  %s1, 6144, %s22, [#allocation3], 128, 128, 8
    $region9: #{hierarchical_ae_forward.1} parent=1 // pred_fallthru
      _
    // Predicated region
    $region10: #{hierarchical_ae_forward.1} parent=1 // pred_check
      _
    $region11: #{hierarchical_ae_forward.1} parent=1 // pred_check_branch
      %29 = sbr.rel (0) target = $region13
    $region12: #{hierarchical_ae_forward.1} parent=1 // pred_region
      %s31 = ssub.s32 48, 48
      %32 = vsyncadd [#allocation6], %s31
      %s33 = sshll.u32 [#allocation5], 4
      %s34 = int_to_ptr.vmem [resolvable:$true] %s33
      %39 = dma.hbm_to_vmem [thread:$0]  %s2, 48, %s34, [#allocation6], 16, 16, 1
    $region13: #{hierarchical_ae_forward.1} parent=1 // pred_fallthru
      _
    // Predicated region
    $region14: #{hierarchical_ae_forward.1} parent=1 // pred_check
      _
    $region15: #{hierarchical_ae_forward.1} parent=1 // pred_check_branch
      %41 = sbr.rel (0) target = $region17
    $region16: #{hierarchical_ae_forward.1} parent=1 // pred_region
      %s43 = ssub.s32 49152, 49152
      %44 = vsyncadd [#allocation6], %s43
      %s45 = sshll.u32 [#allocation7], 4
      %s46 = int_to_ptr.vmem [resolvable:$true] %s45
      %51 = dma.hbm_to_vmem [thread:$0]  %s3, 49152, %s46, [#allocation6], 128, 128, 8
    $region17: #{hierarchical_ae_forward.1} parent=1 // pred_fallthru
      _
    // Predicated region
    $region18: #{hierarchical_ae_forward.1} parent=1 // pred_check
      _
    $region19: #{hierarchical_ae_forward.1} parent=1 // pred_check_branch
      %53 = sbr.rel (0) target = $region21
    $region20: #{hierarchical_ae_forward.1} parent=1 // pred_region
      %s55 = ssub.s32 384, 384
      %56 = vsyncadd [#allocation9], %s55
      %s57 = sshll.u32 [#allocation8], 4
      %s58 = int_to_ptr.vmem [resolvable:$true] %s57
      %63 = dma.hbm_to_vmem [thread:$0]  %s4, 384, %s58, [#allocation9], 16, 16, 1
    $region21: #{hierarchical_ae_forward.1} parent=1 // pred_fallthru
      _
    // Predicated region
    $region22: #{hierarchical_ae_forward.1} parent=1 // pred_check
      _
    $region23: #{hierarchical_ae_forward.1} parent=1 // pred_check_branch
      %65 = sbr.rel (0) target = $region25
    $region24: #{hierarchical_ae_forward.1} parent=1 // pred_region
      %66 = dma.done [#allocation3], 6144
    $region25: #{hierarchical_ae_forward.1} parent=1 // pred_fallthru
      _
    // Predicated region
    $region26: #{hierarchical_ae_forward.1} parent=1 // pred_check
      _
    $region27: #{hierarchical_ae_forward.1} parent=1 // pred_check_branch
      %68 = sbr.rel (0) target = $region29
    $region28: #{hierarchical_ae_forward.1} parent=1 // pred_region
      %69 = dma.done [#allocation6], 48
    $region29: #{hierarchical_ae_forward.1} parent=1 // pred_fallthru
      _
    // Predicated region
    $region30: #{hierarchical_ae_forward.1} parent=1 // pred_check
      _
    $region31: #{hierarchical_ae_forward.1} parent=1 // pred_check_branch
      %71 = sbr.rel (0) target = $region33
    $region32: #{hierarchical_ae_forward.1} parent=1 // pred_region
      %72 = dma.done [#allocation6], 49152
    $region33: #{hierarchical_ae_forward.1} parent=1 // pred_fallthru
      _
    // Predicated region
    $region34: #{hierarchical_ae_forward.1} parent=1 // pred_check
      _
    $region35: #{hierarchical_ae_forward.1} parent=1 // pred_check_branch
      %74 = sbr.rel (0) target = $region37
    $region36: #{hierarchical_ae_forward.1} parent=1 // pred_region
      %75 = dma.done [#allocation9], 384
    $region37: #{hierarchical_ae_forward.1} parent=1 // pred_fallthru
      _
    %v76 = vld [vmem:[%s0] sm:$0xff]
    %v77 = vld [vmem:[#allocation2] sm:$0xff]
    %v78 = vld [vmem:[#allocation2 + $0x8] sm:$0xff]
    %v79 = vld [vmem:[#allocation2 + $0x10] sm:$0xff]
    %v80 = vld [vmem:[#allocation2 + $0x18] sm:$0xff]
    %v81 = vld [vmem:[#allocation2 + $0x20] sm:$0xff]
    %v82 = vld [vmem:[#allocation2 + $0x28] sm:$0xff]
    %v83 = vld [vmem:[#allocation2 + $0x30] sm:$0xff]
    %v84 = vld [vmem:[#allocation2 + $0x38] sm:$0xff]
    %v85 = vld [vmem:[#allocation2 + $0x40] sm:$0xff]
    %v86 = vld [vmem:[#allocation2 + $0x48] sm:$0xff]
    %v87 = vld [vmem:[#allocation2 + $0x50] sm:$0xff]
    %v88 = vld [vmem:[#allocation2 + $0x58] sm:$0xff]
    %v89 = vld [vmem:[#allocation2 + $0x60] sm:$0xff]
    %v90 = vld [vmem:[#allocation2 + $0x68] sm:$0xff]
    %v91 = vld [vmem:[#allocation2 + $0x70] sm:$0xff]
    %v92 = vld [vmem:[#allocation2 + $0x78] sm:$0xff]
    %v93 = vld [vmem:[#allocation5] sm:$0x1]
    %v95 = vlaneseq
    %v96 = vshrl.u32 %v95, 7
    %v97 = vsub.s32 0, %v96
    %v98 = vrot.slane %v93, %v97
    %100 = vmatprep.subr.mxu0 0.0
    %101 = vmatpush1.msra.mxu0 %v77
    %102 = vmatprep.subr.mxu0 0.0
    %103 = vmatpush1.msra.mxu0 %v78
    %104 = vmatprep.subr.mxu0 0.0
    %105 = vmatpush1.msra.mxu0 %v79
    %106 = vmatprep.subr.mxu0 0.0
    %107 = vmatpush1.msra.mxu0 %v80
    %108 = vmatprep.subr.mxu0 0.0
    %109 = vmatpush1.msra.mxu0 %v81
    %110 = vmatprep.subr.mxu0 0.0
    %111 = vmatpush1.msra.mxu0 %v82
    %112 = vmatprep.subr.mxu0 0.0
    %113 = vmatpush1.msra.mxu0 %v83
    %114 = vmatprep.subr.mxu0 0.0
    %115 = vmatpush1.msra.mxu0 %v84
    %116 = vmatprep.subr.mxu0 0.0
    %117 = vmatpush1.msra.mxu0 %v85
    %118 = vmatprep.subr.mxu0 0.0
    %119 = vmatpush1.msra.mxu0 %v86
    %120 = vmatprep.subr.mxu0 0.0
    %121 = vmatpush1.msra.mxu0 %v87
    %122 = vmatprep.subr.mxu0 0.0
    %123 = vmatpush1.msra.mxu0 %v88
    %124 = vmatprep.subr.mxu0 0.0
    %125 = vmatpush1.msra.mxu0 %v89
    %126 = vmatprep.subr.mxu0 0.0
    %127 = vmatpush1.msra.mxu0 %v90
    %128 = vmatprep.subr.mxu0 0.0
    %129 = vmatpush1.msra.mxu0 %v91
    %130 = vmatprep.subr.mxu0 0.0
    %131 = vmatpush1.msra.mxu0 %v92
    %132 = vmatprep.subr.mxu0 0.0
    %133 = vmatpush1.msra.mxu0 0.0
    %134 = vmatprep.subr.mxu0 0.0
    %135 = vmatpush1.msra.mxu0 0.0
    %136 = vmatprep.subr.mxu0 0.0
    %137 = vmatpush1.msra.mxu0 0.0
    %138 = vmatprep.subr.mxu0 0.0
    %139 = vmatpush1.msra.mxu0 0.0
    %140 = vmatprep.subr.mxu0 0.0
    %141 = vmatpush1.msra.mxu0 0.0
    %142 = vmatprep.subr.mxu0 0.0
    %143 = vmatpush1.msra.mxu0 0.0
    %144 = vmatprep.subr.mxu0 0.0
    %145 = vmatpush1.msra.mxu0 0.0
    %146 = vmatprep.subr.mxu0 0.0
    %147 = vmatpush1.msra.mxu0 0.0
    %148 = vmatprep.subr.mxu0 0.0
    %149 = vmatpush1.msra.mxu0 0.0
    %150 = vmatprep.subr.mxu0 0.0
    %151 = vmatpush1.msra.mxu0 0.0
    %152 = vmatprep.subr.mxu0 0.0
    %153 = vmatpush1.msra.mxu0 0.0
    %154 = vmatprep.subr.mxu0 0.0
    %155 = vmatpush1.msra.mxu0 0.0
    %156 = vmatprep.subr.mxu0 0.0
    %157 = vmatpush1.msra.mxu0 0.0
    %158 = vmatprep.subr.mxu0 0.0
    %159 = vmatpush1.msra.mxu0 0.0
    %160 = vmatprep.subr.mxu0 0.0
    %161 = vmatpush1.msra.mxu0 0.0
    %162 = vmatprep.subr.mxu0 0.0
    %163 = vmatpush1.msra.mxu0 0.0
    %164 = vmatprep.mubr.f32.mxu0 0.0
    %165 = vmatmul.mubr.f32.gmra.mrb[0].mxu0 %v76
    %v166 = vpop.f32.mrb[0].mxu0
    %v167 = vadd.f32 %v98, %v166
    %v168 = vpop.f32.mrb[0].mxu0
    %169 = vdwg.mxu0
    %v170 = vtanh.pop %v167
    %s171 = scalar_lea.vmem [#allocation2], 128
    %v172 = vld [vmem:[%s171] sm:$0xff]
    %v173 = vld [vmem:[%s171 + $0x8] sm:$0xff]
    %v174 = vld [vmem:[%s171 + $0x10] sm:$0xff]
    %v175 = vld [vmem:[%s171 + $0x18] sm:$0xff]
    %v176 = vld [vmem:[%s171 + $0x20] sm:$0xff]
    %v177 = vld [vmem:[%s171 + $0x28] sm:$0xff]
    %v178 = vld [vmem:[%s171 + $0x30] sm:$0xff]
    %v179 = vld [vmem:[%s171 + $0x38] sm:$0xff]
    %v180 = vld [vmem:[%s171 + $0x40] sm:$0xff]
    %v181 = vld [vmem:[%s171 + $0x48] sm:$0xff]
    %v182 = vld [vmem:[%s171 + $0x50] sm:$0xff]
    %v183 = vld [vmem:[%s171 + $0x58] sm:$0xff]
    %v184 = vld [vmem:[%s171 + $0x60] sm:$0xff]
    %v185 = vld [vmem:[%s171 + $0x68] sm:$0xff]
    %v186 = vld [vmem:[%s171 + $0x70] sm:$0xff]
    %v187 = vld [vmem:[%s171 + $0x78] sm:$0xff]
    %s188 = scalar_lea.vmem [#allocation5], 1
    %v189 = vld [vmem:[%s188] sm:$0x1]
    %v191 = vlaneseq
    %v192 = vshrl.u32 %v191, 7
    %v193 = vsub.s32 0, %v192
    %v194 = vrot.slane %v189, %v193
    %196 = vmatprep.subr.mxu0 0.0
    %197 = vmatpush1.msra.mxu0 %v172
    %198 = vmatprep.subr.mxu0 0.0
    %199 = vmatpush1.msra.mxu0 %v173
    %200 = vmatprep.subr.mxu0 0.0
    %201 = vmatpush1.msra.mxu0 %v174
    %202 = vmatprep.subr.mxu0 0.0
    %203 = vmatpush1.msra.mxu0 %v175
    %204 = vmatprep.subr.mxu0 0.0
    %205 = vmatpush1.msra.mxu0 %v176
    %206 = vmatprep.subr.mxu0 0.0
    %207 = vmatpush1.msra.mxu0 %v177
    %208 = vmatprep.subr.mxu0 0.0
    %209 = vmatpush1.msra.mxu0 %v178
    %210 = vmatprep.subr.mxu0 0.0
    %211 = vmatpush1.msra.mxu0 %v179
    %212 = vmatprep.subr.mxu0 0.0
    %213 = vmatpush1.msra.mxu0 %v180
    %214 = vmatprep.subr.mxu0 0.0
    %215 = vmatpush1.msra.mxu0 %v181
    %216 = vmatprep.subr.mxu0 0.0
    %217 = vmatpush1.msra.mxu0 %v182
    %218 = vmatprep.subr.mxu0 0.0
    %219 = vmatpush1.msra.mxu0 %v183
    %220 = vmatprep.subr.mxu0 0.0
    %221 = vmatpush1.msra.mxu0 %v184
    %222 = vmatprep.subr.mxu0 0.0
    %223 = vmatpush1.msra.mxu0 %v185
    %224 = vmatprep.subr.mxu0 0.0
    %225 = vmatpush1.msra.mxu0 %v186
    %226 = vmatprep.subr.mxu0 0.0
    %227 = vmatpush1.msra.mxu0 %v187
    %228 = vmatprep.subr.mxu0 0.0
    %229 = vmatpush1.msra.mxu0 0.0
    %230 = vmatprep.subr.mxu0 0.0
    %231 = vmatpush1.msra.mxu0 0.0
    %232 = vmatprep.subr.mxu0 0.0
    %233 = vmatpush1.msra.mxu0 0.0
    %234 = vmatprep.subr.mxu0 0.0
    %235 = vmatpush1.msra.mxu0 0.0
    %236 = vmatprep.subr.mxu0 0.0
    %237 = vmatpush1.msra.mxu0 0.0
    %238 = vmatprep.subr.mxu0 0.0
    %239 = vmatpush1.msra.mxu0 0.0
    %240 = vmatprep.subr.mxu0 0.0
    %241 = vmatpush1.msra.mxu0 0.0
    %242 = vmatprep.subr.mxu0 0.0
    %243 = vmatpush1.msra.mxu0 0.0
    %244 = vmatprep.subr.mxu0 0.0
    %245 = vmatpush1.msra.mxu0 0.0
    %246 = vmatprep.subr.mxu0 0.0
    %247 = vmatpush1.msra.mxu0 0.0
    %248 = vmatprep.subr.mxu0 0.0
    %249 = vmatpush1.msra.mxu0 0.0
    %250 = vmatprep.subr.mxu0 0.0
    %251 = vmatpush1.msra.mxu0 0.0
    %252 = vmatprep.subr.mxu0 0.0
    %253 = vmatpush1.msra.mxu0 0.0
    %254 = vmatprep.subr.mxu0 0.0
    %255 = vmatpush1.msra.mxu0 0.0
    %256 = vmatprep.subr.mxu0 0.0
    %257 = vmatpush1.msra.mxu0 0.0
    %258 = vmatprep.subr.mxu0 0.0
    %259 = vmatpush1.msra.mxu0 0.0
    %260 = vmatprep.mubr.f32.mxu0 0.0
    %261 = vmatmul.mubr.f32.gmra.mrb[0].mxu0 %v170
    %v262 = vpop.f32.mrb[0].mxu0
    %v263 = vadd.f32 %v194, %v262
    %v264 = vpop.f32.mrb[0].mxu0
    %265 = vdwg.mxu0
    %v266 = vtanh.pop %v263
    %s267 = scalar_lea.vmem [#allocation2], 256
    %v268 = vld [vmem:[%s267] sm:$0xff]
    %v269 = vld [vmem:[%s267 + $0x8] sm:$0xff]
    %v270 = vld [vmem:[%s267 + $0x10] sm:$0xff]
    %v271 = vld [vmem:[%s267 + $0x18] sm:$0xff]
    %v272 = vld [vmem:[%s267 + $0x20] sm:$0xff]
    %v273 = vld [vmem:[%s267 + $0x28] sm:$0xff]
    %v274 = vld [vmem:[%s267 + $0x30] sm:$0xff]
    %v275 = vld [vmem:[%s267 + $0x38] sm:$0xff]
    %v276 = vld [vmem:[%s267 + $0x40] sm:$0xff]
    %v277 = vld [vmem:[%s267 + $0x48] sm:$0xff]
    %v278 = vld [vmem:[%s267 + $0x50] sm:$0xff]
    %v279 = vld [vmem:[%s267 + $0x58] sm:$0xff]
    %v280 = vld [vmem:[%s267 + $0x60] sm:$0xff]
    %v281 = vld [vmem:[%s267 + $0x68] sm:$0xff]
    %v282 = vld [vmem:[%s267 + $0x70] sm:$0xff]
    %v283 = vld [vmem:[%s267 + $0x78] sm:$0xff]
    %s284 = scalar_lea.vmem [#allocation5], 2
    %v285 = vld [vmem:[%s284] sm:$0x1]
    %v287 = vlaneseq
    %v288 = vshrl.u32 %v287, 7
    %v289 = vsub.s32 0, %v288
    %v290 = vrot.slane %v285, %v289
    %292 = vmatprep.subr.mxu0 0.0
    %293 = vmatpush1.msra.mxu0 %v268
    %294 = vmatprep.subr.mxu0 0.0
    %295 = vmatpush1.msra.mxu0 %v269
    %296 = vmatprep.subr.mxu0 0.0
    %297 = vmatpush1.msra.mxu0 %v270
    %298 = vmatprep.subr.mxu0 0.0
    %299 = vmatpush1.msra.mxu0 %v271
    %300 = vmatprep.subr.mxu0 0.0
    %301 = vmatpush1.msra.mxu0 %v272
    %302 = vmatprep.subr.mxu0 0.0
    %303 = vmatpush1.msra.mxu0 %v273
    %304 = vmatprep.subr.mxu0 0.0
    %305 = vmatpush1.msra.mxu0 %v274
    %306 = vmatprep.subr.mxu0 0.0
    %307 = vmatpush1.msra.mxu0 %v275
    %308 = vmatprep.subr.mxu0 0.0
    %309 = vmatpush1.msra.mxu0 %v276
    %310 = vmatprep.subr.mxu0 0.0
    %311 = vmatpush1.msra.mxu0 %v277
    %312 = vmatprep.subr.mxu0 0.0
    %313 = vmatpush1.msra.mxu0 %v278
    %314 = vmatprep.subr.mxu0 0.0
    %315 = vmatpush1.msra.mxu0 %v279
    %316 = vmatprep.subr.mxu0 0.0
    %317 = vmatpush1.msra.mxu0 %v280
    %318 = vmatprep.subr.mxu0 0.0
    %319 = vmatpush1.msra.mxu0 %v281
    %320 = vmatprep.subr.mxu0 0.0
    %321 = vmatpush1.msra.mxu0 %v282
    %322 = vmatprep.subr.mxu0 0.0
    %323 = vmatpush1.msra.mxu0 %v283
    %324 = vmatprep.subr.mxu0 0.0
    %325 = vmatpush1.msra.mxu0 0.0
    %326 = vmatprep.subr.mxu0 0.0
    %327 = vmatpush1.msra.mxu0 0.0
    %328 = vmatprep.subr.mxu0 0.0
    %329 = vmatpush1.msra.mxu0 0.0
    %330 = vmatprep.subr.mxu0 0.0
    %331 = vmatpush1.msra.mxu0 0.0
    %332 = vmatprep.subr.mxu0 0.0
    %333 = vmatpush1.msra.mxu0 0.0
    %334 = vmatprep.subr.mxu0 0.0
    %335 = vmatpush1.msra.mxu0 0.0
    %336 = vmatprep.subr.mxu0 0.0
    %337 = vmatpush1.msra.mxu0 0.0
    %338 = vmatprep.subr.mxu0 0.0
    %339 = vmatpush1.msra.mxu0 0.0
    %340 = vmatprep.subr.mxu0 0.0
    %341 = vmatpush1.msra.mxu0 0.0
    %342 = vmatprep.subr.mxu0 0.0
    %343 = vmatpush1.msra.mxu0 0.0
    %344 = vmatprep.subr.mxu0 0.0
    %345 = vmatpush1.msra.mxu0 0.0
    %346 = vmatprep.subr.mxu0 0.0
    %347 = vmatpush1.msra.mxu0 0.0
    %348 = vmatprep.subr.mxu0 0.0
    %349 = vmatpush1.msra.mxu0 0.0
    %350 = vmatprep.subr.mxu0 0.0
    %351 = vmatpush1.msra.mxu0 0.0
    %352 = vmatprep.subr.mxu0 0.0
    %353 = vmatpush1.msra.mxu0 0.0
    %354 = vmatprep.subr.mxu0 0.0
    %355 = vmatpush1.msra.mxu0 0.0
    %356 = vmatprep.mubr.f32.mxu0 0.0
    %357 = vmatmul.mubr.f32.gmra.mrb[0].mxu0 %v266
    %v358 = vpop.f32.mrb[0].mxu0
    %v359 = vadd.f32 %v290, %v358
    %v360 = vpop.f32.mrb[0].mxu0
    %361 = vdwg.mxu0
    %v362 = vtanh.pop %v359
    %v363 = vld [vmem:[#allocation7] sm:$0xff]
    %v364 = vld [vmem:[#allocation7 + $0x8] sm:$0xff]
    %v365 = vld [vmem:[#allocation7 + $0x10] sm:$0xff]
    %v366 = vld [vmem:[#allocation7 + $0x18] sm:$0xff]
    %v367 = vld [vmem:[#allocation7 + $0x20] sm:$0xff]
    %v368 = vld [vmem:[#allocation7 + $0x28] sm:$0xff]
    %v369 = vld [vmem:[#allocation7 + $0x30] sm:$0xff]
    %v370 = vld [vmem:[#allocation7 + $0x38] sm:$0xff]
    %v371 = vld [vmem:[#allocation7 + $0x40] sm:$0xff]
    %v372 = vld [vmem:[#allocation7 + $0x48] sm:$0xff]
    %v373 = vld [vmem:[#allocation7 + $0x50] sm:$0xff]
    %v374 = vld [vmem:[#allocation7 + $0x58] sm:$0xff]
    %v375 = vld [vmem:[#allocation7 + $0x60] sm:$0xff]
    %v376 = vld [vmem:[#allocation7 + $0x68] sm:$0xff]
    %v377 = vld [vmem:[#allocation7 + $0x70] sm:$0xff]
    %v378 = vld [vmem:[#allocation7 + $0x78] sm:$0xff]
    %v379 = vld [vmem:[#allocation8] sm:$0x1]
    %v381 = vlaneseq
    %v382 = vshrl.u32 %v381, 7
    %v383 = vsub.s32 0, %v382
    %v384 = vrot.slane %v379, %v383
    %386 = vmatprep.subr.mxu0 0.0
    %387 = vmatpush1.msra.mxu0 %v363
    %388 = vmatprep.subr.mxu0 0.0
    %389 = vmatpush1.msra.mxu0 %v364
    %390 = vmatprep.subr.mxu0 0.0
    %391 = vmatpush1.msra.mxu0 %v365
    %392 = vmatprep.subr.mxu0 0.0
    %393 = vmatpush1.msra.mxu0 %v366
    %394 = vmatprep.subr.mxu0 0.0
    %395 = vmatpush1.msra.mxu0 %v367
    %396 = vmatprep.subr.mxu0 0.0
    %397 = vmatpush1.msra.mxu0 %v368
    %398 = vmatprep.subr.mxu0 0.0
    %399 = vmatpush1.msra.mxu0 %v369
    %400 = vmatprep.subr.mxu0 0.0
    %401 = vmatpush1.msra.mxu0 %v370
    %402 = vmatprep.subr.mxu0 0.0
    %403 = vmatpush1.msra.mxu0 %v371
    %404 = vmatprep.subr.mxu0 0.0
    %405 = vmatpush1.msra.mxu0 %v372
    %406 = vmatprep.subr.mxu0 0.0
    %407 = vmatpush1.msra.mxu0 %v373
    %408 = vmatprep.subr.mxu0 0.0
    %409 = vmatpush1.msra.mxu0 %v374
    %410 = vmatprep.subr.mxu0 0.0
    %411 = vmatpush1.msra.mxu0 %v375
    %412 = vmatprep.subr.mxu0 0.0
    %413 = vmatpush1.msra.mxu0 %v376
    %414 = vmatprep.subr.mxu0 0.0
    %415 = vmatpush1.msra.mxu0 %v377
    %416 = vmatprep.subr.mxu0 0.0
    %417 = vmatpush1.msra.mxu0 %v378
    %418 = vmatprep.subr.mxu0 0.0
    %419 = vmatpush1.msra.mxu0 0.0
    %420 = vmatprep.subr.mxu0 0.0
    %421 = vmatpush1.msra.mxu0 0.0
    %422 = vmatprep.subr.mxu0 0.0
    %423 = vmatpush1.msra.mxu0 0.0
    %424 = vmatprep.subr.mxu0 0.0
    %425 = vmatpush1.msra.mxu0 0.0
    %426 = vmatprep.subr.mxu0 0.0
    %427 = vmatpush1.msra.mxu0 0.0
    %428 = vmatprep.subr.mxu0 0.0
    %429 = vmatpush1.msra.mxu0 0.0
    %430 = vmatprep.subr.mxu0 0.0
    %431 = vmatpush1.msra.mxu0 0.0
    %432 = vmatprep.subr.mxu0 0.0
    %433 = vmatpush1.msra.mxu0 0.0
    %434 = vmatprep.subr.mxu0 0.0
    %435 = vmatpush1.msra.mxu0 0.0
    %436 = vmatprep.subr.mxu0 0.0
    %437 = vmatpush1.msra.mxu0 0.0
    %438 = vmatprep.subr.mxu0 0.0
    %439 = vmatpush1.msra.mxu0 0.0
    %440 = vmatprep.subr.mxu0 0.0
    %441 = vmatpush1.msra.mxu0 0.0
    %442 = vmatprep.subr.mxu0 0.0
    %443 = vmatpush1.msra.mxu0 0.0
    %444 = vmatprep.subr.mxu0 0.0
    %445 = vmatpush1.msra.mxu0 0.0
    %446 = vmatprep.subr.mxu0 0.0
    %447 = vmatpush1.msra.mxu0 0.0
    %448 = vmatprep.subr.mxu0 0.0
    %449 = vmatpush1.msra.mxu0 0.0
    %450 = vmatprep.mubr.f32.mxu0 0.0
    %451 = vmatmul.mubr.f32.gmra.mrb[0].mxu0 %v362
    %v452 = vpop.f32.mrb[0].mxu0
    %v453 = vadd.f32 %v384, %v452
    %v454 = vpop.f32.mrb[0].mxu0
    %455 = vdwg.mxu0
    %v456 = vtanh.pop %v453
    %s457 = scalar_lea.vmem [#allocation7], 128
    %v458 = vld [vmem:[%s457] sm:$0xff]
    %v459 = vld [vmem:[%s457 + $0x8] sm:$0xff]
    %v460 = vld [vmem:[%s457 + $0x10] sm:$0xff]
    %v461 = vld [vmem:[%s457 + $0x18] sm:$0xff]
    %v462 = vld [vmem:[%s457 + $0x20] sm:$0xff]
    %v463 = vld [vmem:[%s457 + $0x28] sm:$0xff]
    %v464 = vld [vmem:[%s457 + $0x30] sm:$0xff]
    %v465 = vld [vmem:[%s457 + $0x38] sm:$0xff]
    %v466 = vld [vmem:[%s457 + $0x40] sm:$0xff]
    %v467 = vld [vmem:[%s457 + $0x48] sm:$0xff]
    %v468 = vld [vmem:[%s457 + $0x50] sm:$0xff]
    %v469 = vld [vmem:[%s457 + $0x58] sm:$0xff]
    %v470 = vld [vmem:[%s457 + $0x60] sm:$0xff]
    %v471 = vld [vmem:[%s457 + $0x68] sm:$0xff]
    %v472 = vld [vmem:[%s457 + $0x70] sm:$0xff]
    %v473 = vld [vmem:[%s457 + $0x78] sm:$0xff]
    %s474 = scalar_lea.vmem [#allocation8], 1
    %v475 = vld [vmem:[%s474] sm:$0x1]
    %v477 = vlaneseq
    %v478 = vshrl.u32 %v477, 7
    %v479 = vsub.s32 0, %v478
    %v480 = vrot.slane %v475, %v479
    %482 = vmatprep.subr.mxu0 0.0
    %483 = vmatpush1.msra.mxu0 %v458
    %484 = vmatprep.subr.mxu0 0.0
    %485 = vmatpush1.msra.mxu0 %v459
    %486 = vmatprep.subr.mxu0 0.0
    %487 = vmatpush1.msra.mxu0 %v460
    %488 = vmatprep.subr.mxu0 0.0
    %489 = vmatpush1.msra.mxu0 %v461
    %490 = vmatprep.subr.mxu0 0.0
    %491 = vmatpush1.msra.mxu0 %v462
    %492 = vmatprep.subr.mxu0 0.0
    %493 = vmatpush1.msra.mxu0 %v463
    %494 = vmatprep.subr.mxu0 0.0
    %495 = vmatpush1.msra.mxu0 %v464
    %496 = vmatprep.subr.mxu0 0.0
    %497 = vmatpush1.msra.mxu0 %v465
    %498 = vmatprep.subr.mxu0 0.0
    %499 = vmatpush1.msra.mxu0 %v466
    %500 = vmatprep.subr.mxu0 0.0
    %501 = vmatpush1.msra.mxu0 %v467
    %502 = vmatprep.subr.mxu0 0.0
    %503 = vmatpush1.msra.mxu0 %v468
    %504 = vmatprep.subr.mxu0 0.0
    %505 = vmatpush1.msra.mxu0 %v469
    %506 = vmatprep.subr.mxu0 0.0
    %507 = vmatpush1.msra.mxu0 %v470
    %508 = vmatprep.subr.mxu0 0.0
    %509 = vmatpush1.msra.mxu0 %v471
    %510 = vmatprep.subr.mxu0 0.0
    %511 = vmatpush1.msra.mxu0 %v472
    %512 = vmatprep.subr.mxu0 0.0
    %513 = vmatpush1.msra.mxu0 %v473
    %514 = vmatprep.subr.mxu0 0.0
    %515 = vmatpush1.msra.mxu0 0.0
    %516 = vmatprep.subr.mxu0 0.0
    %517 = vmatpush1.msra.mxu0 0.0
    %518 = vmatprep.subr.mxu0 0.0
    %519 = vmatpush1.msra.mxu0 0.0
    %520 = vmatprep.subr.mxu0 0.0
    %521 = vmatpush1.msra.mxu0 0.0
    %522 = vmatprep.subr.mxu0 0.0
    %523 = vmatpush1.msra.mxu0 0.0
    %524 = vmatprep.subr.mxu0 0.0
    %525 = vmatpush1.msra.mxu0 0.0
    %526 = vmatprep.subr.mxu0 0.0
    %527 = vmatpush1.msra.mxu0 0.0
    %528 = vmatprep.subr.mxu0 0.0
    %529 = vmatpush1.msra.mxu0 0.0
    %530 = vmatprep.subr.mxu0 0.0
    %531 = vmatpush1.msra.mxu0 0.0
    %532 = vmatprep.subr.mxu0 0.0
    %533 = vmatpush1.msra.mxu0 0.0
    %534 = vmatprep.subr.mxu0 0.0
    %535 = vmatpush1.msra.mxu0 0.0
    %536 = vmatprep.subr.mxu0 0.0
    %537 = vmatpush1.msra.mxu0 0.0
    %538 = vmatprep.subr.mxu0 0.0
    %539 = vmatpush1.msra.mxu0 0.0
    %540 = vmatprep.subr.mxu0 0.0
    %541 = vmatpush1.msra.mxu0 0.0
    %542 = vmatprep.subr.mxu0 0.0
    %543 = vmatpush1.msra.mxu0 0.0
    %544 = vmatprep.subr.mxu0 0.0
    %545 = vmatpush1.msra.mxu0 0.0
    %546 = vmatprep.mubr.f32.mxu0 0.0
    %547 = vmatmul.mubr.f32.gmra.mrb[0].mxu0 %v456
    %v548 = vpop.f32.mrb[0].mxu0
    %v549 = vadd.f32 %v480, %v548
    %v550 = vpop.f32.mrb[0].mxu0
    %551 = vdwg.mxu0
    %v552 = vtanh.pop %v549
    %s553 = scalar_lea.vmem [#allocation7], 256
    %v554 = vld [vmem:[%s553] sm:$0xff]
    %v555 = vld [vmem:[%s553 + $0x8] sm:$0xff]
    %v556 = vld [vmem:[%s553 + $0x10] sm:$0xff]
    %v557 = vld [vmem:[%s553 + $0x18] sm:$0xff]
    %v558 = vld [vmem:[%s553 + $0x20] sm:$0xff]
    %v559 = vld [vmem:[%s553 + $0x28] sm:$0xff]
    %v560 = vld [vmem:[%s553 + $0x30] sm:$0xff]
    %v561 = vld [vmem:[%s553 + $0x38] sm:$0xff]
    %v562 = vld [vmem:[%s553 + $0x40] sm:$0xff]
    %v563 = vld [vmem:[%s553 + $0x48] sm:$0xff]
    %v564 = vld [vmem:[%s553 + $0x50] sm:$0xff]
    %v565 = vld [vmem:[%s553 + $0x58] sm:$0xff]
    %v566 = vld [vmem:[%s553 + $0x60] sm:$0xff]
    %v567 = vld [vmem:[%s553 + $0x68] sm:$0xff]
    %v568 = vld [vmem:[%s553 + $0x70] sm:$0xff]
    %v569 = vld [vmem:[%s553 + $0x78] sm:$0xff]
    %s570 = scalar_lea.vmem [#allocation8], 2
    %v571 = vld [vmem:[%s570] sm:$0x1]
    %v573 = vlaneseq
    %v574 = vshrl.u32 %v573, 7
    %v575 = vsub.s32 0, %v574
    %v576 = vrot.slane %v571, %v575
    %578 = vmatprep.subr.mxu0 0.0
    %579 = vmatpush1.msra.mxu0 %v554
    %580 = vmatprep.subr.mxu0 0.0
    %581 = vmatpush1.msra.mxu0 %v555
    %582 = vmatprep.subr.mxu0 0.0
    %583 = vmatpush1.msra.mxu0 %v556
    %584 = vmatprep.subr.mxu0 0.0
    %585 = vmatpush1.msra.mxu0 %v557
    %586 = vmatprep.subr.mxu0 0.0
    %587 = vmatpush1.msra.mxu0 %v558
    %588 = vmatprep.subr.mxu0 0.0
    %589 = vmatpush1.msra.mxu0 %v559
    %590 = vmatprep.subr.mxu0 0.0
    %591 = vmatpush1.msra.mxu0 %v560
    %592 = vmatprep.subr.mxu0 0.0
    %593 = vmatpush1.msra.mxu0 %v561
    %594 = vmatprep.subr.mxu0 0.0
    %595 = vmatpush1.msra.mxu0 %v562
    %596 = vmatprep.subr.mxu0 0.0
    %597 = vmatpush1.msra.mxu0 %v563
    %598 = vmatprep.subr.mxu0 0.0
    %599 = vmatpush1.msra.mxu0 %v564
    %600 = vmatprep.subr.mxu0 0.0
    %601 = vmatpush1.msra.mxu0 %v565
    %602 = vmatprep.subr.mxu0 0.0
    %603 = vmatpush1.msra.mxu0 %v566
    %604 = vmatprep.subr.mxu0 0.0
    %605 = vmatpush1.msra.mxu0 %v567
    %606 = vmatprep.subr.mxu0 0.0
    %607 = vmatpush1.msra.mxu0 %v568
    %608 = vmatprep.subr.mxu0 0.0
    %609 = vmatpush1.msra.mxu0 %v569
    %610 = vmatprep.subr.mxu0 0.0
    %611 = vmatpush1.msra.mxu0 0.0
    %612 = vmatprep.subr.mxu0 0.0
    %613 = vmatpush1.msra.mxu0 0.0
    %614 = vmatprep.subr.mxu0 0.0
    %615 = vmatpush1.msra.mxu0 0.0
    %616 = vmatprep.subr.mxu0 0.0
    %617 = vmatpush1.msra.mxu0 0.0
    %618 = vmatprep.subr.mxu0 0.0
    %619 = vmatpush1.msra.mxu0 0.0
    %620 = vmatprep.subr.mxu0 0.0
    %621 = vmatpush1.msra.mxu0 0.0
    %622 = vmatprep.subr.mxu0 0.0
    %623 = vmatpush1.msra.mxu0 0.0
    %624 = vmatprep.subr.mxu0 0.0
    %625 = vmatpush1.msra.mxu0 0.0
    %626 = vmatprep.subr.mxu0 0.0
    %627 = vmatpush1.msra.mxu0 0.0
    %628 = vmatprep.subr.mxu0 0.0
    %629 = vmatpush1.msra.mxu0 0.0
    %630 = vmatprep.subr.mxu0 0.0
    %631 = vmatpush1.msra.mxu0 0.0
    %632 = vmatprep.subr.mxu0 0.0
    %633 = vmatpush1.msra.mxu0 0.0
    %634 = vmatprep.subr.mxu0 0.0
    %635 = vmatpush1.msra.mxu0 0.0
    %636 = vmatprep.subr.mxu0 0.0
    %637 = vmatpush1.msra.mxu0 0.0
    %638 = vmatprep.subr.mxu0 0.0
    %639 = vmatpush1.msra.mxu0 0.0
    %640 = vmatprep.subr.mxu0 0.0
    %641 = vmatpush1.msra.mxu0 0.0
    %642 = vmatprep.mubr.f32.mxu0 0.0
    %643 = vmatmul.mubr.f32.gmra.mrb[0].mxu0 %v552
    %v644 = vpop.f32.mrb[0].mxu0
    %v645 = vadd.f32 %v576, %v644
    %v646 = vpop.f32.mrb[0].mxu0
    %647 = vdwg.mxu0
    %648 = vst [vmem:[#allocation10] sm:$0xff] %v645
    %s649 = scalar_lea.vmem [#allocation7], 384
    %v650 = vld [vmem:[%s649] sm:$0xff]
    %v651 = vld [vmem:[%s649 + $0x8] sm:$0xff]
    %v652 = vld [vmem:[%s649 + $0x10] sm:$0xff]
    %v653 = vld [vmem:[%s649 + $0x18] sm:$0xff]
    %v654 = vld [vmem:[%s649 + $0x20] sm:$0xff]
    %v655 = vld [vmem:[%s649 + $0x28] sm:$0xff]
    %v656 = vld [vmem:[%s649 + $0x30] sm:$0xff]
    %v657 = vld [vmem:[%s649 + $0x38] sm:$0xff]
    %v658 = vld [vmem:[%s649 + $0x40] sm:$0xff]
    %v659 = vld [vmem:[%s649 + $0x48] sm:$0xff]
    %v660 = vld [vmem:[%s649 + $0x50] sm:$0xff]
    %v661 = vld [vmem:[%s649 + $0x58] sm:$0xff]
    %v662 = vld [vmem:[%s649 + $0x60] sm:$0xff]
    %v663 = vld [vmem:[%s649 + $0x68] sm:$0xff]
    %v664 = vld [vmem:[%s649 + $0x70] sm:$0xff]
    %v665 = vld [vmem:[%s649 + $0x78] sm:$0xff]
    %s666 = scalar_lea.vmem [#allocation8], 3
    %v667 = vld [vmem:[%s666] sm:$0x1]
    %v669 = vlaneseq
    %v670 = vshrl.u32 %v669, 7
    %v671 = vsub.s32 0, %v670
    %v672 = vrot.slane %v667, %v671
    %674 = vmatprep.subr.mxu0 0.0
    %675 = vmatpush1.msra.mxu0 %v650
    %676 = vmatprep.subr.mxu0 0.0
    %677 = vmatpush1.msra.mxu0 %v651
    %678 = vmatprep.subr.mxu0 0.0
    %679 = vmatpush1.msra.mxu0 %v652
    %680 = vmatprep.subr.mxu0 0.0
    %681 = vmatpush1.msra.mxu0 %v653
    %682 = vmatprep.subr.mxu0 0.0
    %683 = vmatpush1.msra.mxu0 %v654
    %684 = vmatprep.subr.mxu0 0.0
    %685 = vmatpush1.msra.mxu0 %v655
    %686 = vmatprep.subr.mxu0 0.0
    %687 = vmatpush1.msra.mxu0 %v656
    %688 = vmatprep.subr.mxu0 0.0
    %689 = vmatpush1.msra.mxu0 %v657
    %690 = vmatprep.subr.mxu0 0.0
    %691 = vmatpush1.msra.mxu0 %v658
    %692 = vmatprep.subr.mxu0 0.0
    %693 = vmatpush1.msra.mxu0 %v659
    %694 = vmatprep.subr.mxu0 0.0
    %695 = vmatpush1.msra.mxu0 %v660
    %696 = vmatprep.subr.mxu0 0.0
    %697 = vmatpush1.msra.mxu0 %v661
    %698 = vmatprep.subr.mxu0 0.0
    %699 = vmatpush1.msra.mxu0 %v662
    %700 = vmatprep.subr.mxu0 0.0
    %701 = vmatpush1.msra.mxu0 %v663
    %702 = vmatprep.subr.mxu0 0.0
    %703 = vmatpush1.msra.mxu0 %v664
    %704 = vmatprep.subr.mxu0 0.0
    %705 = vmatpush1.msra.mxu0 %v665
    %706 = vmatprep.subr.mxu0 0.0
    %707 = vmatpush1.msra.mxu0 0.0
    %708 = vmatprep.subr.mxu0 0.0
    %709 = vmatpush1.msra.mxu0 0.0
    %710 = vmatprep.subr.mxu0 0.0
    %711 = vmatpush1.msra.mxu0 0.0
    %712 = vmatprep.subr.mxu0 0.0
    %713 = vmatpush1.msra.mxu0 0.0
    %714 = vmatprep.subr.mxu0 0.0
    %715 = vmatpush1.msra.mxu0 0.0
    %716 = vmatprep.subr.mxu0 0.0
    %717 = vmatpush1.msra.mxu0 0.0
    %718 = vmatprep.subr.mxu0 0.0
    %719 = vmatpush1.msra.mxu0 0.0
    %720 = vmatprep.subr.mxu0 0.0
    %721 = vmatpush1.msra.mxu0 0.0
    %722 = vmatprep.subr.mxu0 0.0
    %723 = vmatpush1.msra.mxu0 0.0
    %724 = vmatprep.subr.mxu0 0.0
    %725 = vmatpush1.msra.mxu0 0.0
    %726 = vmatprep.subr.mxu0 0.0
    %727 = vmatpush1.msra.mxu0 0.0
    %728 = vmatprep.subr.mxu0 0.0
    %729 = vmatpush1.msra.mxu0 0.0
    %730 = vmatprep.subr.mxu0 0.0
    %731 = vmatpush1.msra.mxu0 0.0
    %732 = vmatprep.subr.mxu0 0.0
    %733 = vmatpush1.msra.mxu0 0.0
    %734 = vmatprep.subr.mxu0 0.0
    %735 = vmatpush1.msra.mxu0 0.0
    %736 = vmatprep.subr.mxu0 0.0
    %737 = vmatpush1.msra.mxu0 0.0
    %738 = vmatprep.mubr.f32.mxu0 0.0
    %739 = vmatmul.mubr.f32.gmra.mrb[0].mxu0 %v362
    %v740 = vpop.f32.mrb[0].mxu0
    %v741 = vadd.f32 %v672, %v740
    %v742 = vpop.f32.mrb[0].mxu0
    %743 = vdwg.mxu0
    %v744 = vtanh.pop %v741
    %s745 = scalar_lea.vmem [#allocation7], 512
    %v746 = vld [vmem:[%s745] sm:$0xff]
    %v747 = vld [vmem:[%s745 + $0x8] sm:$0xff]
    %v748 = vld [vmem:[%s745 + $0x10] sm:$0xff]
    %v749 = vld [vmem:[%s745 + $0x18] sm:$0xff]
    %v750 = vld [vmem:[%s745 + $0x20] sm:$0xff]
    %v751 = vld [vmem:[%s745 + $0x28] sm:$0xff]
    %v752 = vld [vmem:[%s745 + $0x30] sm:$0xff]
    %v753 = vld [vmem:[%s745 + $0x38] sm:$0xff]
    %v754 = vld [vmem:[%s745 + $0x40] sm:$0xff]
    %v755 = vld [vmem:[%s745 + $0x48] sm:$0xff]
    %v756 = vld [vmem:[%s745 + $0x50] sm:$0xff]
    %v757 = vld [vmem:[%s745 + $0x58] sm:$0xff]
    %v758 = vld [vmem:[%s745 + $0x60] sm:$0xff]
    %v759 = vld [vmem:[%s745 + $0x68] sm:$0xff]
    %v760 = vld [vmem:[%s745 + $0x70] sm:$0xff]
    %v761 = vld [vmem:[%s745 + $0x78] sm:$0xff]
    %s762 = scalar_lea.vmem [#allocation8], 4
    %v763 = vld [vmem:[%s762] sm:$0x1]
    %v765 = vlaneseq
    %v766 = vshrl.u32 %v765, 7
    %v767 = vsub.s32 0, %v766
    %v768 = vrot.slane %v763, %v767
    %770 = vmatprep.subr.mxu0 0.0
    %771 = vmatpush1.msra.mxu0 %v746
    %772 = vmatprep.subr.mxu0 0.0
    %773 = vmatpush1.msra.mxu0 %v747
    %774 = vmatprep.subr.mxu0 0.0
    %775 = vmatpush1.msra.mxu0 %v748
    %776 = vmatprep.subr.mxu0 0.0
    %777 = vmatpush1.msra.mxu0 %v749
    %778 = vmatprep.subr.mxu0 0.0
    %779 = vmatpush1.msra.mxu0 %v750
    %780 = vmatprep.subr.mxu0 0.0
    %781 = vmatpush1.msra.mxu0 %v751
    %782 = vmatprep.subr.mxu0 0.0
    %783 = vmatpush1.msra.mxu0 %v752
    %784 = vmatprep.subr.mxu0 0.0
    %785 = vmatpush1.msra.mxu0 %v753
    %786 = vmatprep.subr.mxu0 0.0
    %787 = vmatpush1.msra.mxu0 %v754
    %788 = vmatprep.subr.mxu0 0.0
    %789 = vmatpush1.msra.mxu0 %v755
    %790 = vmatprep.subr.mxu0 0.0
    %791 = vmatpush1.msra.mxu0 %v756
    %792 = vmatprep.subr.mxu0 0.0
    %793 = vmatpush1.msra.mxu0 %v757
    %794 = vmatprep.subr.mxu0 0.0
    %795 = vmatpush1.msra.mxu0 %v758
    %796 = vmatprep.subr.mxu0 0.0
    %797 = vmatpush1.msra.mxu0 %v759
    %798 = vmatprep.subr.mxu0 0.0
    %799 = vmatpush1.msra.mxu0 %v760
    %800 = vmatprep.subr.mxu0 0.0
    %801 = vmatpush1.msra.mxu0 %v761
    %802 = vmatprep.subr.mxu0 0.0
    %803 = vmatpush1.msra.mxu0 0.0
    %804 = vmatprep.subr.mxu0 0.0
    %805 = vmatpush1.msra.mxu0 0.0
    %806 = vmatprep.subr.mxu0 0.0
    %807 = vmatpush1.msra.mxu0 0.0
    %808 = vmatprep.subr.mxu0 0.0
    %809 = vmatpush1.msra.mxu0 0.0
    %810 = vmatprep.subr.mxu0 0.0
    %811 = vmatpush1.msra.mxu0 0.0
    %812 = vmatprep.subr.mxu0 0.0
    %813 = vmatpush1.msra.mxu0 0.0
    %814 = vmatprep.subr.mxu0 0.0
    %815 = vmatpush1.msra.mxu0 0.0
    %816 = vmatprep.subr.mxu0 0.0
    %817 = vmatpush1.msra.mxu0 0.0
    %818 = vmatprep.subr.mxu0 0.0
    %819 = vmatpush1.msra.mxu0 0.0
    %820 = vmatprep.subr.mxu0 0.0
    %821 = vmatpush1.msra.mxu0 0.0
    %822 = vmatprep.subr.mxu0 0.0
    %823 = vmatpush1.msra.mxu0 0.0
    %824 = vmatprep.subr.mxu0 0.0
    %825 = vmatpush1.msra.mxu0 0.0
    %826 = vmatprep.subr.mxu0 0.0
    %827 = vmatpush1.msra.mxu0 0.0
    %828 = vmatprep.subr.mxu0 0.0
    %829 = vmatpush1.msra.mxu0 0.0
    %830 = vmatprep.subr.mxu0 0.0
    %831 = vmatpush1.msra.mxu0 0.0
    %832 = vmatprep.subr.mxu0 0.0
    %833 = vmatpush1.msra.mxu0 0.0
    %834 = vmatprep.mubr.f32.mxu0 0.0
    %835 = vmatmul.mubr.f32.gmra.mrb[0].mxu0 %v744
    %v836 = vpop.f32.mrb[0].mxu0
    %v837 = vadd.f32 %v768, %v836
    %v838 = vpop.f32.mrb[0].mxu0
    %839 = vdwg.mxu0
    %v840 = vtanh.pop %v837
    %s841 = scalar_lea.vmem [#allocation7], 640
    %v842 = vld [vmem:[%s841] sm:$0xff]
    %v843 = vld [vmem:[%s841 + $0x8] sm:$0xff]
    %v844 = vld [vmem:[%s841 + $0x10] sm:$0xff]
    %v845 = vld [vmem:[%s841 + $0x18] sm:$0xff]
    %v846 = vld [vmem:[%s841 + $0x20] sm:$0xff]
    %v847 = vld [vmem:[%s841 + $0x28] sm:$0xff]
    %v848 = vld [vmem:[%s841 + $0x30] sm:$0xff]
    %v849 = vld [vmem:[%s841 + $0x38] sm:$0xff]
    %v850 = vld [vmem:[%s841 + $0x40] sm:$0xff]
    %v851 = vld [vmem:[%s841 + $0x48] sm:$0xff]
    %v852 = vld [vmem:[%s841 + $0x50] sm:$0xff]
    %v853 = vld [vmem:[%s841 + $0x58] sm:$0xff]
    %v854 = vld [vmem:[%s841 + $0x60] sm:$0xff]
    %v855 = vld [vmem:[%s841 + $0x68] sm:$0xff]
    %v856 = vld [vmem:[%s841 + $0x70] sm:$0xff]
    %v857 = vld [vmem:[%s841 + $0x78] sm:$0xff]
    %s858 = scalar_lea.vmem [#allocation8], 5
    %v859 = vld [vmem:[%s858] sm:$0x1]
    %v861 = vlaneseq
    %v862 = vshrl.u32 %v861, 7
    %v863 = vsub.s32 0, %v862
    %v864 = vrot.slane %v859, %v863
    %866 = vmatprep.subr.mxu0 0.0
    %867 = vmatpush1.msra.mxu0 %v842
    %868 = vmatprep.subr.mxu0 0.0
    %869 = vmatpush1.msra.mxu0 %v843
    %870 = vmatprep.subr.mxu0 0.0
    %871 = vmatpush1.msra.mxu0 %v844
    %872 = vmatprep.subr.mxu0 0.0
    %873 = vmatpush1.msra.mxu0 %v845
    %874 = vmatprep.subr.mxu0 0.0
    %875 = vmatpush1.msra.mxu0 %v846
    %876 = vmatprep.subr.mxu0 0.0
    %877 = vmatpush1.msra.mxu0 %v847
    %878 = vmatprep.subr.mxu0 0.0
    %879 = vmatpush1.msra.mxu0 %v848
    %880 = vmatprep.subr.mxu0 0.0
    %881 = vmatpush1.msra.mxu0 %v849
    %882 = vmatprep.subr.mxu0 0.0
    %883 = vmatpush1.msra.mxu0 %v850
    %884 = vmatprep.subr.mxu0 0.0
    %885 = vmatpush1.msra.mxu0 %v851
    %886 = vmatprep.subr.mxu0 0.0
    %887 = vmatpush1.msra.mxu0 %v852
    %888 = vmatprep.subr.mxu0 0.0
    %889 = vmatpush1.msra.mxu0 %v853
    %890 = vmatprep.subr.mxu0 0.0
    %891 = vmatpush1.msra.mxu0 %v854
    %892 = vmatprep.subr.mxu0 0.0
    %893 = vmatpush1.msra.mxu0 %v855
    %894 = vmatprep.subr.mxu0 0.0
    %895 = vmatpush1.msra.mxu0 %v856
    %896 = vmatprep.subr.mxu0 0.0
    %897 = vmatpush1.msra.mxu0 %v857
    %898 = vmatprep.subr.mxu0 0.0
    %899 = vmatpush1.msra.mxu0 0.0
    %900 = vmatprep.subr.mxu0 0.0
    %901 = vmatpush1.msra.mxu0 0.0
    %902 = vmatprep.subr.mxu0 0.0
    %903 = vmatpush1.msra.mxu0 0.0
    %904 = vmatprep.subr.mxu0 0.0
    %905 = vmatpush1.msra.mxu0 0.0
    %906 = vmatprep.subr.mxu0 0.0
    %907 = vmatpush1.msra.mxu0 0.0
    %908 = vmatprep.subr.mxu0 0.0
    %909 = vmatpush1.msra.mxu0 0.0
    %910 = vmatprep.subr.mxu0 0.0
    %911 = vmatpush1.msra.mxu0 0.0
    %912 = vmatprep.subr.mxu0 0.0
    %913 = vmatpush1.msra.mxu0 0.0
    %914 = vmatprep.subr.mxu0 0.0
    %915 = vmatpush1.msra.mxu0 0.0
    %916 = vmatprep.subr.mxu0 0.0
    %917 = vmatpush1.msra.mxu0 0.0
    %918 = vmatprep.subr.mxu0 0.0
    %919 = vmatpush1.msra.mxu0 0.0
    %920 = vmatprep.subr.mxu0 0.0
    %921 = vmatpush1.msra.mxu0 0.0
    %922 = vmatprep.subr.mxu0 0.0
    %923 = vmatpush1.msra.mxu0 0.0
    %924 = vmatprep.subr.mxu0 0.0
    %925 = vmatpush1.msra.mxu0 0.0
    %926 = vmatprep.subr.mxu0 0.0
    %927 = vmatpush1.msra.mxu0 0.0
    %928 = vmatprep.subr.mxu0 0.0
    %929 = vmatpush1.msra.mxu0 0.0
    %930 = vmatprep.mubr.f32.mxu0 0.0
    %931 = vmatmul.mubr.f32.gmra.mrb[0].mxu0 %v840
    %v932 = vpop.f32.mrb[0].mxu0
    %v933 = vadd.f32 %v864, %v932
    %v934 = vpop.f32.mrb[0].mxu0
    %935 = vdwg.mxu0
    %s936 = scalar_lea.vmem [#allocation10], 8
    %937 = vst [vmem:[%s936] sm:$0xff] %v933
    %s938 = scalar_lea.vmem [#allocation7], 768
    %v939 = vld [vmem:[%s938] sm:$0xff]
    %v940 = vld [vmem:[%s938 + $0x8] sm:$0xff]
    %v941 = vld [vmem:[%s938 + $0x10] sm:$0xff]
    %v942 = vld [vmem:[%s938 + $0x18] sm:$0xff]
    %v943 = vld [vmem:[%s938 + $0x20] sm:$0xff]
    %v944 = vld [vmem:[%s938 + $0x28] sm:$0xff]
    %v945 = vld [vmem:[%s938 + $0x30] sm:$0xff]
    %v946 = vld [vmem:[%s938 + $0x38] sm:$0xff]
    %v947 = vld [vmem:[%s938 + $0x40] sm:$0xff]
    %v948 = vld [vmem:[%s938 + $0x48] sm:$0xff]
    %v949 = vld [vmem:[%s938 + $0x50] sm:$0xff]
    %v950 = vld [vmem:[%s938 + $0x58] sm:$0xff]
    %v951 = vld [vmem:[%s938 + $0x60] sm:$0xff]
    %v952 = vld [vmem:[%s938 + $0x68] sm:$0xff]
    %v953 = vld [vmem:[%s938 + $0x70] sm:$0xff]
    %v954 = vld [vmem:[%s938 + $0x78] sm:$0xff]
    %s955 = scalar_lea.vmem [#allocation8], 6
    %v956 = vld [vmem:[%s955] sm:$0x1]
    %v958 = vlaneseq
    %v959 = vshrl.u32 %v958, 7
    %v960 = vsub.s32 0, %v959
    %v961 = vrot.slane %v956, %v960
    %963 = vmatprep.subr.mxu0 0.0
    %964 = vmatpush1.msra.mxu0 %v939
    %965 = vmatprep.subr.mxu0 0.0
    %966 = vmatpush1.msra.mxu0 %v940
    %967 = vmatprep.subr.mxu0 0.0
    %968 = vmatpush1.msra.mxu0 %v941
    %969 = vmatprep.subr.mxu0 0.0
    %970 = vmatpush1.msra.mxu0 %v942
    %971 = vmatprep.subr.mxu0 0.0
    %972 = vmatpush1.msra.mxu0 %v943
    %973 = vmatprep.subr.mxu0 0.0
    %974 = vmatpush1.msra.mxu0 %v944
    %975 = vmatprep.subr.mxu0 0.0
    %976 = vmatpush1.msra.mxu0 %v945
    %977 = vmatprep.subr.mxu0 0.0
    %978 = vmatpush1.msra.mxu0 %v946
    %979 = vmatprep.subr.mxu0 0.0
    %980 = vmatpush1.msra.mxu0 %v947
    %981 = vmatprep.subr.mxu0 0.0
    %982 = vmatpush1.msra.mxu0 %v948
    %983 = vmatprep.subr.mxu0 0.0
    %984 = vmatpush1.msra.mxu0 %v949
    %985 = vmatprep.subr.mxu0 0.0
    %986 = vmatpush1.msra.mxu0 %v950
    %987 = vmatprep.subr.mxu0 0.0
    %988 = vmatpush1.msra.mxu0 %v951
    %989 = vmatprep.subr.mxu0 0.0
    %990 = vmatpush1.msra.mxu0 %v952
    %991 = vmatprep.subr.mxu0 0.0
    %992 = vmatpush1.msra.mxu0 %v953
    %993 = vmatprep.subr.mxu0 0.0
    %994 = vmatpush1.msra.mxu0 %v954
    %995 = vmatprep.subr.mxu0 0.0
    %996 = vmatpush1.msra.mxu0 0.0
    %997 = vmatprep.subr.mxu0 0.0
    %998 = vmatpush1.msra.mxu0 0.0
    %999 = vmatprep.subr.mxu0 0.0
    %1000 = vmatpush1.msra.mxu0 0.0
    %1001 = vmatprep.subr.mxu0 0.0
    %1002 = vmatpush1.msra.mxu0 0.0
    %1003 = vmatprep.subr.mxu0 0.0
    %1004 = vmatpush1.msra.mxu0 0.0
    %1005 = vmatprep.subr.mxu0 0.0
    %1006 = vmatpush1.msra.mxu0 0.0
    %1007 = vmatprep.subr.mxu0 0.0
    %1008 = vmatpush1.msra.mxu0 0.0
    %1009 = vmatprep.subr.mxu0 0.0
    %1010 = vmatpush1.msra.mxu0 0.0
    %1011 = vmatprep.subr.mxu0 0.0
    %1012 = vmatpush1.msra.mxu0 0.0
    %1013 = vmatprep.subr.mxu0 0.0
    %1014 = vmatpush1.msra.mxu0 0.0
    %1015 = vmatprep.subr.mxu0 0.0
    %1016 = vmatpush1.msra.mxu0 0.0
    %1017 = vmatprep.subr.mxu0 0.0
    %1018 = vmatpush1.msra.mxu0 0.0
    %1019 = vmatprep.subr.mxu0 0.0
    %1020 = vmatpush1.msra.mxu0 0.0
    %1021 = vmatprep.subr.mxu0 0.0
    %1022 = vmatpush1.msra.mxu0 0.0
    %1023 = vmatprep.subr.mxu0 0.0
    %1024 = vmatpush1.msra.mxu0 0.0
    %1025 = vmatprep.subr.mxu0 0.0
    %1026 = vmatpush1.msra.mxu0 0.0
    %1027 = vmatprep.mubr.f32.mxu0 0.0
    %1028 = vmatmul.mubr.f32.gmra.mrb[0].mxu0 %v362
    %v1029 = vpop.f32.mrb[0].mxu0
    %v1030 = vadd.f32 %v961, %v1029
    %v1031 = vpop.f32.mrb[0].mxu0
    %1032 = vdwg.mxu0
    %v1033 = vtanh.pop %v1030
    %s1034 = scalar_lea.vmem [#allocation7], 896
    %v1035 = vld [vmem:[%s1034] sm:$0xff]
    %v1036 = vld [vmem:[%s1034 + $0x8] sm:$0xff]
    %v1037 = vld [vmem:[%s1034 + $0x10] sm:$0xff]
    %v1038 = vld [vmem:[%s1034 + $0x18] sm:$0xff]
    %v1039 = vld [vmem:[%s1034 + $0x20] sm:$0xff]
    %v1040 = vld [vmem:[%s1034 + $0x28] sm:$0xff]
    %v1041 = vld [vmem:[%s1034 + $0x30] sm:$0xff]
    %v1042 = vld [vmem:[%s1034 + $0x38] sm:$0xff]
    %v1043 = vld [vmem:[%s1034 + $0x40] sm:$0xff]
    %v1044 = vld [vmem:[%s1034 + $0x48] sm:$0xff]
    %v1045 = vld [vmem:[%s1034 + $0x50] sm:$0xff]
    %v1046 = vld [vmem:[%s1034 + $0x58] sm:$0xff]
    %v1047 = vld [vmem:[%s1034 + $0x60] sm:$0xff]
    %v1048 = vld [vmem:[%s1034 + $0x68] sm:$0xff]
    %v1049 = vld [vmem:[%s1034 + $0x70] sm:$0xff]
    %v1050 = vld [vmem:[%s1034 + $0x78] sm:$0xff]
    %s1051 = scalar_lea.vmem [#allocation8], 7
    %v1052 = vld [vmem:[%s1051] sm:$0x1]
    %v1054 = vlaneseq
    %v1055 = vshrl.u32 %v1054, 7
    %v1056 = vsub.s32 0, %v1055
    %v1057 = vrot.slane %v1052, %v1056
    %1059 = vmatprep.subr.mxu0 0.0
    %1060 = vmatpush1.msra.mxu0 %v1035
    %1061 = vmatprep.subr.mxu0 0.0
    %1062 = vmatpush1.msra.mxu0 %v1036
    %1063 = vmatprep.subr.mxu0 0.0
    %1064 = vmatpush1.msra.mxu0 %v1037
    %1065 = vmatprep.subr.mxu0 0.0
    %1066 = vmatpush1.msra.mxu0 %v1038
    %1067 = vmatprep.subr.mxu0 0.0
    %1068 = vmatpush1.msra.mxu0 %v1039
    %1069 = vmatprep.subr.mxu0 0.0
    %1070 = vmatpush1.msra.mxu0 %v1040
    %1071 = vmatprep.subr.mxu0 0.0
    %1072 = vmatpush1.msra.mxu0 %v1041
    %1073 = vmatprep.subr.mxu0 0.0
    %1074 = vmatpush1.msra.mxu0 %v1042
    %1075 = vmatprep.subr.mxu0 0.0
    %1076 = vmatpush1.msra.mxu0 %v1043
    %1077 = vmatprep.subr.mxu0 0.0
    %1078 = vmatpush1.msra.mxu0 %v1044
    %1079 = vmatprep.subr.mxu0 0.0
    %1080 = vmatpush1.msra.mxu0 %v1045
    %1081 = vmatprep.subr.mxu0 0.0
    %1082 = vmatpush1.msra.mxu0 %v1046
    %1083 = vmatprep.subr.mxu0 0.0
    %1084 = vmatpush1.msra.mxu0 %v1047
    %1085 = vmatprep.subr.mxu0 0.0
    %1086 = vmatpush1.msra.mxu0 %v1048
    %1087 = vmatprep.subr.mxu0 0.0
    %1088 = vmatpush1.msra.mxu0 %v1049
    %1089 = vmatprep.subr.mxu0 0.0
    %1090 = vmatpush1.msra.mxu0 %v1050
    %1091 = vmatprep.subr.mxu0 0.0
    %1092 = vmatpush1.msra.mxu0 0.0
    %1093 = vmatprep.subr.mxu0 0.0
    %1094 = vmatpush1.msra.mxu0 0.0
    %1095 = vmatprep.subr.mxu0 0.0
    %1096 = vmatpush1.msra.mxu0 0.0
    %1097 = vmatprep.subr.mxu0 0.0
    %1098 = vmatpush1.msra.mxu0 0.0
    %1099 = vmatprep.subr.mxu0 0.0
    %1100 = vmatpush1.msra.mxu0 0.0
    %1101 = vmatprep.subr.mxu0 0.0
    %1102 = vmatpush1.msra.mxu0 0.0
    %1103 = vmatprep.subr.mxu0 0.0
    %1104 = vmatpush1.msra.mxu0 0.0
    %1105 = vmatprep.subr.mxu0 0.0
    %1106 = vmatpush1.msra.mxu0 0.0
    %1107 = vmatprep.subr.mxu0 0.0
    %1108 = vmatpush1.msra.mxu0 0.0
    %1109 = vmatprep.subr.mxu0 0.0
    %1110 = vmatpush1.msra.mxu0 0.0
    %1111 = vmatprep.subr.mxu0 0.0
    %1112 = vmatpush1.msra.mxu0 0.0
    %1113 = vmatprep.subr.mxu0 0.0
    %1114 = vmatpush1.msra.mxu0 0.0
    %1115 = vmatprep.subr.mxu0 0.0
    %1116 = vmatpush1.msra.mxu0 0.0
    %1117 = vmatprep.subr.mxu0 0.0
    %1118 = vmatpush1.msra.mxu0 0.0
    %1119 = vmatprep.subr.mxu0 0.0
    %1120 = vmatpush1.msra.mxu0 0.0
    %1121 = vmatprep.subr.mxu0 0.0
    %1122 = vmatpush1.msra.mxu0 0.0
    %1123 = vmatprep.mubr.f32.mxu0 0.0
    %1124 = vmatmul.mubr.f32.gmra.mrb[0].mxu0 %v1033
    %v1125 = vpop.f32.mrb[0].mxu0
    %v1126 = vadd.f32 %v1057, %v1125
    %v1127 = vpop.f32.mrb[0].mxu0
    %1128 = vdwg.mxu0
    %v1129 = vtanh.pop %v1126
    %s1130 = scalar_lea.vmem [#allocation7], 1024
    %v1131 = vld [vmem:[%s1130] sm:$0xff]
    %v1132 = vld [vmem:[%s1130 + $0x8] sm:$0xff]
    %v1133 = vld [vmem:[%s1130 + $0x10] sm:$0xff]
    %v1134 = vld [vmem:[%s1130 + $0x18] sm:$0xff]
    %v1135 = vld [vmem:[%s1130 + $0x20] sm:$0xff]
    %v1136 = vld [vmem:[%s1130 + $0x28] sm:$0xff]
    %v1137 = vld [vmem:[%s1130 + $0x30] sm:$0xff]
    %v1138 = vld [vmem:[%s1130 + $0x38] sm:$0xff]
    %v1139 = vld [vmem:[%s1130 + $0x40] sm:$0xff]
    %v1140 = vld [vmem:[%s1130 + $0x48] sm:$0xff]
    %v1141 = vld [vmem:[%s1130 + $0x50] sm:$0xff]
    %v1142 = vld [vmem:[%s1130 + $0x58] sm:$0xff]
    %v1143 = vld [vmem:[%s1130 + $0x60] sm:$0xff]
    %v1144 = vld [vmem:[%s1130 + $0x68] sm:$0xff]
    %v1145 = vld [vmem:[%s1130 + $0x70] sm:$0xff]
    %v1146 = vld [vmem:[%s1130 + $0x78] sm:$0xff]
    %s1147 = scalar_lea.vmem [#allocation8], 8
    %v1148 = vld [vmem:[%s1147] sm:$0x1]
    %v1150 = vlaneseq
    %v1151 = vshrl.u32 %v1150, 7
    %v1152 = vsub.s32 0, %v1151
    %v1153 = vrot.slane %v1148, %v1152
    %1155 = vmatprep.subr.mxu0 0.0
    %1156 = vmatpush1.msra.mxu0 %v1131
    %1157 = vmatprep.subr.mxu0 0.0
    %1158 = vmatpush1.msra.mxu0 %v1132
    %1159 = vmatprep.subr.mxu0 0.0
    %1160 = vmatpush1.msra.mxu0 %v1133
    %1161 = vmatprep.subr.mxu0 0.0
    %1162 = vmatpush1.msra.mxu0 %v1134
    %1163 = vmatprep.subr.mxu0 0.0
    %1164 = vmatpush1.msra.mxu0 %v1135
    %1165 = vmatprep.subr.mxu0 0.0
    %1166 = vmatpush1.msra.mxu0 %v1136
    %1167 = vmatprep.subr.mxu0 0.0
    %1168 = vmatpush1.msra.mxu0 %v1137
    %1169 = vmatprep.subr.mxu0 0.0
    %1170 = vmatpush1.msra.mxu0 %v1138
    %1171 = vmatprep.subr.mxu0 0.0
    %1172 = vmatpush1.msra.mxu0 %v1139
    %1173 = vmatprep.subr.mxu0 0.0
    %1174 = vmatpush1.msra.mxu0 %v1140
    %1175 = vmatprep.subr.mxu0 0.0
    %1176 = vmatpush1.msra.mxu0 %v1141
    %1177 = vmatprep.subr.mxu0 0.0
    %1178 = vmatpush1.msra.mxu0 %v1142
    %1179 = vmatprep.subr.mxu0 0.0
    %1180 = vmatpush1.msra.mxu0 %v1143
    %1181 = vmatprep.subr.mxu0 0.0
    %1182 = vmatpush1.msra.mxu0 %v1144
    %1183 = vmatprep.subr.mxu0 0.0
    %1184 = vmatpush1.msra.mxu0 %v1145
    %1185 = vmatprep.subr.mxu0 0.0
    %1186 = vmatpush1.msra.mxu0 %v1146
    %1187 = vmatprep.subr.mxu0 0.0
    %1188 = vmatpush1.msra.mxu0 0.0
    %1189 = vmatprep.subr.mxu0 0.0
    %1190 = vmatpush1.msra.mxu0 0.0
    %1191 = vmatprep.subr.mxu0 0.0
    %1192 = vmatpush1.msra.mxu0 0.0
    %1193 = vmatprep.subr.mxu0 0.0
    %1194 = vmatpush1.msra.mxu0 0.0
    %1195 = vmatprep.subr.mxu0 0.0
    %1196 = vmatpush1.msra.mxu0 0.0
    %1197 = vmatprep.subr.mxu0 0.0
    %1198 = vmatpush1.msra.mxu0 0.0
    %1199 = vmatprep.subr.mxu0 0.0
    %1200 = vmatpush1.msra.mxu0 0.0
    %1201 = vmatprep.subr.mxu0 0.0
    %1202 = vmatpush1.msra.mxu0 0.0
    %1203 = vmatprep.subr.mxu0 0.0
    %1204 = vmatpush1.msra.mxu0 0.0
    %1205 = vmatprep.subr.mxu0 0.0
    %1206 = vmatpush1.msra.mxu0 0.0
    %1207 = vmatprep.subr.mxu0 0.0
    %1208 = vmatpush1.msra.mxu0 0.0
    %1209 = vmatprep.subr.mxu0 0.0
    %1210 = vmatpush1.msra.mxu0 0.0
    %1211 = vmatprep.subr.mxu0 0.0
    %1212 = vmatpush1.msra.mxu0 0.0
    %1213 = vmatprep.subr.mxu0 0.0
    %1214 = vmatpush1.msra.mxu0 0.0
    %1215 = vmatprep.subr.mxu0 0.0
    %1216 = vmatpush1.msra.mxu0 0.0
    %1217 = vmatprep.subr.mxu0 0.0
    %1218 = vmatpush1.msra.mxu0 0.0
    %1219 = vmatprep.mubr.f32.mxu0 0.0
    %1220 = vmatmul.mubr.f32.gmra.mrb[0].mxu0 %v1129
    %v1221 = vpop.f32.mrb[0].mxu0
    %v1222 = vadd.f32 %v1153, %v1221
    %v1223 = vpop.f32.mrb[0].mxu0
    %1224 = vdwg.mxu0
    %s1225 = scalar_lea.vmem [#allocation10], 16
    %1226 = vst [vmem:[%s1225] sm:$0xff] %v1222
    %s1227 = scalar_lea.vmem [#allocation7], 1152
    %v1228 = vld [vmem:[%s1227] sm:$0xff]
    %v1229 = vld [vmem:[%s1227 + $0x8] sm:$0xff]
    %v1230 = vld [vmem:[%s1227 + $0x10] sm:$0xff]
    %v1231 = vld [vmem:[%s1227 + $0x18] sm:$0xff]
    %v1232 = vld [vmem:[%s1227 + $0x20] sm:$0xff]
    %v1233 = vld [vmem:[%s1227 + $0x28] sm:$0xff]
    %v1234 = vld [vmem:[%s1227 + $0x30] sm:$0xff]
    %v1235 = vld [vmem:[%s1227 + $0x38] sm:$0xff]
    %v1236 = vld [vmem:[%s1227 + $0x40] sm:$0xff]
    %v1237 = vld [vmem:[%s1227 + $0x48] sm:$0xff]
    %v1238 = vld [vmem:[%s1227 + $0x50] sm:$0xff]
    %v1239 = vld [vmem:[%s1227 + $0x58] sm:$0xff]
    %v1240 = vld [vmem:[%s1227 + $0x60] sm:$0xff]
    %v1241 = vld [vmem:[%s1227 + $0x68] sm:$0xff]
    %v1242 = vld [vmem:[%s1227 + $0x70] sm:$0xff]
    %v1243 = vld [vmem:[%s1227 + $0x78] sm:$0xff]
    %s1244 = scalar_lea.vmem [#allocation8], 9
    %v1245 = vld [vmem:[%s1244] sm:$0x1]
    %v1247 = vlaneseq
    %v1248 = vshrl.u32 %v1247, 7
    %v1249 = vsub.s32 0, %v1248
    %v1250 = vrot.slane %v1245, %v1249
    %1252 = vmatprep.subr.mxu0 0.0
    %1253 = vmatpush1.msra.mxu0 %v1228
    %1254 = vmatprep.subr.mxu0 0.0
    %1255 = vmatpush1.msra.mxu0 %v1229
    %1256 = vmatprep.subr.mxu0 0.0
    %1257 = vmatpush1.msra.mxu0 %v1230
    %1258 = vmatprep.subr.mxu0 0.0
    %1259 = vmatpush1.msra.mxu0 %v1231
    %1260 = vmatprep.subr.mxu0 0.0
    %1261 = vmatpush1.msra.mxu0 %v1232
    %1262 = vmatprep.subr.mxu0 0.0
    %1263 = vmatpush1.msra.mxu0 %v1233
    %1264 = vmatprep.subr.mxu0 0.0
    %1265 = vmatpush1.msra.mxu0 %v1234
    %1266 = vmatprep.subr.mxu0 0.0
    %1267 = vmatpush1.msra.mxu0 %v1235
    %1268 = vmatprep.subr.mxu0 0.0
    %1269 = vmatpush1.msra.mxu0 %v1236
    %1270 = vmatprep.subr.mxu0 0.0
    %1271 = vmatpush1.msra.mxu0 %v1237
    %1272 = vmatprep.subr.mxu0 0.0
    %1273 = vmatpush1.msra.mxu0 %v1238
    %1274 = vmatprep.subr.mxu0 0.0
    %1275 = vmatpush1.msra.mxu0 %v1239
    %1276 = vmatprep.subr.mxu0 0.0
    %1277 = vmatpush1.msra.mxu0 %v1240
    %1278 = vmatprep.subr.mxu0 0.0
    %1279 = vmatpush1.msra.mxu0 %v1241
    %1280 = vmatprep.subr.mxu0 0.0
    %1281 = vmatpush1.msra.mxu0 %v1242
    %1282 = vmatprep.subr.mxu0 0.0
    %1283 = vmatpush1.msra.mxu0 %v1243
    %1284 = vmatprep.subr.mxu0 0.0
    %1285 = vmatpush1.msra.mxu0 0.0
    %1286 = vmatprep.subr.mxu0 0.0
    %1287 = vmatpush1.msra.mxu0 0.0
    %1288 = vmatprep.subr.mxu0 0.0
    %1289 = vmatpush1.msra.mxu0 0.0
    %1290 = vmatprep.subr.mxu0 0.0
    %1291 = vmatpush1.msra.mxu0 0.0
    %1292 = vmatprep.subr.mxu0 0.0
    %1293 = vmatpush1.msra.mxu0 0.0
    %1294 = vmatprep.subr.mxu0 0.0
    %1295 = vmatpush1.msra.mxu0 0.0
    %1296 = vmatprep.subr.mxu0 0.0
    %1297 = vmatpush1.msra.mxu0 0.0
    %1298 = vmatprep.subr.mxu0 0.0
    %1299 = vmatpush1.msra.mxu0 0.0
    %1300 = vmatprep.subr.mxu0 0.0
    %1301 = vmatpush1.msra.mxu0 0.0
    %1302 = vmatprep.subr.mxu0 0.0
    %1303 = vmatpush1.msra.mxu0 0.0
    %1304 = vmatprep.subr.mxu0 0.0
    %1305 = vmatpush1.msra.mxu0 0.0
    %1306 = vmatprep.subr.mxu0 0.0
    %1307 = vmatpush1.msra.mxu0 0.0
    %1308 = vmatprep.subr.mxu0 0.0
    %1309 = vmatpush1.msra.mxu0 0.0
    %1310 = vmatprep.subr.mxu0 0.0
    %1311 = vmatpush1.msra.mxu0 0.0
    %1312 = vmatprep.subr.mxu0 0.0
    %1313 = vmatpush1.msra.mxu0 0.0
    %1314 = vmatprep.subr.mxu0 0.0
    %1315 = vmatpush1.msra.mxu0 0.0
    %1316 = vmatprep.mubr.f32.mxu0 0.0
    %1317 = vmatmul.mubr.f32.gmra.mrb[0].mxu0 %v362
    %v1318 = vpop.f32.mrb[0].mxu0
    %v1319 = vadd.f32 %v1250, %v1318
    %v1320 = vpop.f32.mrb[0].mxu0
    %1321 = vdwg.mxu0
    %v1322 = vtanh.pop %v1319
    %s1323 = scalar_lea.vmem [#allocation7], 1280
    %v1324 = vld [vmem:[%s1323] sm:$0xff]
    %v1325 = vld [vmem:[%s1323 + $0x8] sm:$0xff]
    %v1326 = vld [vmem:[%s1323 + $0x10] sm:$0xff]
    %v1327 = vld [vmem:[%s1323 + $0x18] sm:$0xff]
    %v1328 = vld [vmem:[%s1323 + $0x20] sm:$0xff]
    %v1329 = vld [vmem:[%s1323 + $0x28] sm:$0xff]
    %v1330 = vld [vmem:[%s1323 + $0x30] sm:$0xff]
    %v1331 = vld [vmem:[%s1323 + $0x38] sm:$0xff]
    %v1332 = vld [vmem:[%s1323 + $0x40] sm:$0xff]
    %v1333 = vld [vmem:[%s1323 + $0x48] sm:$0xff]
    %v1334 = vld [vmem:[%s1323 + $0x50] sm:$0xff]
    %v1335 = vld [vmem:[%s1323 + $0x58] sm:$0xff]
    %v1336 = vld [vmem:[%s1323 + $0x60] sm:$0xff]
    %v1337 = vld [vmem:[%s1323 + $0x68] sm:$0xff]
    %v1338 = vld [vmem:[%s1323 + $0x70] sm:$0xff]
    %v1339 = vld [vmem:[%s1323 + $0x78] sm:$0xff]
    %s1340 = scalar_lea.vmem [#allocation8], 10
    %v1341 = vld [vmem:[%s1340] sm:$0x1]
    %v1343 = vlaneseq
    %v1344 = vshrl.u32 %v1343, 7
    %v1345 = vsub.s32 0, %v1344
    %v1346 = vrot.slane %v1341, %v1345
    %1348 = vmatprep.subr.mxu0 0.0
    %1349 = vmatpush1.msra.mxu0 %v1324
    %1350 = vmatprep.subr.mxu0 0.0
    %1351 = vmatpush1.msra.mxu0 %v1325
    %1352 = vmatprep.subr.mxu0 0.0
    %1353 = vmatpush1.msra.mxu0 %v1326
    %1354 = vmatprep.subr.mxu0 0.0
    %1355 = vmatpush1.msra.mxu0 %v1327
    %1356 = vmatprep.subr.mxu0 0.0
    %1357 = vmatpush1.msra.mxu0 %v1328
    %1358 = vmatprep.subr.mxu0 0.0
    %1359 = vmatpush1.msra.mxu0 %v1329
    %1360 = vmatprep.subr.mxu0 0.0
    %1361 = vmatpush1.msra.mxu0 %v1330
    %1362 = vmatprep.subr.mxu0 0.0
    %1363 = vmatpush1.msra.mxu0 %v1331
    %1364 = vmatprep.subr.mxu0 0.0
    %1365 = vmatpush1.msra.mxu0 %v1332
    %1366 = vmatprep.subr.mxu0 0.0
    %1367 = vmatpush1.msra.mxu0 %v1333
    %1368 = vmatprep.subr.mxu0 0.0
    %1369 = vmatpush1.msra.mxu0 %v1334
    %1370 = vmatprep.subr.mxu0 0.0
    %1371 = vmatpush1.msra.mxu0 %v1335
    %1372 = vmatprep.subr.mxu0 0.0
    %1373 = vmatpush1.msra.mxu0 %v1336
    %1374 = vmatprep.subr.mxu0 0.0
    %1375 = vmatpush1.msra.mxu0 %v1337
    %1376 = vmatprep.subr.mxu0 0.0
    %1377 = vmatpush1.msra.mxu0 %v1338
    %1378 = vmatprep.subr.mxu0 0.0
    %1379 = vmatpush1.msra.mxu0 %v1339
    %1380 = vmatprep.subr.mxu0 0.0
    %1381 = vmatpush1.msra.mxu0 0.0
    %1382 = vmatprep.subr.mxu0 0.0
    %1383 = vmatpush1.msra.mxu0 0.0
    %1384 = vmatprep.subr.mxu0 0.0
    %1385 = vmatpush1.msra.mxu0 0.0
    %1386 = vmatprep.subr.mxu0 0.0
    %1387 = vmatpush1.msra.mxu0 0.0
    %1388 = vmatprep.subr.mxu0 0.0
    %1389 = vmatpush1.msra.mxu0 0.0
    %1390 = vmatprep.subr.mxu0 0.0
    %1391 = vmatpush1.msra.mxu0 0.0
    %1392 = vmatprep.subr.mxu0 0.0
    %1393 = vmatpush1.msra.mxu0 0.0
    %1394 = vmatprep.subr.mxu0 0.0
    %1395 = vmatpush1.msra.mxu0 0.0
    %1396 = vmatprep.subr.mxu0 0.0
    %1397 = vmatpush1.msra.mxu0 0.0
    %1398 = vmatprep.subr.mxu0 0.0
    %1399 = vmatpush1.msra.mxu0 0.0
    %1400 = vmatprep.subr.mxu0 0.0
    %1401 = vmatpush1.msra.mxu0 0.0
    %1402 = vmatprep.subr.mxu0 0.0
    %1403 = vmatpush1.msra.mxu0 0.0
    %1404 = vmatprep.subr.mxu0 0.0
    %1405 = vmatpush1.msra.mxu0 0.0
    %1406 = vmatprep.subr.mxu0 0.0
    %1407 = vmatpush1.msra.mxu0 0.0
    %1408 = vmatprep.subr.mxu0 0.0
    %1409 = vmatpush1.msra.mxu0 0.0
    %1410 = vmatprep.subr.mxu0 0.0
    %1411 = vmatpush1.msra.mxu0 0.0
    %1412 = vmatprep.mubr.f32.mxu0 0.0
    %1413 = vmatmul.mubr.f32.gmra.mrb[0].mxu0 %v1322
    %v1414 = vpop.f32.mrb[0].mxu0
    %v1415 = vadd.f32 %v1346, %v1414
    %v1416 = vpop.f32.mrb[0].mxu0
    %1417 = vdwg.mxu0
    %v1418 = vtanh.pop %v1415
    %s1419 = scalar_lea.vmem [#allocation7], 1408
    %v1420 = vld [vmem:[%s1419] sm:$0xff]
    %v1421 = vld [vmem:[%s1419 + $0x8] sm:$0xff]
    %v1422 = vld [vmem:[%s1419 + $0x10] sm:$0xff]
    %v1423 = vld [vmem:[%s1419 + $0x18] sm:$0xff]
    %v1424 = vld [vmem:[%s1419 + $0x20] sm:$0xff]
    %v1425 = vld [vmem:[%s1419 + $0x28] sm:$0xff]
    %v1426 = vld [vmem:[%s1419 + $0x30] sm:$0xff]
    %v1427 = vld [vmem:[%s1419 + $0x38] sm:$0xff]
    %v1428 = vld [vmem:[%s1419 + $0x40] sm:$0xff]
    %v1429 = vld [vmem:[%s1419 + $0x48] sm:$0xff]
    %v1430 = vld [vmem:[%s1419 + $0x50] sm:$0xff]
    %v1431 = vld [vmem:[%s1419 + $0x58] sm:$0xff]
    %v1432 = vld [vmem:[%s1419 + $0x60] sm:$0xff]
    %v1433 = vld [vmem:[%s1419 + $0x68] sm:$0xff]
    %v1434 = vld [vmem:[%s1419 + $0x70] sm:$0xff]
    %v1435 = vld [vmem:[%s1419 + $0x78] sm:$0xff]
    %s1436 = scalar_lea.vmem [#allocation8], 11
    %v1437 = vld [vmem:[%s1436] sm:$0x1]
    %v1439 = vlaneseq
    %v1440 = vshrl.u32 %v1439, 7
    %v1441 = vsub.s32 0, %v1440
    %v1442 = vrot.slane %v1437, %v1441
    %1444 = vmatprep.subr.mxu0 0.0
    %1445 = vmatpush1.msra.mxu0 %v1420
    %1446 = vmatprep.subr.mxu0 0.0
    %1447 = vmatpush1.msra.mxu0 %v1421
    %1448 = vmatprep.subr.mxu0 0.0
    %1449 = vmatpush1.msra.mxu0 %v1422
    %1450 = vmatprep.subr.mxu0 0.0
    %1451 = vmatpush1.msra.mxu0 %v1423
    %1452 = vmatprep.subr.mxu0 0.0
    %1453 = vmatpush1.msra.mxu0 %v1424
    %1454 = vmatprep.subr.mxu0 0.0
    %1455 = vmatpush1.msra.mxu0 %v1425
    %1456 = vmatprep.subr.mxu0 0.0
    %1457 = vmatpush1.msra.mxu0 %v1426
    %1458 = vmatprep.subr.mxu0 0.0
    %1459 = vmatpush1.msra.mxu0 %v1427
    %1460 = vmatprep.subr.mxu0 0.0
    %1461 = vmatpush1.msra.mxu0 %v1428
    %1462 = vmatprep.subr.mxu0 0.0
    %1463 = vmatpush1.msra.mxu0 %v1429
    %1464 = vmatprep.subr.mxu0 0.0
    %1465 = vmatpush1.msra.mxu0 %v1430
    %1466 = vmatprep.subr.mxu0 0.0
    %1467 = vmatpush1.msra.mxu0 %v1431
    %1468 = vmatprep.subr.mxu0 0.0
    %1469 = vmatpush1.msra.mxu0 %v1432
    %1470 = vmatprep.subr.mxu0 0.0
    %1471 = vmatpush1.msra.mxu0 %v1433
    %1472 = vmatprep.subr.mxu0 0.0
    %1473 = vmatpush1.msra.mxu0 %v1434
    %1474 = vmatprep.subr.mxu0 0.0
    %1475 = vmatpush1.msra.mxu0 %v1435
    %1476 = vmatprep.subr.mxu0 0.0
    %1477 = vmatpush1.msra.mxu0 0.0
    %1478 = vmatprep.subr.mxu0 0.0
    %1479 = vmatpush1.msra.mxu0 0.0
    %1480 = vmatprep.subr.mxu0 0.0
    %1481 = vmatpush1.msra.mxu0 0.0
    %1482 = vmatprep.subr.mxu0 0.0
    %1483 = vmatpush1.msra.mxu0 0.0
    %1484 = vmatprep.subr.mxu0 0.0
    %1485 = vmatpush1.msra.mxu0 0.0
    %1486 = vmatprep.subr.mxu0 0.0
    %1487 = vmatpush1.msra.mxu0 0.0
    %1488 = vmatprep.subr.mxu0 0.0
    %1489 = vmatpush1.msra.mxu0 0.0
    %1490 = vmatprep.subr.mxu0 0.0
    %1491 = vmatpush1.msra.mxu0 0.0
    %1492 = vmatprep.subr.mxu0 0.0
    %1493 = vmatpush1.msra.mxu0 0.0
    %1494 = vmatprep.subr.mxu0 0.0
    %1495 = vmatpush1.msra.mxu0 0.0
    %1496 = vmatprep.subr.mxu0 0.0
    %1497 = vmatpush1.msra.mxu0 0.0
    %1498 = vmatprep.subr.mxu0 0.0
    %1499 = vmatpush1.msra.mxu0 0.0
    %1500 = vmatprep.subr.mxu0 0.0
    %1501 = vmatpush1.msra.mxu0 0.0
    %1502 = vmatprep.subr.mxu0 0.0
    %1503 = vmatpush1.msra.mxu0 0.0
    %1504 = vmatprep.subr.mxu0 0.0
    %1505 = vmatpush1.msra.mxu0 0.0
    %1506 = vmatprep.subr.mxu0 0.0
    %1507 = vmatpush1.msra.mxu0 0.0
    %1508 = vmatprep.mubr.f32.mxu0 0.0
    %1509 = vmatmul.mubr.f32.gmra.mrb[0].mxu0 %v1418
    %v1510 = vpop.f32.mrb[0].mxu0
    %v1511 = vadd.f32 %v1442, %v1510
    %v1512 = vpop.f32.mrb[0].mxu0
    %1513 = vdwg.mxu0
    %s1514 = scalar_lea.vmem [#allocation10], 24
    %1515 = vst [vmem:[%s1514] sm:$0xff] %v1511
    %s1516 = scalar_lea.vmem [#allocation7], 1536
    %v1517 = vld [vmem:[%s1516] sm:$0xff]
    %v1518 = vld [vmem:[%s1516 + $0x8] sm:$0xff]
    %v1519 = vld [vmem:[%s1516 + $0x10] sm:$0xff]
    %v1520 = vld [vmem:[%s1516 + $0x18] sm:$0xff]
    %v1521 = vld [vmem:[%s1516 + $0x20] sm:$0xff]
    %v1522 = vld [vmem:[%s1516 + $0x28] sm:$0xff]
    %v1523 = vld [vmem:[%s1516 + $0x30] sm:$0xff]
    %v1524 = vld [vmem:[%s1516 + $0x38] sm:$0xff]
    %v1525 = vld [vmem:[%s1516 + $0x40] sm:$0xff]
    %v1526 = vld [vmem:[%s1516 + $0x48] sm:$0xff]
    %v1527 = vld [vmem:[%s1516 + $0x50] sm:$0xff]
    %v1528 = vld [vmem:[%s1516 + $0x58] sm:$0xff]
    %v1529 = vld [vmem:[%s1516 + $0x60] sm:$0xff]
    %v1530 = vld [vmem:[%s1516 + $0x68] sm:$0xff]
    %v1531 = vld [vmem:[%s1516 + $0x70] sm:$0xff]
    %v1532 = vld [vmem:[%s1516 + $0x78] sm:$0xff]
    %s1533 = scalar_lea.vmem [#allocation8], 12
    %v1534 = vld [vmem:[%s1533] sm:$0x1]
    %v1536 = vlaneseq
    %v1537 = vshrl.u32 %v1536, 7
    %v1538 = vsub.s32 0, %v1537
    %v1539 = vrot.slane %v1534, %v1538
    %1541 = vmatprep.subr.mxu0 0.0
    %1542 = vmatpush1.msra.mxu0 %v1517
    %1543 = vmatprep.subr.mxu0 0.0
    %1544 = vmatpush1.msra.mxu0 %v1518
    %1545 = vmatprep.subr.mxu0 0.0
    %1546 = vmatpush1.msra.mxu0 %v1519
    %1547 = vmatprep.subr.mxu0 0.0
    %1548 = vmatpush1.msra.mxu0 %v1520
    %1549 = vmatprep.subr.mxu0 0.0
    %1550 = vmatpush1.msra.mxu0 %v1521
    %1551 = vmatprep.subr.mxu0 0.0
    %1552 = vmatpush1.msra.mxu0 %v1522
    %1553 = vmatprep.subr.mxu0 0.0
    %1554 = vmatpush1.msra.mxu0 %v1523
    %1555 = vmatprep.subr.mxu0 0.0
    %1556 = vmatpush1.msra.mxu0 %v1524
    %1557 = vmatprep.subr.mxu0 0.0
    %1558 = vmatpush1.msra.mxu0 %v1525
    %1559 = vmatprep.subr.mxu0 0.0
    %1560 = vmatpush1.msra.mxu0 %v1526
    %1561 = vmatprep.subr.mxu0 0.0
    %1562 = vmatpush1.msra.mxu0 %v1527
    %1563 = vmatprep.subr.mxu0 0.0
    %1564 = vmatpush1.msra.mxu0 %v1528
    %1565 = vmatprep.subr.mxu0 0.0
    %1566 = vmatpush1.msra.mxu0 %v1529
    %1567 = vmatprep.subr.mxu0 0.0
    %1568 = vmatpush1.msra.mxu0 %v1530
    %1569 = vmatprep.subr.mxu0 0.0
    %1570 = vmatpush1.msra.mxu0 %v1531
    %1571 = vmatprep.subr.mxu0 0.0
    %1572 = vmatpush1.msra.mxu0 %v1532
    %1573 = vmatprep.subr.mxu0 0.0
    %1574 = vmatpush1.msra.mxu0 0.0
    %1575 = vmatprep.subr.mxu0 0.0
    %1576 = vmatpush1.msra.mxu0 0.0
    %1577 = vmatprep.subr.mxu0 0.0
    %1578 = vmatpush1.msra.mxu0 0.0
    %1579 = vmatprep.subr.mxu0 0.0
    %1580 = vmatpush1.msra.mxu0 0.0
    %1581 = vmatprep.subr.mxu0 0.0
    %1582 = vmatpush1.msra.mxu0 0.0
    %1583 = vmatprep.subr.mxu0 0.0
    %1584 = vmatpush1.msra.mxu0 0.0
    %1585 = vmatprep.subr.mxu0 0.0
    %1586 = vmatpush1.msra.mxu0 0.0
    %1587 = vmatprep.subr.mxu0 0.0
    %1588 = vmatpush1.msra.mxu0 0.0
    %1589 = vmatprep.subr.mxu0 0.0
    %1590 = vmatpush1.msra.mxu0 0.0
    %1591 = vmatprep.subr.mxu0 0.0
    %1592 = vmatpush1.msra.mxu0 0.0
    %1593 = vmatprep.subr.mxu0 0.0
    %1594 = vmatpush1.msra.mxu0 0.0
    %1595 = vmatprep.subr.mxu0 0.0
    %1596 = vmatpush1.msra.mxu0 0.0
    %1597 = vmatprep.subr.mxu0 0.0
    %1598 = vmatpush1.msra.mxu0 0.0
    %1599 = vmatprep.subr.mxu0 0.0
    %1600 = vmatpush1.msra.mxu0 0.0
    %1601 = vmatprep.subr.mxu0 0.0
    %1602 = vmatpush1.msra.mxu0 0.0
    %1603 = vmatprep.subr.mxu0 0.0
    %1604 = vmatpush1.msra.mxu0 0.0
    %1605 = vmatprep.mubr.f32.mxu0 0.0
    %1606 = vmatmul.mubr.f32.gmra.mrb[0].mxu0 %v362
    %v1607 = vpop.f32.mrb[0].mxu0
    %v1608 = vadd.f32 %v1539, %v1607
    %v1609 = vpop.f32.mrb[0].mxu0
    %1610 = vdwg.mxu0
    %v1611 = vtanh.pop %v1608
    %s1612 = scalar_lea.vmem [#allocation7], 1664
    %v1613 = vld [vmem:[%s1612] sm:$0xff]
    %v1614 = vld [vmem:[%s1612 + $0x8] sm:$0xff]
    %v1615 = vld [vmem:[%s1612 + $0x10] sm:$0xff]
    %v1616 = vld [vmem:[%s1612 + $0x18] sm:$0xff]
    %v1617 = vld [vmem:[%s1612 + $0x20] sm:$0xff]
    %v1618 = vld [vmem:[%s1612 + $0x28] sm:$0xff]
    %v1619 = vld [vmem:[%s1612 + $0x30] sm:$0xff]
    %v1620 = vld [vmem:[%s1612 + $0x38] sm:$0xff]
    %v1621 = vld [vmem:[%s1612 + $0x40] sm:$0xff]
    %v1622 = vld [vmem:[%s1612 + $0x48] sm:$0xff]
    %v1623 = vld [vmem:[%s1612 + $0x50] sm:$0xff]
    %v1624 = vld [vmem:[%s1612 + $0x58] sm:$0xff]
    %v1625 = vld [vmem:[%s1612 + $0x60] sm:$0xff]
    %v1626 = vld [vmem:[%s1612 + $0x68] sm:$0xff]
    %v1627 = vld [vmem:[%s1612 + $0x70] sm:$0xff]
    %v1628 = vld [vmem:[%s1612 + $0x78] sm:$0xff]
    %s1629 = scalar_lea.vmem [#allocation8], 13
    %v1630 = vld [vmem:[%s1629] sm:$0x1]
    %v1632 = vlaneseq
    %v1633 = vshrl.u32 %v1632, 7
    %v1634 = vsub.s32 0, %v1633
    %v1635 = vrot.slane %v1630, %v1634
    %1637 = vmatprep.subr.mxu0 0.0
    %1638 = vmatpush1.msra.mxu0 %v1613
    %1639 = vmatprep.subr.mxu0 0.0
    %1640 = vmatpush1.msra.mxu0 %v1614
    %1641 = vmatprep.subr.mxu0 0.0
    %1642 = vmatpush1.msra.mxu0 %v1615
    %1643 = vmatprep.subr.mxu0 0.0
    %1644 = vmatpush1.msra.mxu0 %v1616
    %1645 = vmatprep.subr.mxu0 0.0
    %1646 = vmatpush1.msra.mxu0 %v1617
    %1647 = vmatprep.subr.mxu0 0.0
    %1648 = vmatpush1.msra.mxu0 %v1618
    %1649 = vmatprep.subr.mxu0 0.0
    %1650 = vmatpush1.msra.mxu0 %v1619
    %1651 = vmatprep.subr.mxu0 0.0
    %1652 = vmatpush1.msra.mxu0 %v1620
    %1653 = vmatprep.subr.mxu0 0.0
    %1654 = vmatpush1.msra.mxu0 %v1621
    %1655 = vmatprep.subr.mxu0 0.0
    %1656 = vmatpush1.msra.mxu0 %v1622
    %1657 = vmatprep.subr.mxu0 0.0
    %1658 = vmatpush1.msra.mxu0 %v1623
    %1659 = vmatprep.subr.mxu0 0.0
    %1660 = vmatpush1.msra.mxu0 %v1624
    %1661 = vmatprep.subr.mxu0 0.0
    %1662 = vmatpush1.msra.mxu0 %v1625
    %1663 = vmatprep.subr.mxu0 0.0
    %1664 = vmatpush1.msra.mxu0 %v1626
    %1665 = vmatprep.subr.mxu0 0.0
    %1666 = vmatpush1.msra.mxu0 %v1627
    %1667 = vmatprep.subr.mxu0 0.0
    %1668 = vmatpush1.msra.mxu0 %v1628
    %1669 = vmatprep.subr.mxu0 0.0
    %1670 = vmatpush1.msra.mxu0 0.0
    %1671 = vmatprep.subr.mxu0 0.0
    %1672 = vmatpush1.msra.mxu0 0.0
    %1673 = vmatprep.subr.mxu0 0.0
    %1674 = vmatpush1.msra.mxu0 0.0
    %1675 = vmatprep.subr.mxu0 0.0
    %1676 = vmatpush1.msra.mxu0 0.0
    %1677 = vmatprep.subr.mxu0 0.0
    %1678 = vmatpush1.msra.mxu0 0.0
    %1679 = vmatprep.subr.mxu0 0.0
    %1680 = vmatpush1.msra.mxu0 0.0
    %1681 = vmatprep.subr.mxu0 0.0
    %1682 = vmatpush1.msra.mxu0 0.0
    %1683 = vmatprep.subr.mxu0 0.0
    %1684 = vmatpush1.msra.mxu0 0.0
    %1685 = vmatprep.subr.mxu0 0.0
    %1686 = vmatpush1.msra.mxu0 0.0
    %1687 = vmatprep.subr.mxu0 0.0
    %1688 = vmatpush1.msra.mxu0 0.0
    %1689 = vmatprep.subr.mxu0 0.0
    %1690 = vmatpush1.msra.mxu0 0.0
    %1691 = vmatprep.subr.mxu0 0.0
    %1692 = vmatpush1.msra.mxu0 0.0
    %1693 = vmatprep.subr.mxu0 0.0
    %1694 = vmatpush1.msra.mxu0 0.0
    %1695 = vmatprep.subr.mxu0 0.0
    %1696 = vmatpush1.msra.mxu0 0.0
    %1697 = vmatprep.subr.mxu0 0.0
    %1698 = vmatpush1.msra.mxu0 0.0
    %1699 = vmatprep.subr.mxu0 0.0
    %1700 = vmatpush1.msra.mxu0 0.0
    %1701 = vmatprep.mubr.f32.mxu0 0.0
    %1702 = vmatmul.mubr.f32.gmra.mrb[0].mxu0 %v1611
    %v1703 = vpop.f32.mrb[0].mxu0
    %v1704 = vadd.f32 %v1635, %v1703
    %v1705 = vpop.f32.mrb[0].mxu0
    %1706 = vdwg.mxu0
    %v1707 = vtanh.pop %v1704
    %s1708 = scalar_lea.vmem [#allocation7], 1792
    %v1709 = vld [vmem:[%s1708] sm:$0xff]
    %v1710 = vld [vmem:[%s1708 + $0x8] sm:$0xff]
    %v1711 = vld [vmem:[%s1708 + $0x10] sm:$0xff]
    %v1712 = vld [vmem:[%s1708 + $0x18] sm:$0xff]
    %v1713 = vld [vmem:[%s1708 + $0x20] sm:$0xff]
    %v1714 = vld [vmem:[%s1708 + $0x28] sm:$0xff]
    %v1715 = vld [vmem:[%s1708 + $0x30] sm:$0xff]
    %v1716 = vld [vmem:[%s1708 + $0x38] sm:$0xff]
    %v1717 = vld [vmem:[%s1708 + $0x40] sm:$0xff]
    %v1718 = vld [vmem:[%s1708 + $0x48] sm:$0xff]
    %v1719 = vld [vmem:[%s1708 + $0x50] sm:$0xff]
    %v1720 = vld [vmem:[%s1708 + $0x58] sm:$0xff]
    %v1721 = vld [vmem:[%s1708 + $0x60] sm:$0xff]
    %v1722 = vld [vmem:[%s1708 + $0x68] sm:$0xff]
    %v1723 = vld [vmem:[%s1708 + $0x70] sm:$0xff]
    %v1724 = vld [vmem:[%s1708 + $0x78] sm:$0xff]
    %s1725 = scalar_lea.vmem [#allocation8], 14
    %v1726 = vld [vmem:[%s1725] sm:$0x1]
    %v1728 = vlaneseq
    %v1729 = vshrl.u32 %v1728, 7
    %v1730 = vsub.s32 0, %v1729
    %v1731 = vrot.slane %v1726, %v1730
    %1733 = vmatprep.subr.mxu0 0.0
    %1734 = vmatpush1.msra.mxu0 %v1709
    %1735 = vmatprep.subr.mxu0 0.0
    %1736 = vmatpush1.msra.mxu0 %v1710
    %1737 = vmatprep.subr.mxu0 0.0
    %1738 = vmatpush1.msra.mxu0 %v1711
    %1739 = vmatprep.subr.mxu0 0.0
    %1740 = vmatpush1.msra.mxu0 %v1712
    %1741 = vmatprep.subr.mxu0 0.0
    %1742 = vmatpush1.msra.mxu0 %v1713
    %1743 = vmatprep.subr.mxu0 0.0
    %1744 = vmatpush1.msra.mxu0 %v1714
    %1745 = vmatprep.subr.mxu0 0.0
    %1746 = vmatpush1.msra.mxu0 %v1715
    %1747 = vmatprep.subr.mxu0 0.0
    %1748 = vmatpush1.msra.mxu0 %v1716
    %1749 = vmatprep.subr.mxu0 0.0
    %1750 = vmatpush1.msra.mxu0 %v1717
    %1751 = vmatprep.subr.mxu0 0.0
    %1752 = vmatpush1.msra.mxu0 %v1718
    %1753 = vmatprep.subr.mxu0 0.0
    %1754 = vmatpush1.msra.mxu0 %v1719
    %1755 = vmatprep.subr.mxu0 0.0
    %1756 = vmatpush1.msra.mxu0 %v1720
    %1757 = vmatprep.subr.mxu0 0.0
    %1758 = vmatpush1.msra.mxu0 %v1721
    %1759 = vmatprep.subr.mxu0 0.0
    %1760 = vmatpush1.msra.mxu0 %v1722
    %1761 = vmatprep.subr.mxu0 0.0
    %1762 = vmatpush1.msra.mxu0 %v1723
    %1763 = vmatprep.subr.mxu0 0.0
    %1764 = vmatpush1.msra.mxu0 %v1724
    %1765 = vmatprep.subr.mxu0 0.0
    %1766 = vmatpush1.msra.mxu0 0.0
    %1767 = vmatprep.subr.mxu0 0.0
    %1768 = vmatpush1.msra.mxu0 0.0
    %1769 = vmatprep.subr.mxu0 0.0
    %1770 = vmatpush1.msra.mxu0 0.0
    %1771 = vmatprep.subr.mxu0 0.0
    %1772 = vmatpush1.msra.mxu0 0.0
    %1773 = vmatprep.subr.mxu0 0.0
    %1774 = vmatpush1.msra.mxu0 0.0
    %1775 = vmatprep.subr.mxu0 0.0
    %1776 = vmatpush1.msra.mxu0 0.0
    %1777 = vmatprep.subr.mxu0 0.0
    %1778 = vmatpush1.msra.mxu0 0.0
    %1779 = vmatprep.subr.mxu0 0.0
    %1780 = vmatpush1.msra.mxu0 0.0
    %1781 = vmatprep.subr.mxu0 0.0
    %1782 = vmatpush1.msra.mxu0 0.0
    %1783 = vmatprep.subr.mxu0 0.0
    %1784 = vmatpush1.msra.mxu0 0.0
    %1785 = vmatprep.subr.mxu0 0.0
    %1786 = vmatpush1.msra.mxu0 0.0
    %1787 = vmatprep.subr.mxu0 0.0
    %1788 = vmatpush1.msra.mxu0 0.0
    %1789 = vmatprep.subr.mxu0 0.0
    %1790 = vmatpush1.msra.mxu0 0.0
    %1791 = vmatprep.subr.mxu0 0.0
    %1792 = vmatpush1.msra.mxu0 0.0
    %1793 = vmatprep.subr.mxu0 0.0
    %1794 = vmatpush1.msra.mxu0 0.0
    %1795 = vmatprep.subr.mxu0 0.0
    %1796 = vmatpush1.msra.mxu0 0.0
    %1797 = vmatprep.mubr.f32.mxu0 0.0
    %1798 = vmatmul.mubr.f32.gmra.mrb[0].mxu0 %v1707
    %v1799 = vpop.f32.mrb[0].mxu0
    %v1800 = vadd.f32 %v1731, %v1799
    %v1801 = vpop.f32.mrb[0].mxu0
    %1802 = vdwg.mxu0
    %s1803 = scalar_lea.vmem [#allocation10], 32
    %1804 = vst [vmem:[%s1803] sm:$0xff] %v1800
    %s1805 = scalar_lea.vmem [#allocation7], 1920
    %v1806 = vld [vmem:[%s1805] sm:$0xff]
    %v1807 = vld [vmem:[%s1805 + $0x8] sm:$0xff]
    %v1808 = vld [vmem:[%s1805 + $0x10] sm:$0xff]
    %v1809 = vld [vmem:[%s1805 + $0x18] sm:$0xff]
    %v1810 = vld [vmem:[%s1805 + $0x20] sm:$0xff]
    %v1811 = vld [vmem:[%s1805 + $0x28] sm:$0xff]
    %v1812 = vld [vmem:[%s1805 + $0x30] sm:$0xff]
    %v1813 = vld [vmem:[%s1805 + $0x38] sm:$0xff]
    %v1814 = vld [vmem:[%s1805 + $0x40] sm:$0xff]
    %v1815 = vld [vmem:[%s1805 + $0x48] sm:$0xff]
    %v1816 = vld [vmem:[%s1805 + $0x50] sm:$0xff]
    %v1817 = vld [vmem:[%s1805 + $0x58] sm:$0xff]
    %v1818 = vld [vmem:[%s1805 + $0x60] sm:$0xff]
    %v1819 = vld [vmem:[%s1805 + $0x68] sm:$0xff]
    %v1820 = vld [vmem:[%s1805 + $0x70] sm:$0xff]
    %v1821 = vld [vmem:[%s1805 + $0x78] sm:$0xff]
    %s1822 = scalar_lea.vmem [#allocation8], 15
    %v1823 = vld [vmem:[%s1822] sm:$0x1]
    %v1825 = vlaneseq
    %v1826 = vshrl.u32 %v1825, 7
    %v1827 = vsub.s32 0, %v1826
    %v1828 = vrot.slane %v1823, %v1827
    %1830 = vmatprep.subr.mxu0 0.0
    %1831 = vmatpush1.msra.mxu0 %v1806
    %1832 = vmatprep.subr.mxu0 0.0
    %1833 = vmatpush1.msra.mxu0 %v1807
    %1834 = vmatprep.subr.mxu0 0.0
    %1835 = vmatpush1.msra.mxu0 %v1808
    %1836 = vmatprep.subr.mxu0 0.0
    %1837 = vmatpush1.msra.mxu0 %v1809
    %1838 = vmatprep.subr.mxu0 0.0
    %1839 = vmatpush1.msra.mxu0 %v1810
    %1840 = vmatprep.subr.mxu0 0.0
    %1841 = vmatpush1.msra.mxu0 %v1811
    %1842 = vmatprep.subr.mxu0 0.0
    %1843 = vmatpush1.msra.mxu0 %v1812
    %1844 = vmatprep.subr.mxu0 0.0
    %1845 = vmatpush1.msra.mxu0 %v1813
    %1846 = vmatprep.subr.mxu0 0.0
    %1847 = vmatpush1.msra.mxu0 %v1814
    %1848 = vmatprep.subr.mxu0 0.0
    %1849 = vmatpush1.msra.mxu0 %v1815
    %1850 = vmatprep.subr.mxu0 0.0
    %1851 = vmatpush1.msra.mxu0 %v1816
    %1852 = vmatprep.subr.mxu0 0.0
    %1853 = vmatpush1.msra.mxu0 %v1817
    %1854 = vmatprep.subr.mxu0 0.0
    %1855 = vmatpush1.msra.mxu0 %v1818
    %1856 = vmatprep.subr.mxu0 0.0
    %1857 = vmatpush1.msra.mxu0 %v1819
    %1858 = vmatprep.subr.mxu0 0.0
    %1859 = vmatpush1.msra.mxu0 %v1820
    %1860 = vmatprep.subr.mxu0 0.0
    %1861 = vmatpush1.msra.mxu0 %v1821
    %1862 = vmatprep.subr.mxu0 0.0
    %1863 = vmatpush1.msra.mxu0 0.0
    %1864 = vmatprep.subr.mxu0 0.0
    %1865 = vmatpush1.msra.mxu0 0.0
    %1866 = vmatprep.subr.mxu0 0.0
    %1867 = vmatpush1.msra.mxu0 0.0
    %1868 = vmatprep.subr.mxu0 0.0
    %1869 = vmatpush1.msra.mxu0 0.0
    %1870 = vmatprep.subr.mxu0 0.0
    %1871 = vmatpush1.msra.mxu0 0.0
    %1872 = vmatprep.subr.mxu0 0.0
    %1873 = vmatpush1.msra.mxu0 0.0
    %1874 = vmatprep.subr.mxu0 0.0
    %1875 = vmatpush1.msra.mxu0 0.0
    %1876 = vmatprep.subr.mxu0 0.0
    %1877 = vmatpush1.msra.mxu0 0.0
    %1878 = vmatprep.subr.mxu0 0.0
    %1879 = vmatpush1.msra.mxu0 0.0
    %1880 = vmatprep.subr.mxu0 0.0
    %1881 = vmatpush1.msra.mxu0 0.0
    %1882 = vmatprep.subr.mxu0 0.0
    %1883 = vmatpush1.msra.mxu0 0.0
    %1884 = vmatprep.subr.mxu0 0.0
    %1885 = vmatpush1.msra.mxu0 0.0
    %1886 = vmatprep.subr.mxu0 0.0
    %1887 = vmatpush1.msra.mxu0 0.0
    %1888 = vmatprep.subr.mxu0 0.0
    %1889 = vmatpush1.msra.mxu0 0.0
    %1890 = vmatprep.subr.mxu0 0.0
    %1891 = vmatpush1.msra.mxu0 0.0
    %1892 = vmatprep.subr.mxu0 0.0
    %1893 = vmatpush1.msra.mxu0 0.0
    %1894 = vmatprep.mubr.f32.mxu0 0.0
    %1895 = vmatmul.mubr.f32.gmra.mrb[0].mxu0 %v362
    %v1896 = vpop.f32.mrb[0].mxu0
    %v1897 = vadd.f32 %v1828, %v1896
    %v1898 = vpop.f32.mrb[0].mxu0
    %1899 = vdwg.mxu0
    %v1900 = vtanh.pop %v1897
    %s1901 = scalar_lea.vmem [#allocation7], 2048
    %v1902 = vld [vmem:[%s1901] sm:$0xff]
    %v1903 = vld [vmem:[%s1901 + $0x8] sm:$0xff]
    %v1904 = vld [vmem:[%s1901 + $0x10] sm:$0xff]
    %v1905 = vld [vmem:[%s1901 + $0x18] sm:$0xff]
    %v1906 = vld [vmem:[%s1901 + $0x20] sm:$0xff]
    %v1907 = vld [vmem:[%s1901 + $0x28] sm:$0xff]
    %v1908 = vld [vmem:[%s1901 + $0x30] sm:$0xff]
    %v1909 = vld [vmem:[%s1901 + $0x38] sm:$0xff]
    %v1910 = vld [vmem:[%s1901 + $0x40] sm:$0xff]
    %v1911 = vld [vmem:[%s1901 + $0x48] sm:$0xff]
    %v1912 = vld [vmem:[%s1901 + $0x50] sm:$0xff]
    %v1913 = vld [vmem:[%s1901 + $0x58] sm:$0xff]
    %v1914 = vld [vmem:[%s1901 + $0x60] sm:$0xff]
    %v1915 = vld [vmem:[%s1901 + $0x68] sm:$0xff]
    %v1916 = vld [vmem:[%s1901 + $0x70] sm:$0xff]
    %v1917 = vld [vmem:[%s1901 + $0x78] sm:$0xff]
    %s1918 = scalar_lea.vmem [#allocation8], 16
    %v1919 = vld [vmem:[%s1918] sm:$0x1]
    %v1921 = vlaneseq
    %v1922 = vshrl.u32 %v1921, 7
    %v1923 = vsub.s32 0, %v1922
    %v1924 = vrot.slane %v1919, %v1923
    %1926 = vmatprep.subr.mxu0 0.0
    %1927 = vmatpush1.msra.mxu0 %v1902
    %1928 = vmatprep.subr.mxu0 0.0
    %1929 = vmatpush1.msra.mxu0 %v1903
    %1930 = vmatprep.subr.mxu0 0.0
    %1931 = vmatpush1.msra.mxu0 %v1904
    %1932 = vmatprep.subr.mxu0 0.0
    %1933 = vmatpush1.msra.mxu0 %v1905
    %1934 = vmatprep.subr.mxu0 0.0
    %1935 = vmatpush1.msra.mxu0 %v1906
    %1936 = vmatprep.subr.mxu0 0.0
    %1937 = vmatpush1.msra.mxu0 %v1907
    %1938 = vmatprep.subr.mxu0 0.0
    %1939 = vmatpush1.msra.mxu0 %v1908
    %1940 = vmatprep.subr.mxu0 0.0
    %1941 = vmatpush1.msra.mxu0 %v1909
    %1942 = vmatprep.subr.mxu0 0.0
    %1943 = vmatpush1.msra.mxu0 %v1910
    %1944 = vmatprep.subr.mxu0 0.0
    %1945 = vmatpush1.msra.mxu0 %v1911
    %1946 = vmatprep.subr.mxu0 0.0
    %1947 = vmatpush1.msra.mxu0 %v1912
    %1948 = vmatprep.subr.mxu0 0.0
    %1949 = vmatpush1.msra.mxu0 %v1913
    %1950 = vmatprep.subr.mxu0 0.0
    %1951 = vmatpush1.msra.mxu0 %v1914
    %1952 = vmatprep.subr.mxu0 0.0
    %1953 = vmatpush1.msra.mxu0 %v1915
    %1954 = vmatprep.subr.mxu0 0.0
    %1955 = vmatpush1.msra.mxu0 %v1916
    %1956 = vmatprep.subr.mxu0 0.0
    %1957 = vmatpush1.msra.mxu0 %v1917
    %1958 = vmatprep.subr.mxu0 0.0
    %1959 = vmatpush1.msra.mxu0 0.0
    %1960 = vmatprep.subr.mxu0 0.0
    %1961 = vmatpush1.msra.mxu0 0.0
    %1962 = vmatprep.subr.mxu0 0.0
    %1963 = vmatpush1.msra.mxu0 0.0
    %1964 = vmatprep.subr.mxu0 0.0
    %1965 = vmatpush1.msra.mxu0 0.0
    %1966 = vmatprep.subr.mxu0 0.0
    %1967 = vmatpush1.msra.mxu0 0.0
    %1968 = vmatprep.subr.mxu0 0.0
    %1969 = vmatpush1.msra.mxu0 0.0
    %1970 = vmatprep.subr.mxu0 0.0
    %1971 = vmatpush1.msra.mxu0 0.0
    %1972 = vmatprep.subr.mxu0 0.0
    %1973 = vmatpush1.msra.mxu0 0.0
    %1974 = vmatprep.subr.mxu0 0.0
    %1975 = vmatpush1.msra.mxu0 0.0
    %1976 = vmatprep.subr.mxu0 0.0
    %1977 = vmatpush1.msra.mxu0 0.0
    %1978 = vmatprep.subr.mxu0 0.0
    %1979 = vmatpush1.msra.mxu0 0.0
    %1980 = vmatprep.subr.mxu0 0.0
    %1981 = vmatpush1.msra.mxu0 0.0
    %1982 = vmatprep.subr.mxu0 0.0
    %1983 = vmatpush1.msra.mxu0 0.0
    %1984 = vmatprep.subr.mxu0 0.0
    %1985 = vmatpush1.msra.mxu0 0.0
    %1986 = vmatprep.subr.mxu0 0.0
    %1987 = vmatpush1.msra.mxu0 0.0
    %1988 = vmatprep.subr.mxu0 0.0
    %1989 = vmatpush1.msra.mxu0 0.0
    %1990 = vmatprep.mubr.f32.mxu0 0.0
    %1991 = vmatmul.mubr.f32.gmra.mrb[0].mxu0 %v1900
    %v1992 = vpop.f32.mrb[0].mxu0
    %v1993 = vadd.f32 %v1924, %v1992
    %v1994 = vpop.f32.mrb[0].mxu0
    %1995 = vdwg.mxu0
    %v1996 = vtanh.pop %v1993
    %s1997 = scalar_lea.vmem [#allocation7], 2176
    %v1998 = vld [vmem:[%s1997] sm:$0xff]
    %v1999 = vld [vmem:[%s1997 + $0x8] sm:$0xff]
    %v2000 = vld [vmem:[%s1997 + $0x10] sm:$0xff]
    %v2001 = vld [vmem:[%s1997 + $0x18] sm:$0xff]
    %v2002 = vld [vmem:[%s1997 + $0x20] sm:$0xff]
    %v2003 = vld [vmem:[%s1997 + $0x28] sm:$0xff]
    %v2004 = vld [vmem:[%s1997 + $0x30] sm:$0xff]
    %v2005 = vld [vmem:[%s1997 + $0x38] sm:$0xff]
    %v2006 = vld [vmem:[%s1997 + $0x40] sm:$0xff]
    %v2007 = vld [vmem:[%s1997 + $0x48] sm:$0xff]
    %v2008 = vld [vmem:[%s1997 + $0x50] sm:$0xff]
    %v2009 = vld [vmem:[%s1997 + $0x58] sm:$0xff]
    %v2010 = vld [vmem:[%s1997 + $0x60] sm:$0xff]
    %v2011 = vld [vmem:[%s1997 + $0x68] sm:$0xff]
    %v2012 = vld [vmem:[%s1997 + $0x70] sm:$0xff]
    %v2013 = vld [vmem:[%s1997 + $0x78] sm:$0xff]
    %s2014 = scalar_lea.vmem [#allocation8], 17
    %v2015 = vld [vmem:[%s2014] sm:$0x1]
    %v2017 = vlaneseq
    %v2018 = vshrl.u32 %v2017, 7
    %v2019 = vsub.s32 0, %v2018
    %v2020 = vrot.slane %v2015, %v2019
    %2022 = vmatprep.subr.mxu0 0.0
    %2023 = vmatpush1.msra.mxu0 %v1998
    %2024 = vmatprep.subr.mxu0 0.0
    %2025 = vmatpush1.msra.mxu0 %v1999
    %2026 = vmatprep.subr.mxu0 0.0
    %2027 = vmatpush1.msra.mxu0 %v2000
    %2028 = vmatprep.subr.mxu0 0.0
    %2029 = vmatpush1.msra.mxu0 %v2001
    %2030 = vmatprep.subr.mxu0 0.0
    %2031 = vmatpush1.msra.mxu0 %v2002
    %2032 = vmatprep.subr.mxu0 0.0
    %2033 = vmatpush1.msra.mxu0 %v2003
    %2034 = vmatprep.subr.mxu0 0.0
    %2035 = vmatpush1.msra.mxu0 %v2004
    %2036 = vmatprep.subr.mxu0 0.0
    %2037 = vmatpush1.msra.mxu0 %v2005
    %2038 = vmatprep.subr.mxu0 0.0
    %2039 = vmatpush1.msra.mxu0 %v2006
    %2040 = vmatprep.subr.mxu0 0.0
    %2041 = vmatpush1.msra.mxu0 %v2007
    %2042 = vmatprep.subr.mxu0 0.0
    %2043 = vmatpush1.msra.mxu0 %v2008
    %2044 = vmatprep.subr.mxu0 0.0
    %2045 = vmatpush1.msra.mxu0 %v2009
    %2046 = vmatprep.subr.mxu0 0.0
    %2047 = vmatpush1.msra.mxu0 %v2010
    %2048 = vmatprep.subr.mxu0 0.0
    %2049 = vmatpush1.msra.mxu0 %v2011
    %2050 = vmatprep.subr.mxu0 0.0
    %2051 = vmatpush1.msra.mxu0 %v2012
    %2052 = vmatprep.subr.mxu0 0.0
    %2053 = vmatpush1.msra.mxu0 %v2013
    %2054 = vmatprep.subr.mxu0 0.0
    %2055 = vmatpush1.msra.mxu0 0.0
    %2056 = vmatprep.subr.mxu0 0.0
    %2057 = vmatpush1.msra.mxu0 0.0
    %2058 = vmatprep.subr.mxu0 0.0
    %2059 = vmatpush1.msra.mxu0 0.0
    %2060 = vmatprep.subr.mxu0 0.0
    %2061 = vmatpush1.msra.mxu0 0.0
    %2062 = vmatprep.subr.mxu0 0.0
    %2063 = vmatpush1.msra.mxu0 0.0
    %2064 = vmatprep.subr.mxu0 0.0
    %2065 = vmatpush1.msra.mxu0 0.0
    %2066 = vmatprep.subr.mxu0 0.0
    %2067 = vmatpush1.msra.mxu0 0.0
    %2068 = vmatprep.subr.mxu0 0.0
    %2069 = vmatpush1.msra.mxu0 0.0
    %2070 = vmatprep.subr.mxu0 0.0
    %2071 = vmatpush1.msra.mxu0 0.0
    %2072 = vmatprep.subr.mxu0 0.0
    %2073 = vmatpush1.msra.mxu0 0.0
    %2074 = vmatprep.subr.mxu0 0.0
    %2075 = vmatpush1.msra.mxu0 0.0
    %2076 = vmatprep.subr.mxu0 0.0
    %2077 = vmatpush1.msra.mxu0 0.0
    %2078 = vmatprep.subr.mxu0 0.0
    %2079 = vmatpush1.msra.mxu0 0.0
    %2080 = vmatprep.subr.mxu0 0.0
    %2081 = vmatpush1.msra.mxu0 0.0
    %2082 = vmatprep.subr.mxu0 0.0
    %2083 = vmatpush1.msra.mxu0 0.0
    %2084 = vmatprep.subr.mxu0 0.0
    %2085 = vmatpush1.msra.mxu0 0.0
    %2086 = vmatprep.mubr.f32.mxu0 0.0
    %2087 = vmatmul.mubr.f32.gmra.mrb[0].mxu0 %v1996
    %v2088 = vpop.f32.mrb[0].mxu0
    %v2089 = vadd.f32 %v2020, %v2088
    %v2090 = vpop.f32.mrb[0].mxu0
    %2091 = vdwg.mxu0
    %s2092 = scalar_lea.vmem [#allocation10], 40
    %2093 = vst [vmem:[%s2092] sm:$0xff] %v2089
    %s2094 = scalar_lea.vmem [#allocation7], 2304
    %v2095 = vld [vmem:[%s2094] sm:$0xff]
    %v2096 = vld [vmem:[%s2094 + $0x8] sm:$0xff]
    %v2097 = vld [vmem:[%s2094 + $0x10] sm:$0xff]
    %v2098 = vld [vmem:[%s2094 + $0x18] sm:$0xff]
    %v2099 = vld [vmem:[%s2094 + $0x20] sm:$0xff]
    %v2100 = vld [vmem:[%s2094 + $0x28] sm:$0xff]
    %v2101 = vld [vmem:[%s2094 + $0x30] sm:$0xff]
    %v2102 = vld [vmem:[%s2094 + $0x38] sm:$0xff]
    %v2103 = vld [vmem:[%s2094 + $0x40] sm:$0xff]
    %v2104 = vld [vmem:[%s2094 + $0x48] sm:$0xff]
    %v2105 = vld [vmem:[%s2094 + $0x50] sm:$0xff]
    %v2106 = vld [vmem:[%s2094 + $0x58] sm:$0xff]
    %v2107 = vld [vmem:[%s2094 + $0x60] sm:$0xff]
    %v2108 = vld [vmem:[%s2094 + $0x68] sm:$0xff]
    %v2109 = vld [vmem:[%s2094 + $0x70] sm:$0xff]
    %v2110 = vld [vmem:[%s2094 + $0x78] sm:$0xff]
    %s2111 = scalar_lea.vmem [#allocation8], 18
    %v2112 = vld [vmem:[%s2111] sm:$0x1]
    %v2114 = vlaneseq
    %v2115 = vshrl.u32 %v2114, 7
    %v2116 = vsub.s32 0, %v2115
    %v2117 = vrot.slane %v2112, %v2116
    %2119 = vmatprep.subr.mxu0 0.0
    %2120 = vmatpush1.msra.mxu0 %v2095
    %2121 = vmatprep.subr.mxu0 0.0
    %2122 = vmatpush1.msra.mxu0 %v2096
    %2123 = vmatprep.subr.mxu0 0.0
    %2124 = vmatpush1.msra.mxu0 %v2097
    %2125 = vmatprep.subr.mxu0 0.0
    %2126 = vmatpush1.msra.mxu0 %v2098
    %2127 = vmatprep.subr.mxu0 0.0
    %2128 = vmatpush1.msra.mxu0 %v2099
    %2129 = vmatprep.subr.mxu0 0.0
    %2130 = vmatpush1.msra.mxu0 %v2100
    %2131 = vmatprep.subr.mxu0 0.0
    %2132 = vmatpush1.msra.mxu0 %v2101
    %2133 = vmatprep.subr.mxu0 0.0
    %2134 = vmatpush1.msra.mxu0 %v2102
    %2135 = vmatprep.subr.mxu0 0.0
    %2136 = vmatpush1.msra.mxu0 %v2103
    %2137 = vmatprep.subr.mxu0 0.0
    %2138 = vmatpush1.msra.mxu0 %v2104
    %2139 = vmatprep.subr.mxu0 0.0
    %2140 = vmatpush1.msra.mxu0 %v2105
    %2141 = vmatprep.subr.mxu0 0.0
    %2142 = vmatpush1.msra.mxu0 %v2106
    %2143 = vmatprep.subr.mxu0 0.0
    %2144 = vmatpush1.msra.mxu0 %v2107
    %2145 = vmatprep.subr.mxu0 0.0
    %2146 = vmatpush1.msra.mxu0 %v2108
    %2147 = vmatprep.subr.mxu0 0.0
    %2148 = vmatpush1.msra.mxu0 %v2109
    %2149 = vmatprep.subr.mxu0 0.0
    %2150 = vmatpush1.msra.mxu0 %v2110
    %2151 = vmatprep.subr.mxu0 0.0
    %2152 = vmatpush1.msra.mxu0 0.0
    %2153 = vmatprep.subr.mxu0 0.0
    %2154 = vmatpush1.msra.mxu0 0.0
    %2155 = vmatprep.subr.mxu0 0.0
    %2156 = vmatpush1.msra.mxu0 0.0
    %2157 = vmatprep.subr.mxu0 0.0
    %2158 = vmatpush1.msra.mxu0 0.0
    %2159 = vmatprep.subr.mxu0 0.0
    %2160 = vmatpush1.msra.mxu0 0.0
    %2161 = vmatprep.subr.mxu0 0.0
    %2162 = vmatpush1.msra.mxu0 0.0
    %2163 = vmatprep.subr.mxu0 0.0
    %2164 = vmatpush1.msra.mxu0 0.0
    %2165 = vmatprep.subr.mxu0 0.0
    %2166 = vmatpush1.msra.mxu0 0.0
    %2167 = vmatprep.subr.mxu0 0.0
    %2168 = vmatpush1.msra.mxu0 0.0
    %2169 = vmatprep.subr.mxu0 0.0
    %2170 = vmatpush1.msra.mxu0 0.0
    %2171 = vmatprep.subr.mxu0 0.0
    %2172 = vmatpush1.msra.mxu0 0.0
    %2173 = vmatprep.subr.mxu0 0.0
    %2174 = vmatpush1.msra.mxu0 0.0
    %2175 = vmatprep.subr.mxu0 0.0
    %2176 = vmatpush1.msra.mxu0 0.0
    %2177 = vmatprep.subr.mxu0 0.0
    %2178 = vmatpush1.msra.mxu0 0.0
    %2179 = vmatprep.subr.mxu0 0.0
    %2180 = vmatpush1.msra.mxu0 0.0
    %2181 = vmatprep.subr.mxu0 0.0
    %2182 = vmatpush1.msra.mxu0 0.0
    %2183 = vmatprep.mubr.f32.mxu0 0.0
    %2184 = vmatmul.mubr.f32.gmra.mrb[0].mxu0 %v362
    %v2185 = vpop.f32.mrb[0].mxu0
    %v2186 = vadd.f32 %v2117, %v2185
    %v2187 = vpop.f32.mrb[0].mxu0
    %2188 = vdwg.mxu0
    %v2189 = vtanh.pop %v2186
    %s2190 = scalar_lea.vmem [#allocation7], 2432
    %v2191 = vld [vmem:[%s2190] sm:$0xff]
    %v2192 = vld [vmem:[%s2190 + $0x8] sm:$0xff]
    %v2193 = vld [vmem:[%s2190 + $0x10] sm:$0xff]
    %v2194 = vld [vmem:[%s2190 + $0x18] sm:$0xff]
    %v2195 = vld [vmem:[%s2190 + $0x20] sm:$0xff]
    %v2196 = vld [vmem:[%s2190 + $0x28] sm:$0xff]
    %v2197 = vld [vmem:[%s2190 + $0x30] sm:$0xff]
    %v2198 = vld [vmem:[%s2190 + $0x38] sm:$0xff]
    %v2199 = vld [vmem:[%s2190 + $0x40] sm:$0xff]
    %v2200 = vld [vmem:[%s2190 + $0x48] sm:$0xff]
    %v2201 = vld [vmem:[%s2190 + $0x50] sm:$0xff]
    %v2202 = vld [vmem:[%s2190 + $0x58] sm:$0xff]
    %v2203 = vld [vmem:[%s2190 + $0x60] sm:$0xff]
    %v2204 = vld [vmem:[%s2190 + $0x68] sm:$0xff]
    %v2205 = vld [vmem:[%s2190 + $0x70] sm:$0xff]
    %v2206 = vld [vmem:[%s2190 + $0x78] sm:$0xff]
    %s2207 = scalar_lea.vmem [#allocation8], 19
    %v2208 = vld [vmem:[%s2207] sm:$0x1]
    %v2210 = vlaneseq
    %v2211 = vshrl.u32 %v2210, 7
    %v2212 = vsub.s32 0, %v2211
    %v2213 = vrot.slane %v2208, %v2212
    %2215 = vmatprep.subr.mxu0 0.0
    %2216 = vmatpush1.msra.mxu0 %v2191
    %2217 = vmatprep.subr.mxu0 0.0
    %2218 = vmatpush1.msra.mxu0 %v2192
    %2219 = vmatprep.subr.mxu0 0.0
    %2220 = vmatpush1.msra.mxu0 %v2193
    %2221 = vmatprep.subr.mxu0 0.0
    %2222 = vmatpush1.msra.mxu0 %v2194
    %2223 = vmatprep.subr.mxu0 0.0
    %2224 = vmatpush1.msra.mxu0 %v2195
    %2225 = vmatprep.subr.mxu0 0.0
    %2226 = vmatpush1.msra.mxu0 %v2196
    %2227 = vmatprep.subr.mxu0 0.0
    %2228 = vmatpush1.msra.mxu0 %v2197
    %2229 = vmatprep.subr.mxu0 0.0
    %2230 = vmatpush1.msra.mxu0 %v2198
    %2231 = vmatprep.subr.mxu0 0.0
    %2232 = vmatpush1.msra.mxu0 %v2199
    %2233 = vmatprep.subr.mxu0 0.0
    %2234 = vmatpush1.msra.mxu0 %v2200
    %2235 = vmatprep.subr.mxu0 0.0
    %2236 = vmatpush1.msra.mxu0 %v2201
    %2237 = vmatprep.subr.mxu0 0.0
    %2238 = vmatpush1.msra.mxu0 %v2202
    %2239 = vmatprep.subr.mxu0 0.0
    %2240 = vmatpush1.msra.mxu0 %v2203
    %2241 = vmatprep.subr.mxu0 0.0
    %2242 = vmatpush1.msra.mxu0 %v2204
    %2243 = vmatprep.subr.mxu0 0.0
    %2244 = vmatpush1.msra.mxu0 %v2205
    %2245 = vmatprep.subr.mxu0 0.0
    %2246 = vmatpush1.msra.mxu0 %v2206
    %2247 = vmatprep.subr.mxu0 0.0
    %2248 = vmatpush1.msra.mxu0 0.0
    %2249 = vmatprep.subr.mxu0 0.0
    %2250 = vmatpush1.msra.mxu0 0.0
    %2251 = vmatprep.subr.mxu0 0.0
    %2252 = vmatpush1.msra.mxu0 0.0
    %2253 = vmatprep.subr.mxu0 0.0
    %2254 = vmatpush1.msra.mxu0 0.0
    %2255 = vmatprep.subr.mxu0 0.0
    %2256 = vmatpush1.msra.mxu0 0.0
    %2257 = vmatprep.subr.mxu0 0.0
    %2258 = vmatpush1.msra.mxu0 0.0
    %2259 = vmatprep.subr.mxu0 0.0
    %2260 = vmatpush1.msra.mxu0 0.0
    %2261 = vmatprep.subr.mxu0 0.0
    %2262 = vmatpush1.msra.mxu0 0.0
    %2263 = vmatprep.subr.mxu0 0.0
    %2264 = vmatpush1.msra.mxu0 0.0
    %2265 = vmatprep.subr.mxu0 0.0
    %2266 = vmatpush1.msra.mxu0 0.0
    %2267 = vmatprep.subr.mxu0 0.0
    %2268 = vmatpush1.msra.mxu0 0.0
    %2269 = vmatprep.subr.mxu0 0.0
    %2270 = vmatpush1.msra.mxu0 0.0
    %2271 = vmatprep.subr.mxu0 0.0
    %2272 = vmatpush1.msra.mxu0 0.0
    %2273 = vmatprep.subr.mxu0 0.0
    %2274 = vmatpush1.msra.mxu0 0.0
    %2275 = vmatprep.subr.mxu0 0.0
    %2276 = vmatpush1.msra.mxu0 0.0
    %2277 = vmatprep.subr.mxu0 0.0
    %2278 = vmatpush1.msra.mxu0 0.0
    %2279 = vmatprep.mubr.f32.mxu0 0.0
    %2280 = vmatmul.mubr.f32.gmra.mrb[0].mxu0 %v2189
    %v2281 = vpop.f32.mrb[0].mxu0
    %v2282 = vadd.f32 %v2213, %v2281
    %v2283 = vpop.f32.mrb[0].mxu0
    %2284 = vdwg.mxu0
    %v2285 = vtanh.pop %v2282
    %s2286 = scalar_lea.vmem [#allocation7], 2560
    %v2287 = vld [vmem:[%s2286] sm:$0xff]
    %v2288 = vld [vmem:[%s2286 + $0x8] sm:$0xff]
    %v2289 = vld [vmem:[%s2286 + $0x10] sm:$0xff]
    %v2290 = vld [vmem:[%s2286 + $0x18] sm:$0xff]
    %v2291 = vld [vmem:[%s2286 + $0x20] sm:$0xff]
    %v2292 = vld [vmem:[%s2286 + $0x28] sm:$0xff]
    %v2293 = vld [vmem:[%s2286 + $0x30] sm:$0xff]
    %v2294 = vld [vmem:[%s2286 + $0x38] sm:$0xff]
    %v2295 = vld [vmem:[%s2286 + $0x40] sm:$0xff]
    %v2296 = vld [vmem:[%s2286 + $0x48] sm:$0xff]
    %v2297 = vld [vmem:[%s2286 + $0x50] sm:$0xff]
    %v2298 = vld [vmem:[%s2286 + $0x58] sm:$0xff]
    %v2299 = vld [vmem:[%s2286 + $0x60] sm:$0xff]
    %v2300 = vld [vmem:[%s2286 + $0x68] sm:$0xff]
    %v2301 = vld [vmem:[%s2286 + $0x70] sm:$0xff]
    %v2302 = vld [vmem:[%s2286 + $0x78] sm:$0xff]
    %s2303 = scalar_lea.vmem [#allocation8], 20
    %v2304 = vld [vmem:[%s2303] sm:$0x1]
    %v2306 = vlaneseq
    %v2307 = vshrl.u32 %v2306, 7
    %v2308 = vsub.s32 0, %v2307
    %v2309 = vrot.slane %v2304, %v2308
    %2311 = vmatprep.subr.mxu0 0.0
    %2312 = vmatpush1.msra.mxu0 %v2287
    %2313 = vmatprep.subr.mxu0 0.0
    %2314 = vmatpush1.msra.mxu0 %v2288
    %2315 = vmatprep.subr.mxu0 0.0
    %2316 = vmatpush1.msra.mxu0 %v2289
    %2317 = vmatprep.subr.mxu0 0.0
    %2318 = vmatpush1.msra.mxu0 %v2290
    %2319 = vmatprep.subr.mxu0 0.0
    %2320 = vmatpush1.msra.mxu0 %v2291
    %2321 = vmatprep.subr.mxu0 0.0
    %2322 = vmatpush1.msra.mxu0 %v2292
    %2323 = vmatprep.subr.mxu0 0.0
    %2324 = vmatpush1.msra.mxu0 %v2293
    %2325 = vmatprep.subr.mxu0 0.0
    %2326 = vmatpush1.msra.mxu0 %v2294
    %2327 = vmatprep.subr.mxu0 0.0
    %2328 = vmatpush1.msra.mxu0 %v2295
    %2329 = vmatprep.subr.mxu0 0.0
    %2330 = vmatpush1.msra.mxu0 %v2296
    %2331 = vmatprep.subr.mxu0 0.0
    %2332 = vmatpush1.msra.mxu0 %v2297
    %2333 = vmatprep.subr.mxu0 0.0
    %2334 = vmatpush1.msra.mxu0 %v2298
    %2335 = vmatprep.subr.mxu0 0.0
    %2336 = vmatpush1.msra.mxu0 %v2299
    %2337 = vmatprep.subr.mxu0 0.0
    %2338 = vmatpush1.msra.mxu0 %v2300
    %2339 = vmatprep.subr.mxu0 0.0
    %2340 = vmatpush1.msra.mxu0 %v2301
    %2341 = vmatprep.subr.mxu0 0.0
    %2342 = vmatpush1.msra.mxu0 %v2302
    %2343 = vmatprep.subr.mxu0 0.0
    %2344 = vmatpush1.msra.mxu0 0.0
    %2345 = vmatprep.subr.mxu0 0.0
    %2346 = vmatpush1.msra.mxu0 0.0
    %2347 = vmatprep.subr.mxu0 0.0
    %2348 = vmatpush1.msra.mxu0 0.0
    %2349 = vmatprep.subr.mxu0 0.0
    %2350 = vmatpush1.msra.mxu0 0.0
    %2351 = vmatprep.subr.mxu0 0.0
    %2352 = vmatpush1.msra.mxu0 0.0
    %2353 = vmatprep.subr.mxu0 0.0
    %2354 = vmatpush1.msra.mxu0 0.0
    %2355 = vmatprep.subr.mxu0 0.0
    %2356 = vmatpush1.msra.mxu0 0.0
    %2357 = vmatprep.subr.mxu0 0.0
    %2358 = vmatpush1.msra.mxu0 0.0
    %2359 = vmatprep.subr.mxu0 0.0
    %2360 = vmatpush1.msra.mxu0 0.0
    %2361 = vmatprep.subr.mxu0 0.0
    %2362 = vmatpush1.msra.mxu0 0.0
    %2363 = vmatprep.subr.mxu0 0.0
    %2364 = vmatpush1.msra.mxu0 0.0
    %2365 = vmatprep.subr.mxu0 0.0
    %2366 = vmatpush1.msra.mxu0 0.0
    %2367 = vmatprep.subr.mxu0 0.0
    %2368 = vmatpush1.msra.mxu0 0.0
    %2369 = vmatprep.subr.mxu0 0.0
    %2370 = vmatpush1.msra.mxu0 0.0
    %2371 = vmatprep.subr.mxu0 0.0
    %2372 = vmatpush1.msra.mxu0 0.0
    %2373 = vmatprep.subr.mxu0 0.0
    %2374 = vmatpush1.msra.mxu0 0.0
    %2375 = vmatprep.mubr.f32.mxu0 0.0
    %2376 = vmatmul.mubr.f32.gmra.mrb[0].mxu0 %v2285
    %v2377 = vpop.f32.mrb[0].mxu0
    %v2378 = vadd.f32 %v2309, %v2377
    %v2379 = vpop.f32.mrb[0].mxu0
    %2380 = vdwg.mxu0
    %s2381 = scalar_lea.vmem [#allocation10], 48
    %2382 = vst [vmem:[%s2381] sm:$0xff] %v2378
    %s2383 = scalar_lea.vmem [#allocation7], 2688
    %v2384 = vld [vmem:[%s2383] sm:$0xff]
    %v2385 = vld [vmem:[%s2383 + $0x8] sm:$0xff]
    %v2386 = vld [vmem:[%s2383 + $0x10] sm:$0xff]
    %v2387 = vld [vmem:[%s2383 + $0x18] sm:$0xff]
    %v2388 = vld [vmem:[%s2383 + $0x20] sm:$0xff]
    %v2389 = vld [vmem:[%s2383 + $0x28] sm:$0xff]
    %v2390 = vld [vmem:[%s2383 + $0x30] sm:$0xff]
    %v2391 = vld [vmem:[%s2383 + $0x38] sm:$0xff]
    %v2392 = vld [vmem:[%s2383 + $0x40] sm:$0xff]
    %v2393 = vld [vmem:[%s2383 + $0x48] sm:$0xff]
    %v2394 = vld [vmem:[%s2383 + $0x50] sm:$0xff]
    %v2395 = vld [vmem:[%s2383 + $0x58] sm:$0xff]
    %v2396 = vld [vmem:[%s2383 + $0x60] sm:$0xff]
    %v2397 = vld [vmem:[%s2383 + $0x68] sm:$0xff]
    %v2398 = vld [vmem:[%s2383 + $0x70] sm:$0xff]
    %v2399 = vld [vmem:[%s2383 + $0x78] sm:$0xff]
    %s2400 = scalar_lea.vmem [#allocation8], 21
    %v2401 = vld [vmem:[%s2400] sm:$0x1]
    %v2403 = vlaneseq
    %v2404 = vshrl.u32 %v2403, 7
    %v2405 = vsub.s32 0, %v2404
    %v2406 = vrot.slane %v2401, %v2405
    %2408 = vmatprep.subr.mxu0 0.0
    %2409 = vmatpush1.msra.mxu0 %v2384
    %2410 = vmatprep.subr.mxu0 0.0
    %2411 = vmatpush1.msra.mxu0 %v2385
    %2412 = vmatprep.subr.mxu0 0.0
    %2413 = vmatpush1.msra.mxu0 %v2386
    %2414 = vmatprep.subr.mxu0 0.0
    %2415 = vmatpush1.msra.mxu0 %v2387
    %2416 = vmatprep.subr.mxu0 0.0
    %2417 = vmatpush1.msra.mxu0 %v2388
    %2418 = vmatprep.subr.mxu0 0.0
    %2419 = vmatpush1.msra.mxu0 %v2389
    %2420 = vmatprep.subr.mxu0 0.0
    %2421 = vmatpush1.msra.mxu0 %v2390
    %2422 = vmatprep.subr.mxu0 0.0
    %2423 = vmatpush1.msra.mxu0 %v2391
    %2424 = vmatprep.subr.mxu0 0.0
    %2425 = vmatpush1.msra.mxu0 %v2392
    %2426 = vmatprep.subr.mxu0 0.0
    %2427 = vmatpush1.msra.mxu0 %v2393
    %2428 = vmatprep.subr.mxu0 0.0
    %2429 = vmatpush1.msra.mxu0 %v2394
    %2430 = vmatprep.subr.mxu0 0.0
    %2431 = vmatpush1.msra.mxu0 %v2395
    %2432 = vmatprep.subr.mxu0 0.0
    %2433 = vmatpush1.msra.mxu0 %v2396
    %2434 = vmatprep.subr.mxu0 0.0
    %2435 = vmatpush1.msra.mxu0 %v2397
    %2436 = vmatprep.subr.mxu0 0.0
    %2437 = vmatpush1.msra.mxu0 %v2398
    %2438 = vmatprep.subr.mxu0 0.0
    %2439 = vmatpush1.msra.mxu0 %v2399
    %2440 = vmatprep.subr.mxu0 0.0
    %2441 = vmatpush1.msra.mxu0 0.0
    %2442 = vmatprep.subr.mxu0 0.0
    %2443 = vmatpush1.msra.mxu0 0.0
    %2444 = vmatprep.subr.mxu0 0.0
    %2445 = vmatpush1.msra.mxu0 0.0
    %2446 = vmatprep.subr.mxu0 0.0
    %2447 = vmatpush1.msra.mxu0 0.0
    %2448 = vmatprep.subr.mxu0 0.0
    %2449 = vmatpush1.msra.mxu0 0.0
    %2450 = vmatprep.subr.mxu0 0.0
    %2451 = vmatpush1.msra.mxu0 0.0
    %2452 = vmatprep.subr.mxu0 0.0
    %2453 = vmatpush1.msra.mxu0 0.0
    %2454 = vmatprep.subr.mxu0 0.0
    %2455 = vmatpush1.msra.mxu0 0.0
    %2456 = vmatprep.subr.mxu0 0.0
    %2457 = vmatpush1.msra.mxu0 0.0
    %2458 = vmatprep.subr.mxu0 0.0
    %2459 = vmatpush1.msra.mxu0 0.0
    %2460 = vmatprep.subr.mxu0 0.0
    %2461 = vmatpush1.msra.mxu0 0.0
    %2462 = vmatprep.subr.mxu0 0.0
    %2463 = vmatpush1.msra.mxu0 0.0
    %2464 = vmatprep.subr.mxu0 0.0
    %2465 = vmatpush1.msra.mxu0 0.0
    %2466 = vmatprep.subr.mxu0 0.0
    %2467 = vmatpush1.msra.mxu0 0.0
    %2468 = vmatprep.subr.mxu0 0.0
    %2469 = vmatpush1.msra.mxu0 0.0
    %2470 = vmatprep.subr.mxu0 0.0
    %2471 = vmatpush1.msra.mxu0 0.0
    %2472 = vmatprep.mubr.f32.mxu0 0.0
    %2473 = vmatmul.mubr.f32.gmra.mrb[0].mxu0 %v362
    %v2474 = vpop.f32.mrb[0].mxu0
    %v2475 = vadd.f32 %v2406, %v2474
    %v2476 = vpop.f32.mrb[0].mxu0
    %2477 = vdwg.mxu0
    %v2478 = vtanh.pop %v2475
    %s2479 = scalar_lea.vmem [#allocation7], 2816
    %v2480 = vld [vmem:[%s2479] sm:$0xff]
    %v2481 = vld [vmem:[%s2479 + $0x8] sm:$0xff]
    %v2482 = vld [vmem:[%s2479 + $0x10] sm:$0xff]
    %v2483 = vld [vmem:[%s2479 + $0x18] sm:$0xff]
    %v2484 = vld [vmem:[%s2479 + $0x20] sm:$0xff]
    %v2485 = vld [vmem:[%s2479 + $0x28] sm:$0xff]
    %v2486 = vld [vmem:[%s2479 + $0x30] sm:$0xff]
    %v2487 = vld [vmem:[%s2479 + $0x38] sm:$0xff]
    %v2488 = vld [vmem:[%s2479 + $0x40] sm:$0xff]
    %v2489 = vld [vmem:[%s2479 + $0x48] sm:$0xff]
    %v2490 = vld [vmem:[%s2479 + $0x50] sm:$0xff]
    %v2491 = vld [vmem:[%s2479 + $0x58] sm:$0xff]
    %v2492 = vld [vmem:[%s2479 + $0x60] sm:$0xff]
    %v2493 = vld [vmem:[%s2479 + $0x68] sm:$0xff]
    %v2494 = vld [vmem:[%s2479 + $0x70] sm:$0xff]
    %v2495 = vld [vmem:[%s2479 + $0x78] sm:$0xff]
    %s2496 = scalar_lea.vmem [#allocation8], 22
    %v2497 = vld [vmem:[%s2496] sm:$0x1]
    %v2499 = vlaneseq
    %v2500 = vshrl.u32 %v2499, 7
    %v2501 = vsub.s32 0, %v2500
    %v2502 = vrot.slane %v2497, %v2501
    %2504 = vmatprep.subr.mxu0 0.0
    %2505 = vmatpush1.msra.mxu0 %v2480
    %2506 = vmatprep.subr.mxu0 0.0
    %2507 = vmatpush1.msra.mxu0 %v2481
    %2508 = vmatprep.subr.mxu0 0.0
    %2509 = vmatpush1.msra.mxu0 %v2482
    %2510 = vmatprep.subr.mxu0 0.0
    %2511 = vmatpush1.msra.mxu0 %v2483
    %2512 = vmatprep.subr.mxu0 0.0
    %2513 = vmatpush1.msra.mxu0 %v2484
    %2514 = vmatprep.subr.mxu0 0.0
    %2515 = vmatpush1.msra.mxu0 %v2485
    %2516 = vmatprep.subr.mxu0 0.0
    %2517 = vmatpush1.msra.mxu0 %v2486
    %2518 = vmatprep.subr.mxu0 0.0
    %2519 = vmatpush1.msra.mxu0 %v2487
    %2520 = vmatprep.subr.mxu0 0.0
    %2521 = vmatpush1.msra.mxu0 %v2488
    %2522 = vmatprep.subr.mxu0 0.0
    %2523 = vmatpush1.msra.mxu0 %v2489
    %2524 = vmatprep.subr.mxu0 0.0
    %2525 = vmatpush1.msra.mxu0 %v2490
    %2526 = vmatprep.subr.mxu0 0.0
    %2527 = vmatpush1.msra.mxu0 %v2491
    %2528 = vmatprep.subr.mxu0 0.0
    %2529 = vmatpush1.msra.mxu0 %v2492
    %2530 = vmatprep.subr.mxu0 0.0
    %2531 = vmatpush1.msra.mxu0 %v2493
    %2532 = vmatprep.subr.mxu0 0.0
    %2533 = vmatpush1.msra.mxu0 %v2494
    %2534 = vmatprep.subr.mxu0 0.0
    %2535 = vmatpush1.msra.mxu0 %v2495
    %2536 = vmatprep.subr.mxu0 0.0
    %2537 = vmatpush1.msra.mxu0 0.0
    %2538 = vmatprep.subr.mxu0 0.0
    %2539 = vmatpush1.msra.mxu0 0.0
    %2540 = vmatprep.subr.mxu0 0.0
    %2541 = vmatpush1.msra.mxu0 0.0
    %2542 = vmatprep.subr.mxu0 0.0
    %2543 = vmatpush1.msra.mxu0 0.0
    %2544 = vmatprep.subr.mxu0 0.0
    %2545 = vmatpush1.msra.mxu0 0.0
    %2546 = vmatprep.subr.mxu0 0.0
    %2547 = vmatpush1.msra.mxu0 0.0
    %2548 = vmatprep.subr.mxu0 0.0
    %2549 = vmatpush1.msra.mxu0 0.0
    %2550 = vmatprep.subr.mxu0 0.0
    %2551 = vmatpush1.msra.mxu0 0.0
    %2552 = vmatprep.subr.mxu0 0.0
    %2553 = vmatpush1.msra.mxu0 0.0
    %2554 = vmatprep.subr.mxu0 0.0
    %2555 = vmatpush1.msra.mxu0 0.0
    %2556 = vmatprep.subr.mxu0 0.0
    %2557 = vmatpush1.msra.mxu0 0.0
    %2558 = vmatprep.subr.mxu0 0.0
    %2559 = vmatpush1.msra.mxu0 0.0
    %2560 = vmatprep.subr.mxu0 0.0
    %2561 = vmatpush1.msra.mxu0 0.0
    %2562 = vmatprep.subr.mxu0 0.0
    %2563 = vmatpush1.msra.mxu0 0.0
    %2564 = vmatprep.subr.mxu0 0.0
    %2565 = vmatpush1.msra.mxu0 0.0
    %2566 = vmatprep.subr.mxu0 0.0
    %2567 = vmatpush1.msra.mxu0 0.0
    %2568 = vmatprep.mubr.f32.mxu0 0.0
    %2569 = vmatmul.mubr.f32.gmra.mrb[0].mxu0 %v2478
    %v2570 = vpop.f32.mrb[0].mxu0
    %v2571 = vadd.f32 %v2502, %v2570
    %v2572 = vpop.f32.mrb[0].mxu0
    %2573 = vdwg.mxu0
    %v2574 = vtanh.pop %v2571
    %s2575 = scalar_lea.vmem [#allocation7], 2944
    %v2576 = vld [vmem:[%s2575] sm:$0xff]
    %v2577 = vld [vmem:[%s2575 + $0x8] sm:$0xff]
    %v2578 = vld [vmem:[%s2575 + $0x10] sm:$0xff]
    %v2579 = vld [vmem:[%s2575 + $0x18] sm:$0xff]
    %v2580 = vld [vmem:[%s2575 + $0x20] sm:$0xff]
    %v2581 = vld [vmem:[%s2575 + $0x28] sm:$0xff]
    %v2582 = vld [vmem:[%s2575 + $0x30] sm:$0xff]
    %v2583 = vld [vmem:[%s2575 + $0x38] sm:$0xff]
    %v2584 = vld [vmem:[%s2575 + $0x40] sm:$0xff]
    %v2585 = vld [vmem:[%s2575 + $0x48] sm:$0xff]
    %v2586 = vld [vmem:[%s2575 + $0x50] sm:$0xff]
    %v2587 = vld [vmem:[%s2575 + $0x58] sm:$0xff]
    %v2588 = vld [vmem:[%s2575 + $0x60] sm:$0xff]
    %v2589 = vld [vmem:[%s2575 + $0x68] sm:$0xff]
    %v2590 = vld [vmem:[%s2575 + $0x70] sm:$0xff]
    %v2591 = vld [vmem:[%s2575 + $0x78] sm:$0xff]
    %s2592 = scalar_lea.vmem [#allocation8], 23
    %v2593 = vld [vmem:[%s2592] sm:$0x1]
    %v2595 = vlaneseq
    %v2596 = vshrl.u32 %v2595, 7
    %v2597 = vsub.s32 0, %v2596
    %v2598 = vrot.slane %v2593, %v2597
    %2600 = vmatprep.subr.mxu0 0.0
    %2601 = vmatpush1.msra.mxu0 %v2576
    %2602 = vmatprep.subr.mxu0 0.0
    %2603 = vmatpush1.msra.mxu0 %v2577
    %2604 = vmatprep.subr.mxu0 0.0
    %2605 = vmatpush1.msra.mxu0 %v2578
    %2606 = vmatprep.subr.mxu0 0.0
    %2607 = vmatpush1.msra.mxu0 %v2579
    %2608 = vmatprep.subr.mxu0 0.0
    %2609 = vmatpush1.msra.mxu0 %v2580
    %2610 = vmatprep.subr.mxu0 0.0
    %2611 = vmatpush1.msra.mxu0 %v2581
    %2612 = vmatprep.subr.mxu0 0.0
    %2613 = vmatpush1.msra.mxu0 %v2582
    %2614 = vmatprep.subr.mxu0 0.0
    %2615 = vmatpush1.msra.mxu0 %v2583
    %2616 = vmatprep.subr.mxu0 0.0
    %2617 = vmatpush1.msra.mxu0 %v2584
    %2618 = vmatprep.subr.mxu0 0.0
    %2619 = vmatpush1.msra.mxu0 %v2585
    %2620 = vmatprep.subr.mxu0 0.0
    %2621 = vmatpush1.msra.mxu0 %v2586
    %2622 = vmatprep.subr.mxu0 0.0
    %2623 = vmatpush1.msra.mxu0 %v2587
    %2624 = vmatprep.subr.mxu0 0.0
    %2625 = vmatpush1.msra.mxu0 %v2588
    %2626 = vmatprep.subr.mxu0 0.0
    %2627 = vmatpush1.msra.mxu0 %v2589
    %2628 = vmatprep.subr.mxu0 0.0
    %2629 = vmatpush1.msra.mxu0 %v2590
    %2630 = vmatprep.subr.mxu0 0.0
    %2631 = vmatpush1.msra.mxu0 %v2591
    %2632 = vmatprep.subr.mxu0 0.0
    %2633 = vmatpush1.msra.mxu0 0.0
    %2634 = vmatprep.subr.mxu0 0.0
    %2635 = vmatpush1.msra.mxu0 0.0
    %2636 = vmatprep.subr.mxu0 0.0
    %2637 = vmatpush1.msra.mxu0 0.0
    %2638 = vmatprep.subr.mxu0 0.0
    %2639 = vmatpush1.msra.mxu0 0.0
    %2640 = vmatprep.subr.mxu0 0.0
    %2641 = vmatpush1.msra.mxu0 0.0
    %2642 = vmatprep.subr.mxu0 0.0
    %2643 = vmatpush1.msra.mxu0 0.0
    %2644 = vmatprep.subr.mxu0 0.0
    %2645 = vmatpush1.msra.mxu0 0.0
    %2646 = vmatprep.subr.mxu0 0.0
    %2647 = vmatpush1.msra.mxu0 0.0
    %2648 = vmatprep.subr.mxu0 0.0
    %2649 = vmatpush1.msra.mxu0 0.0
    %2650 = vmatprep.subr.mxu0 0.0
    %2651 = vmatpush1.msra.mxu0 0.0
    %2652 = vmatprep.subr.mxu0 0.0
    %2653 = vmatpush1.msra.mxu0 0.0
    %2654 = vmatprep.subr.mxu0 0.0
    %2655 = vmatpush1.msra.mxu0 0.0
    %2656 = vmatprep.subr.mxu0 0.0
    %2657 = vmatpush1.msra.mxu0 0.0
    %2658 = vmatprep.subr.mxu0 0.0
    %2659 = vmatpush1.msra.mxu0 0.0
    %2660 = vmatprep.subr.mxu0 0.0
    %2661 = vmatpush1.msra.mxu0 0.0
    %2662 = vmatprep.subr.mxu0 0.0
    %2663 = vmatpush1.msra.mxu0 0.0
    %2664 = vmatprep.mubr.f32.mxu0 0.0
    %2665 = vmatmul.mubr.f32.gmra.mrb[0].mxu0 %v2574
    %v2666 = vpop.f32.mrb[0].mxu0
    %v2667 = vadd.f32 %v2598, %v2666
    %v2668 = vpop.f32.mrb[0].mxu0
    %2669 = vdwg.mxu0
    %s2670 = scalar_lea.vmem [#allocation10], 56
    %2671 = vst [vmem:[%s2670] sm:$0xff] %v2667
    // Predicated region
    $region38: #{hierarchical_ae_forward.1} parent=1 // pred_check
      _
    $region39: #{hierarchical_ae_forward.1} parent=1 // pred_check_branch
      %2673 = sbr.rel (0) target = $region41
    $region40: #{hierarchical_ae_forward.1} parent=1 // pred_region
      %s2675 = ssub.s32 1024, 1024
      %2676 = vsyncadd [#allocation4], %s2675
      %s2677 = sshll.u32 [#allocation10], 4
      %s2678 = int_to_ptr.vmem [resolvable:$true] %s2677
      %2683 = dma.vmem_to_hbm [thread:$0]  %s2678, 1024, %s5, [#allocation4], 128, 128, 8
    $region41: #{hierarchical_ae_forward.1} parent=1 // pred_fallthru
      _
    // Predicated region
    $region42: #{hierarchical_ae_forward.1} parent=1 // pred_check
      _
    $region43: #{hierarchical_ae_forward.1} parent=1 // pred_check_branch
      %2685 = sbr.rel (0) target = $region45
    $region44: #{hierarchical_ae_forward.1} parent=1 // pred_region
      %2686 = dma.done [#allocation4], 1024
    $region45: #{hierarchical_ae_forward.1} parent=1 // pred_fallthru
      _
    %2687 = vsyncpa [#allocation3], 1
    %2688 = vsyncpa [#allocation6], 1
    %2689 = vsyncpa [#allocation9], 1
    %2690 = vsyncpa [#allocation4], 1

</llo_original>
